<compile_context>
chip_gen: v7x
topology: tpu7x:2x2x1
jax: 0.10.0
libtpu: 0.0.40
codegen_flags: <defaults>
</compile_context>

<pallas_src>
import jax
import jax.numpy as jnp
from jax import lax
from jax.experimental import pallas as pl
from jax.experimental.pallas import tpu as pltpu


def _round_up(x, m):
    return ((x + m - 1) // m) * m


def _make_usblock_kernel(H, W, Cp, Wp, R):
    """Builds the fused USBlock kernel body for fixed static geometry.

    H, W : image height / width, Cp: lane-padded channels, Wp: wide row length
    (W + left/right zero pad, rounded to a multiple of 16), R: output rows per
    accumulation chunk (divides H).
    """
    Mw = R * Wp                # wide rows handled per chunk
    n_chunks = H // R
    K3 = 3 * Cp                # deep-K contraction: 3 vertical taps fused

    def kernel(x_ref, w1_ref, b1_ref, w2_ref, b2_ref, out_ref,
               pad1, pad2, stage):
        # wide-column validity mask: real image columns are u in [1, W]
        col = lax.broadcasted_iota(jnp.int32, (Mw, 1), 0) % Wp
        valid = jnp.logical_and(col >= 1, col <= W)

        # ---- stage the input image into the zero-halo wide scratch ---------
        zrow = jnp.zeros((Wp, Cp), pad1.dtype)
        pad1[pl.ds(0, Wp), :] = zrow                       # top halo row
        pad1[pl.ds((H + 1) * Wp, Wp), :] = zrow            # bottom halo row
        pad2[pl.ds(0, Wp), :] = zrow
        pad2[pl.ds((H + 1) * Wp, Wp), :] = zrow
        # x arrives already in the wide-row layout -> dense aligned store
        pad1[pl.ds(Wp, H * Wp), :] = x_ref[...].reshape(H * Wp, Cp)

        def conv3x3_chunk(src, w_ref, y0w):
            """3x3 / stride-1 conv for R output rows at wide flat offset y0w."""
            # deep-K staging: channel-block ky holds the ky-shifted row slab
            for ky in range(3):
                off = pl.multiple_of(y0w + ky * Wp, Wp)
                stage[:, ky * Cp:(ky + 1) * Cp] = src[pl.ds(off, Mw), :]
            acc = jnp.zeros((Mw, Cp), jnp.float32)
            for kx in range(3):                       # 3 dots, K = 3*Cp each
                d = jnp.dot(stage[...], w_ref[kx * K3:(kx + 1) * K3, :],
                            preferred_element_type=jnp.float32)
                shift = (1 - kx) % Mw                 # kx=0:+1, kx=1:0, kx=2:Mw-1
                if shift:
                    # column shift on the f32 partial (XLU); wrapped elements
                    # land only in padding columns, so no extra masking needed
                    d = pltpu.roll(d, shift, axis=0)
                acc = acc + d
            return acc

        # ---- conv1 (+ folded BN1 shift) + ReLU -> pad2 ----------------------
        def body1(c, carry):
            y0w = pl.multiple_of(c * Mw, Mw)
            h = conv3x3_chunk(pad1, w1_ref, y0w) + b1_ref[...]
            h = jnp.where(valid, jnp.maximum(h, 0.0), 0.0)   # keep pad cols zero
            dst = pl.multiple_of(Wp + y0w, Wp)
            pad2[pl.ds(dst, Mw), :] = h.astype(pad2.dtype)
            return carry
        lax.fori_loop(0, n_chunks, body1, 0)

        # ---- conv2 (+ folded BN2 shift) + identity + ReLU -> out ------------
        def body2(c, carry):
            y0w = pl.multiple_of(c * Mw, Mw)
            h = conv3x3_chunk(pad2, w2_ref, y0w) + b2_ref[...]
            src = pl.multiple_of(Wp + y0w, Wp)
            h = h + pad1[pl.ds(src, Mw), :].astype(jnp.float32)   # identity add
            h = jnp.maximum(h, 0.0).reshape(R, Wp, Cp)
            out_ref[pl.ds(c * R, R), :, :] = h[:, 1:W + 1, :].astype(out_ref.dtype)
            return carry
        lax.fori_loop(0, n_chunks, body2, 0)

    return kernel


def usblock_forward(x_nhwc, w1, gamma1, beta1, mean1, var1,
                    w2, gamma2, beta2, mean2, var2, eps=1e-5):
    """x_nhwc: (N,H,W,C) f32; conv weights HWIO (3,3,C,C). Returns (N,H,W,C)."""
    N, H, W, C = x_nhwc.shape
    assert w1.shape == (3, 3, C, C) and w2.shape == (3, 3, C, C), \
        "down_sample=None path requires in_ch == out_ch and stride 1"

    LANE = 128
    Cp = _round_up(C, LANE)            # lane-dense channel count
    Wp = _round_up(W + 2, 16)          # wide row (with zero pad), tile aligned
    pc = Cp - C

    # Fold eval-mode BN: scale goes into the conv weights, shift stays.
    def fold(w, gamma, beta, mean, var):
        inv = gamma / jnp.sqrt(var + eps)
        shift = beta - mean * inv
        w_s = w * inv[None, None, None, :]
        w_p = jnp.pad(w_s, ((0, 0), (0, 0), (0, pc), (0, pc)))
        # (ky,kx,i,o) -> (kx,ky,i,o) so each kx owns a contiguous (3*Cp, Cp) block
        w_f = jnp.transpose(w_p, (1, 0, 2, 3)).reshape(9 * Cp, Cp)
        shift_p = jnp.pad(shift, (0, pc)).reshape(1, Cp).astype(jnp.float32)
        return w_f.astype(jnp.bfloat16), shift_p

    w1f, b1 = fold(w1, gamma1, beta1, mean1, var1)
    w2f, b2 = fold(w2, gamma2, beta2, mean2, var2)

    # bf16 activations in HBM, pre-laid-out in the zero-padded wide rows
    x_wide = jnp.pad(
        x_nhwc, ((0, 0), (0, 0), (1, Wp - W - 1), (0, pc))).astype(jnp.bfloat16)

    # chunk rows so the per-chunk f32 accumulator stays ~64 KiB (vreg resident)
    R = max(1, min(H, (16384 // Cp) // Wp))
    while H % R:
        R -= 1
    Mw = R * Wp

    kernel = _make_usblock_kernel(H, W, Cp, Wp, R)

    img4 = lambda n: (n, 0, 0, 0)
    const2 = lambda n: (0, 0)

    out_p = pl.pallas_call(
        kernel,
        out_shape=jax.ShapeDtypeStruct((N, H, W, Cp), jnp.bfloat16),
        grid_spec=pltpu.PrefetchScalarGridSpec(
            num_scalar_prefetch=0,
            grid=(N,),
            in_specs=[
                pl.BlockSpec((None, H, Wp, Cp), img4),   # x (wide rows, bf16)
                pl.BlockSpec((9 * Cp, Cp), const2),      # w1 (BN1 scale folded)
                pl.BlockSpec((1, Cp), const2),           # BN1 shift
                pl.BlockSpec((9 * Cp, Cp), const2),      # w2 (BN2 scale folded)
                pl.BlockSpec((1, Cp), const2),           # BN2 shift
            ],
            out_specs=pl.BlockSpec((None, H, W, Cp), img4),
            scratch_shapes=[
                pltpu.VMEM(((H + 2) * Wp, Cp), jnp.bfloat16),  # pad1: input
                pltpu.VMEM(((H + 2) * Wp, Cp), jnp.bfloat16),  # pad2: mid
                pltpu.VMEM((Mw, 3 * Cp), jnp.bfloat16),        # deep-K staging
            ],
        ),
        compiler_params=pltpu.CompilerParams(
            dimension_semantics=("parallel",),           # megacore over batch
            vmem_limit_bytes=32 * 1024 * 1024,
        ),
    )(x_wide, w1f, b1, w2f, b2)

    return out_p[..., :C].astype(x_nhwc.dtype)


if __name__ == "__main__":
    # Shapes consistent with the module: in_ch == out_ch, stride=1,
    # down_sample=None -> identity residual add.
    N, C, H, W = 2, 8, 16, 16

    key = jax.random.PRNGKey(0)
    ks = jax.random.split(key, 11)

    x_nchw = jax.random.normal(ks[0], (N, C, H, W), jnp.float32)   # PyTorch layout
    x_nhwc = jnp.transpose(x_nchw, (0, 2, 3, 1))                   # kernel layout

    # conv weights: PyTorch (out, in, kh, kw) -> HWIO (kh, kw, in, out)
    w1_oihw = 0.1 * jax.random.normal(ks[1], (C, C, 3, 3), jnp.float32)
    w2_oihw = 0.1 * jax.random.normal(ks[2], (C, C, 3, 3), jnp.float32)
    w1 = jnp.transpose(w1_oihw, (2, 3, 1, 0))
    w2 = jnp.transpose(w2_oihw, (2, 3, 1, 0))

    gamma1 = 0.5 + jax.random.uniform(ks[3], (C,), jnp.float32)
    beta1 = 0.1 * jax.random.normal(ks[4], (C,), jnp.float32)
    mean1 = 0.1 * jax.random.normal(ks[5], (C,), jnp.float32)
    var1 = 0.5 + jax.random.uniform(ks[6], (C,), jnp.float32)

    gamma2 = 0.5 + jax.random.uniform(ks[7], (C,), jnp.float32)
    beta2 = 0.1 * jax.random.normal(ks[8], (C,), jnp.float32)
    mean2 = 0.1 * jax.random.normal(ks[9], (C,), jnp.float32)
    var2 = 0.5 + jax.random.uniform(ks[10], (C,), jnp.float32)

    out = usblock_forward(x_nhwc, w1, gamma1, beta1, mean1, var1,
                          w2, gamma2, beta2, mean2, var2)
    out = jax.block_until_ready(out)

    # f32 XLA reference with the same folded eval-mode BN semantics.
    eps = 1e-5
    inv1 = gamma1 / jnp.sqrt(var1 + eps)
    inv2 = gamma2 / jnp.sqrt(var2 + eps)
    s1 = inv1.reshape(1, 1, 1, -1); sh1 = (beta1 - mean1 * inv1).reshape(1, 1, 1, -1)
    s2 = inv2.reshape(1, 1, 1, -1); sh2 = (beta2 - mean2 * inv2).reshape(1, 1, 1, -1)
    dn = ('NHWC', 'HWIO', 'NHWC')
    c1 = lax.conv_general_dilated(x_nhwc, w1, (1, 1), 'SAME', dimension_numbers=dn)
    mid = jnp.maximum(c1 * s1 + sh1, 0.0)
    c2 = lax.conv_general_dilated(mid, w2, (1, 1), 'SAME', dimension_numbers=dn)
    ref = jnp.maximum(c2 * s2 + sh2 + x_nhwc, 0.0)

    assert out.shape == (N, H, W, C)
    # bf16 activations / weights with f32 accumulation vs full-f32 reference.
    assert jnp.allclose(out, ref, atol=7.5e-2, rtol=7.5e-2), "mismatch vs reference"

    # back to PyTorch NCHW layout for the module's output convention
    out_nchw = jnp.transpose(out, (0, 3, 1, 2))
    jax.block_until_ready(out_nchw)

    print("KERNEL_OK")
</pallas_src>

<mosaic_0001>
module attributes {stable_mosaic.version = 11 : i64} {
  func.func @kernel(%arg0: i32, %arg1: memref<1x16x32x128xbf16, #tpu.memory_space<vmem>>, %arg2: memref<1152x128xbf16, #tpu.memory_space<vmem>>, %arg3: memref<1x128xf32, #tpu.memory_space<vmem>>, %arg4: memref<1152x128xbf16, #tpu.memory_space<vmem>>, %arg5: memref<1x128xf32, #tpu.memory_space<vmem>>, %arg6: memref<1x16x16x128xbf16, #tpu.memory_space<vmem>>, %arg7: memref<576x128xbf16, #tpu.memory_space<vmem>>, %arg8: memref<576x128xbf16, #tpu.memory_space<vmem>>, %arg9: memref<128x384xbf16, #tpu.memory_space<vmem>>) attributes {dimension_semantics = [#tpu.dimension_semantics<parallel>], iteration_bounds = array<i64: 2>, scalar_prefetch = 0 : i64, scratch_operands = 3 : i64, tpu.core_type = #tpu.core_type<tc>, window_params = [{transform_indices = @transform_0, window_bounds = array<i64: 1, 16, 32, 128>}, {pipeline_mode = #tpu.pipeline_mode<synchronous>, transform_indices = @transform_1, window_bounds = array<i64: 1152, 128>}, {pipeline_mode = #tpu.pipeline_mode<synchronous>, transform_indices = @transform_2, window_bounds = array<i64: 1, 128>}, {pipeline_mode = #tpu.pipeline_mode<synchronous>, transform_indices = @transform_3, window_bounds = array<i64: 1152, 128>}, {pipeline_mode = #tpu.pipeline_mode<synchronous>, transform_indices = @transform_4, window_bounds = array<i64: 1, 128>}, {transform_indices = @transform_5, window_bounds = array<i64: 1, 16, 16, 128>}]} {
    %0 = tpu.iota {dimensions = array<i32: 0>} : vector<128x1xi32>
    %c32_i32 = arith.constant 32 : i32
    %c0_i32 = arith.constant 0 : i32
    %1 = arith.cmpi eq, %c32_i32, %c0_i32 : i32
    %c1_i32 = arith.constant 1 : i32
    %2 = arith.select %1, %c1_i32, %c32_i32 : i32
    %3 = vector.broadcast %2 : i32 to vector<128x1xi32>
    %4 = arith.remsi %0, %3 : vector<128x1xi32>
    %c0_i32_0 = arith.constant 0 : i32
    %5 = vector.broadcast %c0_i32_0 : i32 to vector<128x1xi32>
    %6 = arith.cmpi ne, %4, %5 : vector<128x1xi32>
    %c0_i32_1 = arith.constant 0 : i32
    %7 = vector.broadcast %c0_i32_1 : i32 to vector<128x1xi32>
    %8 = arith.cmpi slt, %4, %7 : vector<128x1xi32>
    %c0_i32_2 = arith.constant 0 : i32
    %9 = arith.cmpi slt, %2, %c0_i32_2 : i32
    %10 = vector.broadcast %9 : i1 to vector<128x1xi1>
    %11 = vector.broadcast %10 : vector<128x1xi1> to vector<128x1xi1>
    %12 = arith.xori %8, %11 : vector<128x1xi1>
    %13 = arith.andi %12, %6 : vector<128x1xi1>
    %14 = vector.broadcast %2 : i32 to vector<128x1xi32>
    %15 = arith.addi %4, %14 : vector<128x1xi32>
    %16 = arith.select %13, %15, %4 : vector<128x1xi1>, vector<128x1xi32>
    %c1_i32_3 = arith.constant 1 : i32
    %17 = vector.broadcast %c1_i32_3 : i32 to vector<128x1xi32>
    %18 = arith.cmpi sge, %16, %17 : vector<128x1xi32>
    %c16_i32 = arith.constant 16 : i32
    %19 = vector.broadcast %c16_i32 : i32 to vector<128x1xi32>
    %20 = arith.cmpi sle, %16, %19 : vector<128x1xi32>
    %21 = arith.andi %18, %20 : vector<128x1xi1>
    %cst = arith.constant 0.000000e+00 : bf16
    %22 = vector.broadcast %cst : bf16 to vector<32x128xbf16>
    %c0 = arith.constant 0 : index
    %c0_4 = arith.constant 0 : index
    %23 = vector.load %arg7[%c0, %c0_4] : memref<576x128xbf16, #tpu.memory_space<vmem>>, vector<32x128xbf16>
    tpu.vector_store %arg7[%c0, %c0_4], %22 {strides = array<i32>} : memref<576x128xbf16, #tpu.memory_space<vmem>>, vector<32x128xbf16>,
    %c544 = arith.constant 544 : index
    %c0_5 = arith.constant 0 : index
    %24 = vector.load %arg7[%c544, %c0_5] : memref<576x128xbf16, #tpu.memory_space<vmem>>, vector<32x128xbf16>
    tpu.vector_store %arg7[%c544, %c0_5], %22 {strides = array<i32>} : memref<576x128xbf16, #tpu.memory_space<vmem>>, vector<32x128xbf16>,
    %c0_6 = arith.constant 0 : index
    %c0_7 = arith.constant 0 : index
    %25 = vector.load %arg8[%c0_6, %c0_7] : memref<576x128xbf16, #tpu.memory_space<vmem>>, vector<32x128xbf16>
    tpu.vector_store %arg8[%c0_6, %c0_7], %22 {strides = array<i32>} : memref<576x128xbf16, #tpu.memory_space<vmem>>, vector<32x128xbf16>,
    %c544_8 = arith.constant 544 : index
    %c0_9 = arith.constant 0 : index
    %26 = vector.load %arg8[%c544_8, %c0_9] : memref<576x128xbf16, #tpu.memory_space<vmem>>, vector<32x128xbf16>
    tpu.vector_store %arg8[%c544_8, %c0_9], %22 {strides = array<i32>} : memref<576x128xbf16, #tpu.memory_space<vmem>>, vector<32x128xbf16>,
    %c0_10 = arith.constant 0 : index
    %c0_11 = arith.constant 0 : index
    %c0_12 = arith.constant 0 : index
    %c0_13 = arith.constant 0 : index
    %27 = vector.load %arg1[%c0_10, %c0_11, %c0_12, %c0_13] : memref<1x16x32x128xbf16, #tpu.memory_space<vmem>>, vector<1x16x32x128xbf16>
    %28 = vector.shape_cast %27 : vector<1x16x32x128xbf16> to vector<16x32x128xbf16>
    %29 = vector.shape_cast %28 : vector<16x32x128xbf16> to vector<512x128xbf16>
    %c32 = arith.constant 32 : index
    %c0_14 = arith.constant 0 : index
    %30 = vector.load %arg7[%c32, %c0_14] : memref<576x128xbf16, #tpu.memory_space<vmem>>, vector<512x128xbf16>
    tpu.vector_store %arg7[%c32, %c0_14], %29 {strides = array<i32>} : memref<576x128xbf16, #tpu.memory_space<vmem>>, vector<512x128xbf16>,
    %c0_i32_15 = arith.constant 0 : i32
    %c4_i32 = arith.constant 4 : i32
    %31 = arith.addi %c0_i32_15, %c4_i32 : i32
    %c1_i32_16 = arith.constant 1 : i32
    scf.for %arg10 = %c0_i32_15 to %31 step %c1_i32_16  : i32 {
      %c128_i32 = arith.constant 128 : i32
      %33 = arith.muli %arg10, %c128_i32 : i32
      %34 = tpu.assume_multiple %33, 128 : i32
      %c0_i32_22 = arith.constant 0 : i32
      %35 = arith.addi %34, %c0_i32_22 : i32
      %36 = tpu.assume_multiple %35, 32 : i32
      %37 = arith.index_cast %36 : i32 to index
      %c0_23 = arith.constant 0 : index
      %38 = vector.load %arg7[%37, %c0_23] : memref<576x128xbf16, #tpu.memory_space<vmem>>, vector<128x128xbf16>
      %c0_24 = arith.constant 0 : index
      %c0_25 = arith.constant 0 : index
      %39 = vector.load %arg9[%c0_24, %c0_25] : memref<128x384xbf16, #tpu.memory_space<vmem>>, vector<128x128xbf16>
      tpu.vector_store %arg9[%c0_24, %c0_25], %38 {strides = array<i32>} : memref<128x384xbf16, #tpu.memory_space<vmem>>, vector<128x128xbf16>,
      %c32_i32_26 = arith.constant 32 : i32
      %40 = arith.addi %34, %c32_i32_26 : i32
      %41 = tpu.assume_multiple %40, 32 : i32
      %42 = arith.index_cast %41 : i32 to index
      %c0_27 = arith.constant 0 : index
      %43 = vector.load %arg7[%42, %c0_27] : memref<576x128xbf16, #tpu.memory_space<vmem>>, vector<128x128xbf16>
      %c0_28 = arith.constant 0 : index
      %c128 = arith.constant 128 : index
      %44 = vector.load %arg9[%c0_28, %c128] : memref<128x384xbf16, #tpu.memory_space<vmem>>, vector<128x128xbf16>
      tpu.vector_store %arg9[%c0_28, %c128], %43 {strides = array<i32>} : memref<128x384xbf16, #tpu.memory_space<vmem>>, vector<128x128xbf16>,
      %c64_i32 = arith.constant 64 : i32
      %45 = arith.addi %34, %c64_i32 : i32
      %46 = tpu.assume_multiple %45, 32 : i32
      %47 = arith.index_cast %46 : i32 to index
      %c0_29 = arith.constant 0 : index
      %48 = vector.load %arg7[%47, %c0_29] : memref<576x128xbf16, #tpu.memory_space<vmem>>, vector<128x128xbf16>
      %c0_30 = arith.constant 0 : index
      %c256 = arith.constant 256 : index
      %49 = vector.load %arg9[%c0_30, %c256] : memref<128x384xbf16, #tpu.memory_space<vmem>>, vector<128x128xbf16>
      tpu.vector_store %arg9[%c0_30, %c256], %48 {strides = array<i32>} : memref<128x384xbf16, #tpu.memory_space<vmem>>, vector<128x128xbf16>,
      %cst_31 = arith.constant 0.000000e+00 : f32
      %50 = vector.broadcast %cst_31 : f32 to vector<128x128xf32>
      %c0_32 = arith.constant 0 : index
      %c0_33 = arith.constant 0 : index
      %51 = vector.load %arg9[%c0_32, %c0_33] : memref<128x384xbf16, #tpu.memory_space<vmem>>, vector<128x384xbf16>
      %c0_34 = arith.constant 0 : index
      %c0_35 = arith.constant 0 : index
      %52 = vector.load %arg2[%c0_34, %c0_35] : memref<1152x128xbf16, #tpu.memory_space<vmem>>, vector<384x128xbf16>
      %cst_36 = arith.constant dense<0.000000e+00> : vector<128x128xf32>
      %53 = tpu.matmul %51, %52, %cst_36 {dimension_numbers = #tpu.dot_dimension_numbers<[1], [0], [0], [1], [0, 0, 1, 1], [], []>} : vector<128x384xbf16>, vector<384x128xbf16>, vector<128x128xf32> -> vector<128x128xf32>
      %c1_i32_37 = arith.constant 1 : i32
      %54 = tpu.dynamic_rotate %53 by %c1_i32_37 dim 0 : vector<128x128xf32>, i32 -> vector<128x128xf32>
      %55 = arith.addf %50, %54 : vector<128x128xf32>
      %c0_38 = arith.constant 0 : index
      %c0_39 = arith.constant 0 : index
      %56 = vector.load %arg9[%c0_38, %c0_39] : memref<128x384xbf16, #tpu.memory_space<vmem>>, vector<128x384xbf16>
      %c384 = arith.constant 384 : index
      %c0_40 = arith.constant 0 : index
      %57 = vector.load %arg2[%c384, %c0_40] : memref<1152x128xbf16, #tpu.memory_space<vmem>>, vector<384x128xbf16>
      %cst_41 = arith.constant dense<0.000000e+00> : vector<128x128xf32>
      %58 = tpu.matmul %56, %57, %cst_41 {dimension_numbers = #tpu.dot_dimension_numbers<[1], [0], [0], [1], [0, 0, 1, 1], [], []>} : vector<128x384xbf16>, vector<384x128xbf16>, vector<128x128xf32> -> vector<128x128xf32>
      %59 = arith.addf %55, %58 : vector<128x128xf32>
      %c0_42 = arith.constant 0 : index
      %c0_43 = arith.constant 0 : index
      %60 = vector.load %arg9[%c0_42, %c0_43] : memref<128x384xbf16, #tpu.memory_space<vmem>>, vector<128x384xbf16>
      %c768 = arith.constant 768 : index
      %c0_44 = arith.constant 0 : index
      %61 = vector.load %arg2[%c768, %c0_44] : memref<1152x128xbf16, #tpu.memory_space<vmem>>, vector<384x128xbf16>
      %cst_45 = arith.constant dense<0.000000e+00> : vector<128x128xf32>
      %62 = tpu.matmul %60, %61, %cst_45 {dimension_numbers = #tpu.dot_dimension_numbers<[1], [0], [0], [1], [0, 0, 1, 1], [], []>} : vector<128x384xbf16>, vector<384x128xbf16>, vector<128x128xf32> -> vector<128x128xf32>
      %c127_i32 = arith.constant 127 : i32
      %63 = tpu.dynamic_rotate %62 by %c127_i32 dim 0 : vector<128x128xf32>, i32 -> vector<128x128xf32>
      %64 = arith.addf %59, %63 : vector<128x128xf32>
      %c0_46 = arith.constant 0 : index
      %c0_47 = arith.constant 0 : index
      %65 = vector.load %arg3[%c0_46, %c0_47] : memref<1x128xf32, #tpu.memory_space<vmem>>, vector<1x128xf32>
      %66 = vector.broadcast %65 : vector<1x128xf32> to vector<128x128xf32>
      %67 = arith.addf %64, %66 : vector<128x128xf32>
      %cst_48 = arith.constant 0.000000e+00 : f32
      %68 = vector.broadcast %cst_48 : f32 to vector<128x128xf32>
      %69 = arith.maximumf %67, %68 : vector<128x128xf32>
      %cst_49 = arith.constant 0.000000e+00 : f32
      %70 = vector.shape_cast %21 : vector<128x1xi1> to vector<128x1xi1>
      %71 = vector.broadcast %70 : vector<128x1xi1> to vector<128x128xi1>
      %72 = vector.broadcast %cst_49 : f32 to vector<128x128xf32>
      %73 = arith.select %71, %69, %72 : vector<128x128xi1>, vector<128x128xf32>
      %c32_i32_50 = arith.constant 32 : i32
      %74 = arith.addi %c32_i32_50, %34 : i32
      %75 = tpu.assume_multiple %74, 32 : i32
      %76 = arith.truncf %73 : vector<128x128xf32> to vector<128x128xbf16>
      %77 = arith.index_cast %75 : i32 to index
      %c0_51 = arith.constant 0 : index
      %78 = vector.load %arg8[%77, %c0_51] : memref<576x128xbf16, #tpu.memory_space<vmem>>, vector<128x128xbf16>
      tpu.vector_store %arg8[%77, %c0_51], %76 {strides = array<i32>} : memref<576x128xbf16, #tpu.memory_space<vmem>>, vector<128x128xbf16>,
    }
    %c4_i32_17 = arith.constant 4 : i32
    %c0_i32_18 = arith.constant 0 : i32
    %c4_i32_19 = arith.constant 4 : i32
    %32 = arith.addi %c0_i32_18, %c4_i32_19 : i32
    %c1_i32_20 = arith.constant 1 : i32
    scf.for %arg10 = %c0_i32_18 to %32 step %c1_i32_20  : i32 {
      %c128_i32 = arith.constant 128 : i32
      %33 = arith.muli %arg10, %c128_i32 : i32
      %34 = tpu.assume_multiple %33, 128 : i32
      %c0_i32_22 = arith.constant 0 : i32
      %35 = arith.addi %34, %c0_i32_22 : i32
      %36 = tpu.assume_multiple %35, 32 : i32
      %37 = arith.index_cast %36 : i32 to index
      %c0_23 = arith.constant 0 : index
      %38 = vector.load %arg8[%37, %c0_23] : memref<576x128xbf16, #tpu.memory_space<vmem>>, vector<128x128xbf16>
      %c0_24 = arith.constant 0 : index
      %c0_25 = arith.constant 0 : index
      %39 = vector.load %arg9[%c0_24, %c0_25] : memref<128x384xbf16, #tpu.memory_space<vmem>>, vector<128x128xbf16>
      tpu.vector_store %arg9[%c0_24, %c0_25], %38 {strides = array<i32>} : memref<128x384xbf16, #tpu.memory_space<vmem>>, vector<128x128xbf16>,
      %c32_i32_26 = arith.constant 32 : i32
      %40 = arith.addi %34, %c32_i32_26 : i32
      %41 = tpu.assume_multiple %40, 32 : i32
      %42 = arith.index_cast %41 : i32 to index
      %c0_27 = arith.constant 0 : index
      %43 = vector.load %arg8[%42, %c0_27] : memref<576x128xbf16, #tpu.memory_space<vmem>>, vector<128x128xbf16>
      %c0_28 = arith.constant 0 : index
      %c128 = arith.constant 128 : index
      %44 = vector.load %arg9[%c0_28, %c128] : memref<128x384xbf16, #tpu.memory_space<vmem>>, vector<128x128xbf16>
      tpu.vector_store %arg9[%c0_28, %c128], %43 {strides = array<i32>} : memref<128x384xbf16, #tpu.memory_space<vmem>>, vector<128x128xbf16>,
      %c64_i32 = arith.constant 64 : i32
      %45 = arith.addi %34, %c64_i32 : i32
      %46 = tpu.assume_multiple %45, 32 : i32
      %47 = arith.index_cast %46 : i32 to index
      %c0_29 = arith.constant 0 : index
      %48 = vector.load %arg8[%47, %c0_29] : memref<576x128xbf16, #tpu.memory_space<vmem>>, vector<128x128xbf16>
      %c0_30 = arith.constant 0 : index
      %c256 = arith.constant 256 : index
      %49 = vector.load %arg9[%c0_30, %c256] : memref<128x384xbf16, #tpu.memory_space<vmem>>, vector<128x128xbf16>
      tpu.vector_store %arg9[%c0_30, %c256], %48 {strides = array<i32>} : memref<128x384xbf16, #tpu.memory_space<vmem>>, vector<128x128xbf16>,
      %cst_31 = arith.constant 0.000000e+00 : f32
      %50 = vector.broadcast %cst_31 : f32 to vector<128x128xf32>
      %c0_32 = arith.constant 0 : index
      %c0_33 = arith.constant 0 : index
      %51 = vector.load %arg9[%c0_32, %c0_33] : memref<128x384xbf16, #tpu.memory_space<vmem>>, vector<128x384xbf16>
      %c0_34 = arith.constant 0 : index
      %c0_35 = arith.constant 0 : index
      %52 = vector.load %arg4[%c0_34, %c0_35] : memref<1152x128xbf16, #tpu.memory_space<vmem>>, vector<384x128xbf16>
      %cst_36 = arith.constant dense<0.000000e+00> : vector<128x128xf32>
      %53 = tpu.matmul %51, %52, %cst_36 {dimension_numbers = #tpu.dot_dimension_numbers<[1], [0], [0], [1], [0, 0, 1, 1], [], []>} : vector<128x384xbf16>, vector<384x128xbf16>, vector<128x128xf32> -> vector<128x128xf32>
      %c1_i32_37 = arith.constant 1 : i32
      %54 = tpu.dynamic_rotate %53 by %c1_i32_37 dim 0 : vector<128x128xf32>, i32 -> vector<128x128xf32>
      %55 = arith.addf %50, %54 : vector<128x128xf32>
      %c0_38 = arith.constant 0 : index
      %c0_39 = arith.constant 0 : index
      %56 = vector.load %arg9[%c0_38, %c0_39] : memref<128x384xbf16, #tpu.memory_space<vmem>>, vector<128x384xbf16>
      %c384 = arith.constant 384 : index
      %c0_40 = arith.constant 0 : index
      %57 = vector.load %arg4[%c384, %c0_40] : memref<1152x128xbf16, #tpu.memory_space<vmem>>, vector<384x128xbf16>
      %cst_41 = arith.constant dense<0.000000e+00> : vector<128x128xf32>
      %58 = tpu.matmul %56, %57, %cst_41 {dimension_numbers = #tpu.dot_dimension_numbers<[1], [0], [0], [1], [0, 0, 1, 1], [], []>} : vector<128x384xbf16>, vector<384x128xbf16>, vector<128x128xf32> -> vector<128x128xf32>
      %59 = arith.addf %55, %58 : vector<128x128xf32>
      %c0_42 = arith.constant 0 : index
      %c0_43 = arith.constant 0 : index
      %60 = vector.load %arg9[%c0_42, %c0_43] : memref<128x384xbf16, #tpu.memory_space<vmem>>, vector<128x384xbf16>
      %c768 = arith.constant 768 : index
      %c0_44 = arith.constant 0 : index
      %61 = vector.load %arg4[%c768, %c0_44] : memref<1152x128xbf16, #tpu.memory_space<vmem>>, vector<384x128xbf16>
      %cst_45 = arith.constant dense<0.000000e+00> : vector<128x128xf32>
      %62 = tpu.matmul %60, %61, %cst_45 {dimension_numbers = #tpu.dot_dimension_numbers<[1], [0], [0], [1], [0, 0, 1, 1], [], []>} : vector<128x384xbf16>, vector<384x128xbf16>, vector<128x128xf32> -> vector<128x128xf32>
      %c127_i32 = arith.constant 127 : i32
      %63 = tpu.dynamic_rotate %62 by %c127_i32 dim 0 : vector<128x128xf32>, i32 -> vector<128x128xf32>
      %64 = arith.addf %59, %63 : vector<128x128xf32>
      %c0_46 = arith.constant 0 : index
      %c0_47 = arith.constant 0 : index
      %65 = vector.load %arg5[%c0_46, %c0_47] : memref<1x128xf32, #tpu.memory_space<vmem>>, vector<1x128xf32>
      %66 = vector.broadcast %65 : vector<1x128xf32> to vector<128x128xf32>
      %67 = arith.addf %64, %66 : vector<128x128xf32>
      %c32_i32_48 = arith.constant 32 : i32
      %68 = arith.addi %c32_i32_48, %34 : i32
      %69 = tpu.assume_multiple %68, 32 : i32
      %70 = arith.index_cast %69 : i32 to index
      %c0_49 = arith.constant 0 : index
      %71 = vector.load %arg7[%70, %c0_49] : memref<576x128xbf16, #tpu.memory_space<vmem>>, vector<128x128xbf16>
      %72 = arith.extf %71 : vector<128x128xbf16> to vector<128x128xf32>
      %73 = arith.addf %67, %72 : vector<128x128xf32>
      %cst_50 = arith.constant 0.000000e+00 : f32
      %74 = vector.broadcast %cst_50 : f32 to vector<128x128xf32>
      %75 = arith.maximumf %73, %74 : vector<128x128xf32>
      %76 = vector.shape_cast %75 : vector<128x128xf32> to vector<4x32x128xf32>
      %77 = vector.extract_strided_slice %76 {offsets = [0, 1, 0], sizes = [4, 16, 128], strides = [1, 1, 1]} : vector<4x32x128xf32> to vector<4x16x128xf32>
      %78 = arith.truncf %77 : vector<4x16x128xf32> to vector<4x16x128xbf16>
      %c4_i32_51 = arith.constant 4 : i32
      %79 = arith.muli %arg10, %c4_i32_51 : i32
      %c0_52 = arith.constant 0 : index
      %80 = arith.index_cast %79 : i32 to index
      %c0_53 = arith.constant 0 : index
      %c0_54 = arith.constant 0 : index
      %81 = vector.load %arg6[%c0_52, %80, %c0_53, %c0_54] : memref<1x16x16x128xbf16, #tpu.memory_space<vmem>>, vector<1x4x16x128xbf16>
      %82 = vector.shape_cast %81 : vector<1x4x16x128xbf16> to vector<4x16x128xbf16>
      %83 = vector.shape_cast %78 : vector<4x16x128xbf16> to vector<1x4x16x128xbf16>
      tpu.vector_store %arg6[%c0_52, %80, %c0_53, %c0_54], %83 {strides = array<i32>} : memref<1x16x16x128xbf16, #tpu.memory_space<vmem>>, vector<1x4x16x128xbf16>,
    }
    %c4_i32_21 = arith.constant 4 : i32
    return
  }
  func.func @transform_0(%arg0: i32) -> (i32, i32, i32, i32) {
    %c0_i32 = arith.constant 0 : i32
    %c0_i32_0 = arith.constant 0 : i32
    %c0_i32_1 = arith.constant 0 : i32
    %c0_i32_2 = arith.constant 0 : i32
    return %arg0, %c0_i32, %c0_i32_0, %c0_i32_1 : i32, i32, i32, i32
  }
  func.func @transform_1(%arg0: i32) -> (i32, i32) {
    %c0_i32 = arith.constant 0 : i32
    %c0_i32_0 = arith.constant 0 : i32
    %c0_i32_1 = arith.constant 0 : i32
    return %c0_i32, %c0_i32_0 : i32, i32
  }
  func.func @transform_2(%arg0: i32) -> (i32, i32) {
    %c0_i32 = arith.constant 0 : i32
    %c0_i32_0 = arith.constant 0 : i32
    %c0_i32_1 = arith.constant 0 : i32
    return %c0_i32, %c0_i32_0 : i32, i32
  }
  func.func @transform_3(%arg0: i32) -> (i32, i32) {
    %c0_i32 = arith.constant 0 : i32
    %c0_i32_0 = arith.constant 0 : i32
    %c0_i32_1 = arith.constant 0 : i32
    return %c0_i32, %c0_i32_0 : i32, i32
  }
  func.func @transform_4(%arg0: i32) -> (i32, i32) {
    %c0_i32 = arith.constant 0 : i32
    %c0_i32_0 = arith.constant 0 : i32
    %c0_i32_1 = arith.constant 0 : i32
    return %c0_i32, %c0_i32_0 : i32, i32
  }
  func.func @transform_5(%arg0: i32) -> (i32, i32, i32, i32) {
    %c0_i32 = arith.constant 0 : i32
    %c0_i32_0 = arith.constant 0 : i32
    %c0_i32_1 = arith.constant 0 : i32
    %c0_i32_2 = arith.constant 0 : i32
    return %arg0, %c0_i32, %c0_i32_0, %c0_i32_1 : i32, i32, i32, i32
  }
}

</mosaic_0001>

<llo_original>
// kernel: tpu_custom_call.1
$region0: #{tpu_custom_call.1}
  #allocation0 [shape = 'u32[]', space=smem, size = 0x4, offset = 0x4, fixed_abs, tag = 'smem constant byte address 0x4 - core index']
  #allocation1 [shape = 'u32[144,128]{1,0:T(1,128)}', space=vmem, size = 0x12000, scoped, tag = 'internal scratch']
  #allocation2 [shape = 'bf16[576,128]{1,0:T(16,128)(2,1)}', space=vmem, size = 0x24000, scoped, tag = 'scratch operand']
  #allocation3 [shape = 'bf16[576,128]{1,0:T(16,128)(2,1)}', space=vmem, size = 0x24000, scoped, tag = 'scratch operand']
  #allocation4 [shape = 'bf16[128,384]{1,0:T(16,128)(2,1)}', space=vmem, size = 0x18000, scoped, tag = 'scratch operand']
  %s0 = inlined_call_operand.hbm [shape: bf16[2,16,32,128], index: 0, kind: input, shape index: {}]
  %s1 = inlined_call_operand.hbm [shape: bf16[1152,128], index: 1, kind: input, shape index: {}]
  %s2 = inlined_call_operand.vmem [shape: f32[1,128], index: 2, kind: input, shape index: {}]
  %s3 = inlined_call_operand.hbm [shape: bf16[1152,128], index: 3, kind: input, shape index: {}]
  %s4 = inlined_call_operand.vmem [shape: f32[1,128], index: 4, kind: input, shape index: {}]
  %s5 = inlined_call_operand.hbm [shape: bf16[2,16,16,128], index: 5, kind: output, shape index: {}]
  %s6 = sld [smem:[#allocation0]]
  $region79: #{tpu_custom_call.1} parent=0
    _
  %s8 = ssub.s32 1, %s6
  %s9 = scalar_select 0, %s8, %s6
  $region1: #{tpu_custom_call.1} parent=0
    #allocation5 [shape = 'u8[262144]{0}', space=vmem, size = 0x40000, scoped, tag = 'input window, operand 0']
    #allocation6 [shape = 's32[2]{0}', space=sflag, size = 0x8, scoped, tag = 'scoped memory for tpu_custom_call.1']
    #allocation7 [shape = 's32[2]{0}', space=sflag, size = 0x8, scoped, tag = 'scoped memory for tpu_custom_call.1']
    #allocation8 [shape = 'u8[294912]{0}', space=vmem, size = 0x48000, scoped, tag = 'input window, operand 1, single buffered']
    #allocation9 [shape = 's32[1]{0}', space=sflag, size = 0x4, scoped, tag = 'scoped memory for tpu_custom_call.1']
    #allocation10 [shape = 'u8[294912]{0}', space=vmem, size = 0x48000, scoped, tag = 'input window, operand 3, single buffered']
    #allocation11 [shape = 'u8[131072]{0}', space=vmem, size = 0x20000, scoped, tag = 'output window, operand 0']
    %10 = vsyncpa [#allocation6], 0
    %s11 = scalar_lea.sflag [#allocation6], 1
    %12 = vsyncpa %s11, 0
    %13 = vsyncpa [#allocation9], 0
    %14 = vsyncpa [#allocation7], 0
    %s15 = scalar_lea.sflag [#allocation7], 1
    %16 = vsyncpa %s15, 0
    loop: start=0, step=1, limit=4
    $region2: #{tpu_custom_call.1} parent=1 // loop_pre_header
      _
    $region3: #{tpu_custom_call.1} parent=1 // loop_header
      %s18 = sphi 0, %s22
      %p19 = scmp.ge.s32.totalorder %s18, 4
      %s28 = sphi 0, %s30
      %s31 = sphi 0, %s28
      %s32 = sphi 0, %s31
      %s48 = sphi 0, %s32
      %s52 = sphi 0, %s52
      %s54 = sphi 0, %s52
      %s55 = sphi 0, %s54
      %s69 = sphi 0, %s55
      %s73 = sphi 0, %s73
      %s75 = sphi 0, %s73
      %s76 = sphi 0, %s75
      %s90 = sphi 0, %s76
      %s94 = sphi 0, %s94
      %s96 = sphi 0, %s94
      %s97 = sphi 0, %s96
      %s111 = sphi 0, %s97
      %s115 = sphi 0, %s115
      %s117 = sphi 0, %s115
      %s118 = sphi 0, %s117
      %s132 = sphi 0, %s118
      %s138 = sphi 0, %s140
      %s141 = sphi 0, %s138
      %s142 = sphi 0, %s141
      %s158 = sphi 0, %s142
    $region4: #{tpu_custom_call.1} parent=1 // loop_header_branch
      %21 = sbr.rel (%p19) target = $region8
    $region5: #{tpu_custom_call.1} parent=1 // loop_body
      %s23 = ssub.s32 %s18, 1
      %s24 = ssub.s32 %s18, 2
      %s25 = sadd.s32 %s18, 1
      %s26 = ssub.s32 %s18, %s25
      %p27 = scmp.eq.s32.totalorder %s26, 0
      %s29 = sadd.s32 %s28, 1
      %s30 = scalar_select %p27, %s28, %s29
      %p33 = pneg %p27
      %p34 = scmp.eq.s32.totalorder %s18, 1
      %p35 = por %p33, %p34
      %p36 = scmp.ne.s32.totalorder %s28, %s31
      %p37 = scmp.eq.s32.totalorder %s18, 0
      %p38 = por %p36, %p37
      %p39 = scmp.ne.s32.totalorder %s28, %s31
      %p40 = scmp.eq.s32.totalorder %s23, 1
      %p41 = por %p39, %p40
      %p42 = scmp.ne.s32.totalorder %s31, %s32
      %p43 = scmp.eq.s32.totalorder %s23, 0
      %p44 = por %p42, %p43
      %p45 = scmp.ne.s32.totalorder %s31, %s32
      %p46 = scmp.eq.s32.totalorder %s24, 1
      %p47 = por %p45, %p46
      %p49 = scmp.ne.s32.totalorder %s32, %s48
      %p50 = scmp.eq.s32.totalorder %s24, 0
      %p51 = por %p49, %p50
      %s53 = sadd.s32 %s52, 1
      %p56 = scmp.eq.s32.totalorder %s18, 1
      %p57 = scmp.ne.s32.totalorder %s52, %s54
      %p58 = scmp.eq.s32.totalorder %s18, 0
      %p59 = por %p57, %p58
      %p60 = scmp.ne.s32.totalorder %s52, %s54
      %p61 = scmp.eq.s32.totalorder %s23, 1
      %p62 = por %p60, %p61
      %p63 = scmp.ne.s32.totalorder %s54, %s55
      %p64 = scmp.eq.s32.totalorder %s23, 0
      %p65 = por %p63, %p64
      %p66 = scmp.ne.s32.totalorder %s54, %s55
      %p67 = scmp.eq.s32.totalorder %s24, 1
      %p68 = por %p66, %p67
      %p70 = scmp.ne.s32.totalorder %s55, %s69
      %p71 = scmp.eq.s32.totalorder %s24, 0
      %p72 = por %p70, %p71
      %s74 = sadd.s32 %s73, 1
      %p77 = scmp.eq.s32.totalorder %s18, 1
      %p78 = scmp.ne.s32.totalorder %s73, %s75
      %p79 = scmp.eq.s32.totalorder %s18, 0
      %p80 = por %p78, %p79
      %p81 = scmp.ne.s32.totalorder %s73, %s75
      %p82 = scmp.eq.s32.totalorder %s23, 1
      %p83 = por %p81, %p82
      %p84 = scmp.ne.s32.totalorder %s75, %s76
      %p85 = scmp.eq.s32.totalorder %s23, 0
      %p86 = por %p84, %p85
      %p87 = scmp.ne.s32.totalorder %s75, %s76
      %p88 = scmp.eq.s32.totalorder %s24, 1
      %p89 = por %p87, %p88
      %p91 = scmp.ne.s32.totalorder %s76, %s90
      %p92 = scmp.eq.s32.totalorder %s24, 0
      %p93 = por %p91, %p92
      %s95 = sadd.s32 %s94, 1
      %p98 = scmp.eq.s32.totalorder %s18, 1
      %p99 = scmp.ne.s32.totalorder %s94, %s96
      %p100 = scmp.eq.s32.totalorder %s18, 0
      %p101 = por %p99, %p100
      %p102 = scmp.ne.s32.totalorder %s94, %s96
      %p103 = scmp.eq.s32.totalorder %s23, 1
      %p104 = por %p102, %p103
      %p105 = scmp.ne.s32.totalorder %s96, %s97
      %p106 = scmp.eq.s32.totalorder %s23, 0
      %p107 = por %p105, %p106
      %p108 = scmp.ne.s32.totalorder %s96, %s97
      %p109 = scmp.eq.s32.totalorder %s24, 1
      %p110 = por %p108, %p109
      %p112 = scmp.ne.s32.totalorder %s97, %s111
      %p113 = scmp.eq.s32.totalorder %s24, 0
      %p114 = por %p112, %p113
      %s116 = sadd.s32 %s115, 1
      %p119 = scmp.eq.s32.totalorder %s18, 1
      %p120 = scmp.ne.s32.totalorder %s115, %s117
      %p121 = scmp.eq.s32.totalorder %s18, 0
      %p122 = por %p120, %p121
      %p123 = scmp.ne.s32.totalorder %s115, %s117
      %p124 = scmp.eq.s32.totalorder %s23, 1
      %p125 = por %p123, %p124
      %p126 = scmp.ne.s32.totalorder %s117, %s118
      %p127 = scmp.eq.s32.totalorder %s23, 0
      %p128 = por %p126, %p127
      %p129 = scmp.ne.s32.totalorder %s117, %s118
      %p130 = scmp.eq.s32.totalorder %s24, 1
      %p131 = por %p129, %p130
      %p133 = scmp.ne.s32.totalorder %s118, %s132
      %p134 = scmp.eq.s32.totalorder %s24, 0
      %p135 = por %p133, %p134
      %s136 = ssub.s32 %s18, %s25
      %p137 = scmp.eq.s32.totalorder %s136, 0
      %s139 = sadd.s32 %s138, 1
      %s140 = scalar_select %p137, %s138, %s139
      %p143 = pneg %p137
      %p144 = scmp.eq.s32.totalorder %s18, 1
      %p145 = por %p143, %p144
      %p146 = scmp.ne.s32.totalorder %s138, %s141
      %p147 = scmp.eq.s32.totalorder %s18, 0
      %p148 = por %p146, %p147
      %p149 = scmp.ne.s32.totalorder %s138, %s141
      %p150 = scmp.eq.s32.totalorder %s23, 1
      %p151 = por %p149, %p150
      %p152 = scmp.ne.s32.totalorder %s141, %s142
      %p153 = scmp.eq.s32.totalorder %s23, 0
      %p154 = por %p152, %p153
      %p155 = scmp.ne.s32.totalorder %s141, %s142
      %p156 = scmp.eq.s32.totalorder %s24, 1
      %p157 = por %p155, %p156
      %p159 = scmp.ne.s32.totalorder %s142, %s158
      %p160 = scmp.eq.s32.totalorder %s24, 0
      %p161 = por %p159, %p160
      %p162 = scmp.le.s32.totalorder 1, %s18
      %p163 = scmp.lt.s32.totalorder %s18, 3
      %p164 = pnand %p162, %p163
      %p165 = pneg %p164
      // Predicated region
      $region9: #{tpu_custom_call.1} parent=5 // pred_check
        _
      $region10: #{tpu_custom_call.1} parent=5 // pred_check_branch
        %167 = sbr.rel (%p164) target = $region12
      $region11: #{tpu_custom_call.1} parent=5 // pred_region
        %s168 = ssub.s32 %s18, 1
        // Predicated region
        $region13: #{tpu_custom_call.1} parent=11 // pred_check
          %p169 = pneg %p65
        $region14: #{tpu_custom_call.1} parent=11 // pred_check_branch
          %171 = sbr.rel (%p169) target = $region16
        $region15: #{tpu_custom_call.1} parent=11 // pred_region
          %s173 = ssub.s32 9216, 9216
          %174 = vsyncadd [#allocation9], %s173
          %s175 = sshll.u32 [#allocation8], 4
          %s176 = int_to_ptr.vmem [resolvable:$true] %s175
          %181 = dma.hbm_to_vmem [thread:$0]  %s1, 9216, %s176, [#allocation9], 64, 64, 4
        $region16: #{tpu_custom_call.1} parent=11 // pred_fallthru
          _
        // Predicated region
        $region17: #{tpu_custom_call.1} parent=11 // pred_check
          %p182 = pneg %p86
        $region18: #{tpu_custom_call.1} parent=11 // pred_check_branch
          %184 = sbr.rel (%p182) target = $region20
        $region19: #{tpu_custom_call.1} parent=11 // pred_region
          _
        $region20: #{tpu_custom_call.1} parent=11 // pred_fallthru
          _
        // Predicated region
        $region21: #{tpu_custom_call.1} parent=11 // pred_check
          %p185 = pneg %p107
        $region22: #{tpu_custom_call.1} parent=11 // pred_check_branch
          %187 = sbr.rel (%p185) target = $region24
        $region23: #{tpu_custom_call.1} parent=11 // pred_region
          %s189 = ssub.s32 9216, 9216
          %190 = vsyncadd [#allocation9], %s189
          %s191 = sshll.u32 [#allocation10], 4
          %s192 = int_to_ptr.vmem [resolvable:$true] %s191
          %197 = dma.hbm_to_vmem [thread:$0]  %s3, 9216, %s192, [#allocation9], 64, 64, 4
        $region24: #{tpu_custom_call.1} parent=11 // pred_fallthru
          _
        // Predicated region
        $region25: #{tpu_custom_call.1} parent=11 // pred_check
          %p198 = pneg %p128
        $region26: #{tpu_custom_call.1} parent=11 // pred_check_branch
          %200 = sbr.rel (%p198) target = $region28
        $region27: #{tpu_custom_call.1} parent=11 // pred_region
          _
        $region28: #{tpu_custom_call.1} parent=11 // pred_fallthru
          _
      $region12: #{tpu_custom_call.1} parent=5 // pred_fallthru
        _
      %p201 = scmp.lt.s32.totalorder %s18, 2
      // Predicated region
      $region29: #{tpu_custom_call.1} parent=5 // pred_check
        %p202 = pneg %p201
      $region30: #{tpu_custom_call.1} parent=5 // pred_check_branch
        %204 = sbr.rel (%p202) target = $region32
      $region31: #{tpu_custom_call.1} parent=5 // pred_region
        // Predicated region
        $region33: #{tpu_custom_call.1} parent=31 // pred_check
          %p205 = pneg %p38
        $region34: #{tpu_custom_call.1} parent=31 // pred_check_branch
          %207 = sbr.rel (%p205) target = $region36
        $region35: #{tpu_custom_call.1} parent=31 // pred_region
          %s208 = sand.u32 %s28, 1
          %s209 = scalar_lea.sflag [#allocation6], %s208
          %s210 = sand.u32 %s28, 1
          %s211 = smul.addr %s210, 256
          %s212 = scalar_lea.vmem [#allocation5], %s211
          %s214 = ssub.s32 4096, 4096
          %215 = vsyncadd %s209, %s214
          %s216 = smul.addr %s18, 64
          %s217 = smul.addr %s216, 64
          %s218 = scalar_lea.hbm %s0, %s217
          %s219 = sshll.u32 %s212, 4
          %s220 = int_to_ptr.vmem [resolvable:$true] %s219
          %225 = dma.hbm_to_vmem [thread:$0]  %s218, 4096, %s220, %s209, 64, 64, 4
        $region36: #{tpu_custom_call.1} parent=31 // pred_fallthru
          _
      $region32: #{tpu_custom_call.1} parent=5 // pred_fallthru
        _
      %p226 = scmp.le.s32.totalorder 1, %s18
      %p227 = scmp.lt.s32.totalorder %s18, 3
      %p228 = pnand %p226, %p227
      %p229 = pneg %p228
      // Predicated region
      $region37: #{tpu_custom_call.1} parent=5 // pred_check
        _
      $region38: #{tpu_custom_call.1} parent=5 // pred_check_branch
        %231 = sbr.rel (%p228) target = $region40
      $region39: #{tpu_custom_call.1} parent=5 // pred_region
        %s232 = ssub.s32 %s18, 1
        %s233 = sand.u32 %s31, 1
        %s234 = scalar_lea.sflag [#allocation6], %s233
        %s235 = sand.u32 %s31, 1
        %s236 = smul.addr %s235, 256
        %s237 = scalar_lea.vmem [#allocation5], %s236
        // Predicated region
        $region41: #{tpu_custom_call.1} parent=39 // pred_check
          %p238 = pneg %p44
        $region42: #{tpu_custom_call.1} parent=39 // pred_check_branch
          %240 = sbr.rel (%p238) target = $region44
        $region43: #{tpu_custom_call.1} parent=39 // pred_region
          %241 = dma.done %s234, 4096
        $region44: #{tpu_custom_call.1} parent=39 // pred_fallthru
          _
        // Predicated region
        $region45: #{tpu_custom_call.1} parent=39 // pred_check
          %p242 = pneg %p65
        $region46: #{tpu_custom_call.1} parent=39 // pred_check_branch
          %244 = sbr.rel (%p242) target = $region48
        $region47: #{tpu_custom_call.1} parent=39 // pred_region
          %245 = dma.done [#allocation9], 9216
        $region48: #{tpu_custom_call.1} parent=39 // pred_fallthru
          _
        // Predicated region
        $region49: #{tpu_custom_call.1} parent=39 // pred_check
          %p246 = pneg %p107
        $region50: #{tpu_custom_call.1} parent=39 // pred_check_branch
          %248 = sbr.rel (%p246) target = $region52
        $region51: #{tpu_custom_call.1} parent=39 // pred_region
          %249 = dma.done [#allocation9], 9216
        $region52: #{tpu_custom_call.1} parent=39 // pred_fallthru
          _
        %s250 = sand.u32 %s31, 1
        %s251 = scalar_lea.sflag [#allocation6], %s250
        %s252 = sand.u32 %s31, 1
        %s253 = smul.addr %s252, 256
        %s254 = scalar_lea.vmem [#allocation5], %s253
        %p255 = pneg %p44
        %p256 = pneg %p41
        %p257 = pneg %p65
        %p258 = pneg %p62
        %p259 = pneg %p86
        %p260 = pneg %p83
        %p261 = pneg %p107
        %p262 = pneg %p104
        %p263 = pneg %p128
        %p264 = pneg %p125
        %p265 = pneg %p154
        %p266 = pneg %p151
        %s267 = sand.u32 %s141, 1
        %s268 = scalar_lea.sflag [#allocation7], %s267
        %s269 = sand.u32 %s141, 1
        %s270 = smul.addr %s269, 128
        %s271 = scalar_lea.vmem [#allocation11], %s270
        %v273 = vlaneseq
        %v274 = vshrl.u32 %v273, 7
        %v275 = vadd.s32 %v274, 8
        %v276 = vadd.s32 %v274, 16
        %v277 = vadd.s32 %v274, 24
        %v278 = vadd.s32 %v274, 32
        %v279 = vadd.s32 %v274, 40
        %v280 = vadd.s32 %v274, 48
        %v281 = vadd.s32 %v274, 56
        %v282 = vadd.s32 %v274, 64
        %v283 = vadd.s32 %v274, 72
        %v284 = vadd.s32 %v274, 80
        %v285 = vadd.s32 %v274, 88
        %v286 = vadd.s32 %v274, 96
        %v287 = vadd.s32 %v274, 104
        %v288 = vadd.s32 %v274, 112
        %v289 = vadd.s32 %v274, 120
        %vm290 = vcmp.lt.s32.totalorder %v274, 0
        %v291 = vsub.s32 0, %v274
        %v292 = vsel %vm290, %v291, %v274
        %v293 = vshrl.u32 %v292, 5
        %v294 = vand.u32 %v292, 31
        %v295 = vsub.s32 0, %v294
        %v296 = vsel %vm290, %v295, %v294
        %vm297 = vcmp.lt.s32.totalorder %v275, 0
        %v298 = vsub.s32 0, %v275
        %v299 = vsel %vm297, %v298, %v275
        %v300 = vshrl.u32 %v299, 5
        %v301 = vand.u32 %v299, 31
        %v302 = vsub.s32 0, %v301
        %v303 = vsel %vm297, %v302, %v301
        %vm304 = vcmp.lt.s32.totalorder %v276, 0
        %v305 = vsub.s32 0, %v276
        %v306 = vsel %vm304, %v305, %v276
        %v307 = vshrl.u32 %v306, 5
        %v308 = vand.u32 %v306, 31
        %v309 = vsub.s32 0, %v308
        %v310 = vsel %vm304, %v309, %v308
        %vm311 = vcmp.lt.s32.totalorder %v277, 0
        %v312 = vsub.s32 0, %v277
        %v313 = vsel %vm311, %v312, %v277
        %v314 = vshrl.u32 %v313, 5
        %v315 = vand.u32 %v313, 31
        %v316 = vsub.s32 0, %v315
        %v317 = vsel %vm311, %v316, %v315
        %vm318 = vcmp.lt.s32.totalorder %v278, 0
        %v319 = vsub.s32 0, %v278
        %v320 = vsel %vm318, %v319, %v278
        %v321 = vshrl.u32 %v320, 5
        %v322 = vand.u32 %v320, 31
        %v323 = vsub.s32 0, %v322
        %v324 = vsel %vm318, %v323, %v322
        %vm325 = vcmp.lt.s32.totalorder %v279, 0
        %v326 = vsub.s32 0, %v279
        %v327 = vsel %vm325, %v326, %v279
        %v328 = vshrl.u32 %v327, 5
        %v329 = vand.u32 %v327, 31
        %v330 = vsub.s32 0, %v329
        %v331 = vsel %vm325, %v330, %v329
        %vm332 = vcmp.lt.s32.totalorder %v280, 0
        %v333 = vsub.s32 0, %v280
        %v334 = vsel %vm332, %v333, %v280
        %v335 = vshrl.u32 %v334, 5
        %v336 = vand.u32 %v334, 31
        %v337 = vsub.s32 0, %v336
        %v338 = vsel %vm332, %v337, %v336
        %vm339 = vcmp.lt.s32.totalorder %v281, 0
        %v340 = vsub.s32 0, %v281
        %v341 = vsel %vm339, %v340, %v281
        %v342 = vshrl.u32 %v341, 5
        %v343 = vand.u32 %v341, 31
        %v344 = vsub.s32 0, %v343
        %v345 = vsel %vm339, %v344, %v343
        %vm346 = vcmp.lt.s32.totalorder %v282, 0
        %v347 = vsub.s32 0, %v282
        %v348 = vsel %vm346, %v347, %v282
        %v349 = vshrl.u32 %v348, 5
        %v350 = vand.u32 %v348, 31
        %v351 = vsub.s32 0, %v350
        %v352 = vsel %vm346, %v351, %v350
        %vm353 = vcmp.lt.s32.totalorder %v283, 0
        %v354 = vsub.s32 0, %v283
        %v355 = vsel %vm353, %v354, %v283
        %v356 = vshrl.u32 %v355, 5
        %v357 = vand.u32 %v355, 31
        %v358 = vsub.s32 0, %v357
        %v359 = vsel %vm353, %v358, %v357
        %vm360 = vcmp.lt.s32.totalorder %v284, 0
        %v361 = vsub.s32 0, %v284
        %v362 = vsel %vm360, %v361, %v284
        %v363 = vshrl.u32 %v362, 5
        %v364 = vand.u32 %v362, 31
        %v365 = vsub.s32 0, %v364
        %v366 = vsel %vm360, %v365, %v364
        %vm367 = vcmp.lt.s32.totalorder %v285, 0
        %v368 = vsub.s32 0, %v285
        %v369 = vsel %vm367, %v368, %v285
        %v370 = vshrl.u32 %v369, 5
        %v371 = vand.u32 %v369, 31
        %v372 = vsub.s32 0, %v371
        %v373 = vsel %vm367, %v372, %v371
        %vm374 = vcmp.lt.s32.totalorder %v286, 0
        %v375 = vsub.s32 0, %v286
        %v376 = vsel %vm374, %v375, %v286
        %v377 = vshrl.u32 %v376, 5
        %v378 = vand.u32 %v376, 31
        %v379 = vsub.s32 0, %v378
        %v380 = vsel %vm374, %v379, %v378
        %vm381 = vcmp.lt.s32.totalorder %v287, 0
        %v382 = vsub.s32 0, %v287
        %v383 = vsel %vm381, %v382, %v287
        %v384 = vshrl.u32 %v383, 5
        %v385 = vand.u32 %v383, 31
        %v386 = vsub.s32 0, %v385
        %v387 = vsel %vm381, %v386, %v385
        %vm388 = vcmp.lt.s32.totalorder %v288, 0
        %v389 = vsub.s32 0, %v288
        %v390 = vsel %vm388, %v389, %v288
        %v391 = vshrl.u32 %v390, 5
        %v392 = vand.u32 %v390, 31
        %v393 = vsub.s32 0, %v392
        %v394 = vsel %vm388, %v393, %v392
        %vm395 = vcmp.lt.s32.totalorder %v289, 0
        %v396 = vsub.s32 0, %v289
        %v397 = vsel %vm395, %v396, %v289
        %v398 = vshrl.u32 %v397, 5
        %v399 = vand.u32 %v397, 31
        %v400 = vsub.s32 0, %v399
        %v401 = vsel %vm395, %v400, %v399
        %vm402 = vcmp.ne.s32.totalorder %v296, 0
        %vm403 = vcmp.ne.s32.totalorder %v303, 0
        %vm404 = vcmp.ne.s32.totalorder %v310, 0
        %vm405 = vcmp.ne.s32.totalorder %v317, 0
        %vm406 = vcmp.ne.s32.totalorder %v324, 0
        %vm407 = vcmp.ne.s32.totalorder %v331, 0
        %vm408 = vcmp.ne.s32.totalorder %v338, 0
        %vm409 = vcmp.ne.s32.totalorder %v345, 0
        %vm410 = vcmp.ne.s32.totalorder %v352, 0
        %vm411 = vcmp.ne.s32.totalorder %v359, 0
        %vm412 = vcmp.ne.s32.totalorder %v366, 0
        %vm413 = vcmp.ne.s32.totalorder %v373, 0
        %vm414 = vcmp.ne.s32.totalorder %v380, 0
        %vm415 = vcmp.ne.s32.totalorder %v387, 0
        %vm416 = vcmp.ne.s32.totalorder %v394, 0
        %vm417 = vcmp.ne.s32.totalorder %v401, 0
        %vm418 = vcmp.lt.s32.totalorder %v296, 0
        %vm419 = vcmp.lt.s32.totalorder %v303, 0
        %vm420 = vcmp.lt.s32.totalorder %v310, 0
        %vm421 = vcmp.lt.s32.totalorder %v317, 0
        %vm422 = vcmp.lt.s32.totalorder %v324, 0
        %vm423 = vcmp.lt.s32.totalorder %v331, 0
        %vm424 = vcmp.lt.s32.totalorder %v338, 0
        %vm425 = vcmp.lt.s32.totalorder %v345, 0
        %vm426 = vcmp.lt.s32.totalorder %v352, 0
        %vm427 = vcmp.lt.s32.totalorder %v359, 0
        %vm428 = vcmp.lt.s32.totalorder %v366, 0
        %vm429 = vcmp.lt.s32.totalorder %v373, 0
        %vm430 = vcmp.lt.s32.totalorder %v380, 0
        %vm431 = vcmp.lt.s32.totalorder %v387, 0
        %vm432 = vcmp.lt.s32.totalorder %v394, 0
        %vm433 = vcmp.lt.s32.totalorder %v401, 0
        %vm434 = vmand %vm418, %vm402
        %vm435 = vmand %vm419, %vm403
        %vm436 = vmand %vm420, %vm404
        %vm437 = vmand %vm421, %vm405
        %vm438 = vmand %vm422, %vm406
        %vm439 = vmand %vm423, %vm407
        %vm440 = vmand %vm424, %vm408
        %vm441 = vmand %vm425, %vm409
        %vm442 = vmand %vm426, %vm410
        %vm443 = vmand %vm427, %vm411
        %vm444 = vmand %vm428, %vm412
        %vm445 = vmand %vm429, %vm413
        %vm446 = vmand %vm430, %vm414
        %vm447 = vmand %vm431, %vm415
        %vm448 = vmand %vm432, %vm416
        %vm449 = vmand %vm433, %vm417
        %v450 = vadd.s32 %v296, 32
        %v451 = vadd.s32 %v303, 32
        %v452 = vadd.s32 %v310, 32
        %v453 = vadd.s32 %v317, 32
        %v454 = vadd.s32 %v324, 32
        %v455 = vadd.s32 %v331, 32
        %v456 = vadd.s32 %v338, 32
        %v457 = vadd.s32 %v345, 32
        %v458 = vadd.s32 %v352, 32
        %v459 = vadd.s32 %v359, 32
        %v460 = vadd.s32 %v366, 32
        %v461 = vadd.s32 %v373, 32
        %v462 = vadd.s32 %v380, 32
        %v463 = vadd.s32 %v387, 32
        %v464 = vadd.s32 %v394, 32
        %v465 = vadd.s32 %v401, 32
        %v466 = vsel %vm434, %v450, %v296
        %v467 = vsel %vm435, %v451, %v303
        %v468 = vsel %vm436, %v452, %v310
        %v469 = vsel %vm437, %v453, %v317
        %v470 = vsel %vm438, %v454, %v324
        %v471 = vsel %vm439, %v455, %v331
        %v472 = vsel %vm440, %v456, %v338
        %v473 = vsel %vm441, %v457, %v345
        %v474 = vsel %vm442, %v458, %v352
        %v475 = vsel %vm443, %v459, %v359
        %v476 = vsel %vm444, %v460, %v366
        %v477 = vsel %vm445, %v461, %v373
        %v478 = vsel %vm446, %v462, %v380
        %v479 = vsel %vm447, %v463, %v387
        %v480 = vsel %vm448, %v464, %v394
        %v481 = vsel %vm449, %v465, %v401
        %vm482 = vcmp.ge.s32.totalorder %v466, 1
        %vm483 = vcmp.ge.s32.totalorder %v467, 1
        %vm484 = vcmp.ge.s32.totalorder %v468, 1
        %vm485 = vcmp.ge.s32.totalorder %v469, 1
        %vm486 = vcmp.ge.s32.totalorder %v470, 1
        %vm487 = vcmp.ge.s32.totalorder %v471, 1
        %vm488 = vcmp.ge.s32.totalorder %v472, 1
        %vm489 = vcmp.ge.s32.totalorder %v473, 1
        %vm490 = vcmp.ge.s32.totalorder %v474, 1
        %vm491 = vcmp.ge.s32.totalorder %v475, 1
        %vm492 = vcmp.ge.s32.totalorder %v476, 1
        %vm493 = vcmp.ge.s32.totalorder %v477, 1
        %vm494 = vcmp.ge.s32.totalorder %v478, 1
        %vm495 = vcmp.ge.s32.totalorder %v479, 1
        %vm496 = vcmp.ge.s32.totalorder %v480, 1
        %vm497 = vcmp.ge.s32.totalorder %v481, 1
        %vm498 = vcmp.le.s32.totalorder %v466, 16
        %vm499 = vcmp.le.s32.totalorder %v467, 16
        %vm500 = vcmp.le.s32.totalorder %v468, 16
        %vm501 = vcmp.le.s32.totalorder %v469, 16
        %vm502 = vcmp.le.s32.totalorder %v470, 16
        %vm503 = vcmp.le.s32.totalorder %v471, 16
        %vm504 = vcmp.le.s32.totalorder %v472, 16
        %vm505 = vcmp.le.s32.totalorder %v473, 16
        %vm506 = vcmp.le.s32.totalorder %v474, 16
        %vm507 = vcmp.le.s32.totalorder %v475, 16
        %vm508 = vcmp.le.s32.totalorder %v476, 16
        %vm509 = vcmp.le.s32.totalorder %v477, 16
        %vm510 = vcmp.le.s32.totalorder %v478, 16
        %vm511 = vcmp.le.s32.totalorder %v479, 16
        %vm512 = vcmp.le.s32.totalorder %v480, 16
        %vm513 = vcmp.le.s32.totalorder %v481, 16
        %vm514 = vmand %vm482, %vm498
        %vm515 = vmand %vm483, %vm499
        %vm516 = vmand %vm484, %vm500
        %vm517 = vmand %vm485, %vm501
        %vm518 = vmand %vm486, %vm502
        %vm519 = vmand %vm487, %vm503
        %vm520 = vmand %vm488, %vm504
        %vm521 = vmand %vm489, %vm505
        %vm522 = vmand %vm490, %vm506
        %vm523 = vmand %vm491, %vm507
        %vm524 = vmand %vm492, %vm508
        %vm525 = vmand %vm493, %vm509
        %vm526 = vmand %vm494, %vm510
        %vm527 = vmand %vm495, %vm511
        %vm528 = vmand %vm496, %vm512
        %vm529 = vmand %vm497, %vm513
        %530 = vst [vmem:[#allocation2] sm:$0xff] 0
        %531 = vst [vmem:[#allocation2 + $0x8] sm:$0xff] 0
        %532 = vst [vmem:[#allocation2 + $0x110] sm:$0xff] 0
        %533 = vst [vmem:[#allocation2 + $0x118] sm:$0xff] 0
        %534 = vst [vmem:[#allocation3] sm:$0xff] 0
        %535 = vst [vmem:[#allocation3 + $0x8] sm:$0xff] 0
        %536 = vst [vmem:[#allocation3 + $0x110] sm:$0xff] 0
        %537 = vst [vmem:[#allocation3 + $0x118] sm:$0xff] 0
        %v538 = vld [vmem:[%s237] sm:$0xf]
        %v539 = vld [vmem:[%s237 + $0x4] sm:$0xf]
        %v540 = vld [vmem:[%s237 + $0x8] sm:$0xf]
        %v541 = vld [vmem:[%s237 + $0xc] sm:$0xf]
        %v542 = vld [vmem:[%s237 + $0x10] sm:$0xf]
        %v543 = vld [vmem:[%s237 + $0x14] sm:$0xf]
        %v544 = vld [vmem:[%s237 + $0x18] sm:$0xf]
        %v545 = vld [vmem:[%s237 + $0x1c] sm:$0xf]
        %v546 = vld [vmem:[%s237 + $0x20] sm:$0xf]
        %v547 = vld [vmem:[%s237 + $0x24] sm:$0xf]
        %v548 = vld [vmem:[%s237 + $0x28] sm:$0xf]
        %v549 = vld [vmem:[%s237 + $0x2c] sm:$0xf]
        %v550 = vld [vmem:[%s237 + $0x30] sm:$0xf]
        %v551 = vld [vmem:[%s237 + $0x34] sm:$0xf]
        %v552 = vld [vmem:[%s237 + $0x38] sm:$0xf]
        %v553 = vld [vmem:[%s237 + $0x3c] sm:$0xf]
        %v554 = vld [vmem:[%s237 + $0x40] sm:$0xf]
        %v555 = vld [vmem:[%s237 + $0x44] sm:$0xf]
        %v556 = vld [vmem:[%s237 + $0x48] sm:$0xf]
        %v557 = vld [vmem:[%s237 + $0x4c] sm:$0xf]
        %v558 = vld [vmem:[%s237 + $0x50] sm:$0xf]
        %v559 = vld [vmem:[%s237 + $0x54] sm:$0xf]
        %v560 = vld [vmem:[%s237 + $0x58] sm:$0xf]
        %v561 = vld [vmem:[%s237 + $0x5c] sm:$0xf]
        %v562 = vld [vmem:[%s237 + $0x60] sm:$0xf]
        %v563 = vld [vmem:[%s237 + $0x64] sm:$0xf]
        %v564 = vld [vmem:[%s237 + $0x68] sm:$0xf]
        %v565 = vld [vmem:[%s237 + $0x6c] sm:$0xf]
        %v566 = vld [vmem:[%s237 + $0x70] sm:$0xf]
        %v567 = vld [vmem:[%s237 + $0x74] sm:$0xf]
        %v568 = vld [vmem:[%s237 + $0x78] sm:$0xf]
        %v569 = vld [vmem:[%s237 + $0x7c] sm:$0xf]
        %v570 = vld [vmem:[%s237 + $0x80] sm:$0xf]
        %v571 = vld [vmem:[%s237 + $0x84] sm:$0xf]
        %v572 = vld [vmem:[%s237 + $0x88] sm:$0xf]
        %v573 = vld [vmem:[%s237 + $0x8c] sm:$0xf]
        %v574 = vld [vmem:[%s237 + $0x90] sm:$0xf]
        %v575 = vld [vmem:[%s237 + $0x94] sm:$0xf]
        %v576 = vld [vmem:[%s237 + $0x98] sm:$0xf]
        %v577 = vld [vmem:[%s237 + $0x9c] sm:$0xf]
        %v578 = vld [vmem:[%s237 + $0xa0] sm:$0xf]
        %v579 = vld [vmem:[%s237 + $0xa4] sm:$0xf]
        %v580 = vld [vmem:[%s237 + $0xa8] sm:$0xf]
        %v581 = vld [vmem:[%s237 + $0xac] sm:$0xf]
        %v582 = vld [vmem:[%s237 + $0xb0] sm:$0xf]
        %v583 = vld [vmem:[%s237 + $0xb4] sm:$0xf]
        %v584 = vld [vmem:[%s237 + $0xb8] sm:$0xf]
        %v585 = vld [vmem:[%s237 + $0xbc] sm:$0xf]
        %v586 = vld [vmem:[%s237 + $0xc0] sm:$0xf]
        %v587 = vld [vmem:[%s237 + $0xc4] sm:$0xf]
        %v588 = vld [vmem:[%s237 + $0xc8] sm:$0xf]
        %v589 = vld [vmem:[%s237 + $0xcc] sm:$0xf]
        %v590 = vld [vmem:[%s237 + $0xd0] sm:$0xf]
        %v591 = vld [vmem:[%s237 + $0xd4] sm:$0xf]
        %v592 = vld [vmem:[%s237 + $0xd8] sm:$0xf]
        %v593 = vld [vmem:[%s237 + $0xdc] sm:$0xf]
        %v594 = vld [vmem:[%s237 + $0xe0] sm:$0xf]
        %v595 = vld [vmem:[%s237 + $0xe4] sm:$0xf]
        %v596 = vld [vmem:[%s237 + $0xe8] sm:$0xf]
        %v597 = vld [vmem:[%s237 + $0xec] sm:$0xf]
        %v598 = vld [vmem:[%s237 + $0xf0] sm:$0xf]
        %v599 = vld [vmem:[%s237 + $0xf4] sm:$0xf]
        %v600 = vld [vmem:[%s237 + $0xf8] sm:$0xf]
        %v601 = vld [vmem:[%s237 + $0xfc] sm:$0xf]
        %v666 = vunpack.c.l.b16 %v538
        %v667 = vunpack.c.l.b16 %v539
        %v668 = vunpack.c.l.b16 %v540
        %v669 = vunpack.c.l.b16 %v541
        %v670 = vunpack.c.l.b16 %v542
        %v671 = vunpack.c.l.b16 %v543
        %v672 = vunpack.c.l.b16 %v544
        %v673 = vunpack.c.l.b16 %v545
        %v674 = vunpack.c.l.b16 %v546
        %v675 = vunpack.c.l.b16 %v547
        %v676 = vunpack.c.l.b16 %v548
        %v677 = vunpack.c.l.b16 %v549
        %v678 = vunpack.c.l.b16 %v550
        %v679 = vunpack.c.l.b16 %v551
        %v680 = vunpack.c.l.b16 %v552
        %v681 = vunpack.c.l.b16 %v553
        %v682 = vunpack.c.l.b16 %v554
        %v683 = vunpack.c.l.b16 %v555
        %v684 = vunpack.c.l.b16 %v556
        %v685 = vunpack.c.l.b16 %v557
        %v686 = vunpack.c.l.b16 %v558
        %v687 = vunpack.c.l.b16 %v559
        %v688 = vunpack.c.l.b16 %v560
        %v689 = vunpack.c.l.b16 %v561
        %v690 = vunpack.c.l.b16 %v562
        %v691 = vunpack.c.l.b16 %v563
        %v692 = vunpack.c.l.b16 %v564
        %v693 = vunpack.c.l.b16 %v565
        %v694 = vunpack.c.l.b16 %v566
        %v695 = vunpack.c.l.b16 %v567
        %v696 = vunpack.c.l.b16 %v568
        %v697 = vunpack.c.l.b16 %v569
        %v698 = vunpack.c.l.b16 %v570
        %v699 = vunpack.c.l.b16 %v571
        %v700 = vunpack.c.l.b16 %v572
        %v701 = vunpack.c.l.b16 %v573
        %v702 = vunpack.c.l.b16 %v574
        %v703 = vunpack.c.l.b16 %v575
        %v704 = vunpack.c.l.b16 %v576
        %v705 = vunpack.c.l.b16 %v577
        %v706 = vunpack.c.l.b16 %v578
        %v707 = vunpack.c.l.b16 %v579
        %v708 = vunpack.c.l.b16 %v580
        %v709 = vunpack.c.l.b16 %v581
        %v710 = vunpack.c.l.b16 %v582
        %v711 = vunpack.c.l.b16 %v583
        %v712 = vunpack.c.l.b16 %v584
        %v713 = vunpack.c.l.b16 %v585
        %v714 = vunpack.c.l.b16 %v586
        %v715 = vunpack.c.l.b16 %v587
        %v716 = vunpack.c.l.b16 %v588
        %v717 = vunpack.c.l.b16 %v589
        %v718 = vunpack.c.l.b16 %v590
        %v719 = vunpack.c.l.b16 %v591
        %v720 = vunpack.c.l.b16 %v592
        %v721 = vunpack.c.l.b16 %v593
        %v722 = vunpack.c.l.b16 %v594
        %v723 = vunpack.c.l.b16 %v595
        %v724 = vunpack.c.l.b16 %v596
        %v725 = vunpack.c.l.b16 %v597
        %v726 = vunpack.c.l.b16 %v598
        %v727 = vunpack.c.l.b16 %v599
        %v728 = vunpack.c.l.b16 %v600
        %v729 = vunpack.c.l.b16 %v601
        %v730 = vpack.c.b16 %v667, %v666
        %v731 = vpack.c.b16 %v669, %v668
        %v732 = vpack.c.b16 %v671, %v670
        %v733 = vpack.c.b16 %v673, %v672
        %v734 = vpack.c.b16 %v675, %v674
        %v735 = vpack.c.b16 %v677, %v676
        %v736 = vpack.c.b16 %v679, %v678
        %v737 = vpack.c.b16 %v681, %v680
        %v738 = vpack.c.b16 %v683, %v682
        %v739 = vpack.c.b16 %v685, %v684
        %v740 = vpack.c.b16 %v687, %v686
        %v741 = vpack.c.b16 %v689, %v688
        %v742 = vpack.c.b16 %v691, %v690
        %v743 = vpack.c.b16 %v693, %v692
        %v744 = vpack.c.b16 %v695, %v694
        %v745 = vpack.c.b16 %v697, %v696
        %v746 = vpack.c.b16 %v699, %v698
        %v747 = vpack.c.b16 %v701, %v700
        %v748 = vpack.c.b16 %v703, %v702
        %v749 = vpack.c.b16 %v705, %v704
        %v750 = vpack.c.b16 %v707, %v706
        %v751 = vpack.c.b16 %v709, %v708
        %v752 = vpack.c.b16 %v711, %v710
        %v753 = vpack.c.b16 %v713, %v712
        %v754 = vpack.c.b16 %v715, %v714
        %v755 = vpack.c.b16 %v717, %v716
        %v756 = vpack.c.b16 %v719, %v718
        %v757 = vpack.c.b16 %v721, %v720
        %v758 = vpack.c.b16 %v723, %v722
        %v759 = vpack.c.b16 %v725, %v724
        %v760 = vpack.c.b16 %v727, %v726
        %v761 = vpack.c.b16 %v729, %v728
        %794 = vst [vmem:[#allocation2 + $0x10] sm:$0xff] %v730
        %795 = vst [vmem:[#allocation2 + $0x18] sm:$0xff] %v731
        %796 = vst [vmem:[#allocation2 + $0x20] sm:$0xff] %v732
        %797 = vst [vmem:[#allocation2 + $0x28] sm:$0xff] %v733
        %798 = vst [vmem:[#allocation2 + $0x30] sm:$0xff] %v734
        %799 = vst [vmem:[#allocation2 + $0x38] sm:$0xff] %v735
        %800 = vst [vmem:[#allocation2 + $0x40] sm:$0xff] %v736
        %801 = vst [vmem:[#allocation2 + $0x48] sm:$0xff] %v737
        %802 = vst [vmem:[#allocation2 + $0x50] sm:$0xff] %v738
        %803 = vst [vmem:[#allocation2 + $0x58] sm:$0xff] %v739
        %804 = vst [vmem:[#allocation2 + $0x60] sm:$0xff] %v740
        %805 = vst [vmem:[#allocation2 + $0x68] sm:$0xff] %v741
        %806 = vst [vmem:[#allocation2 + $0x70] sm:$0xff] %v742
        %807 = vst [vmem:[#allocation2 + $0x78] sm:$0xff] %v743
        %808 = vst [vmem:[#allocation2 + $0x80] sm:$0xff] %v744
        %809 = vst [vmem:[#allocation2 + $0x88] sm:$0xff] %v745
        %810 = vst [vmem:[#allocation2 + $0x90] sm:$0xff] %v746
        %811 = vst [vmem:[#allocation2 + $0x98] sm:$0xff] %v747
        %812 = vst [vmem:[#allocation2 + $0xa0] sm:$0xff] %v748
        %813 = vst [vmem:[#allocation2 + $0xa8] sm:$0xff] %v749
        %814 = vst [vmem:[#allocation2 + $0xb0] sm:$0xff] %v750
        %815 = vst [vmem:[#allocation2 + $0xb8] sm:$0xff] %v751
        %816 = vst [vmem:[#allocation2 + $0xc0] sm:$0xff] %v752
        %817 = vst [vmem:[#allocation2 + $0xc8] sm:$0xff] %v753
        %818 = vst [vmem:[#allocation2 + $0xd0] sm:$0xff] %v754
        %819 = vst [vmem:[#allocation2 + $0xd8] sm:$0xff] %v755
        %820 = vst [vmem:[#allocation2 + $0xe0] sm:$0xff] %v756
        %821 = vst [vmem:[#allocation2 + $0xe8] sm:$0xff] %v757
        %822 = vst [vmem:[#allocation2 + $0xf0] sm:$0xff] %v758
        %823 = vst [vmem:[#allocation2 + $0xf8] sm:$0xff] %v759
        %824 = vst [vmem:[#allocation2 + $0x100] sm:$0xff] %v760
        %825 = vst [vmem:[#allocation2 + $0x108] sm:$0xff] %v761
        loop: start=0, step=1, limit=4
        $region53: #{tpu_custom_call.1} parent=39 // loop_pre_header
          _
        $region54: #{tpu_custom_call.1} parent=39 // loop_header
          %s827 = sphi 0, %s831
          %p828 = scmp.ge.s32.totalorder %s827, 4
        $region55: #{tpu_custom_call.1} parent=39 // loop_header_branch
          %830 = sbr.rel (%p828) target = $region59
        $region56: #{tpu_custom_call.1} parent=39 // loop_body
          %s832 = smul.u32 %s827, 128
          %s833 = sshra.s32 %s832, 4
          %s834 = sand.u32 %s832, 15
          %s835 = smul.addr %s833, 8
          %s836 = scalar_lea.vmem [#allocation2], %s835
          %v837 = vld [vmem:[%s836] sm:$0xff]
          %v838 = vld [vmem:[%s836 + $0x8] sm:$0xff]
          %v839 = vld [vmem:[%s836 + $0x10] sm:$0xff]
          %v840 = vld [vmem:[%s836 + $0x18] sm:$0xff]
          %v841 = vld [vmem:[%s836 + $0x20] sm:$0xff]
          %v842 = vld [vmem:[%s836 + $0x28] sm:$0xff]
          %v843 = vld [vmem:[%s836 + $0x30] sm:$0xff]
          %v844 = vld [vmem:[%s836 + $0x38] sm:$0xff]
          %845 = vst [vmem:[#allocation4] sm:$0xff] %v837
          %846 = vst [vmem:[#allocation4 + $0x18] sm:$0xff] %v838
          %847 = vst [vmem:[#allocation4 + $0x30] sm:$0xff] %v839
          %848 = vst [vmem:[#allocation4 + $0x48] sm:$0xff] %v840
          %849 = vst [vmem:[#allocation4 + $0x60] sm:$0xff] %v841
          %850 = vst [vmem:[#allocation4 + $0x78] sm:$0xff] %v842
          %851 = vst [vmem:[#allocation4 + $0x90] sm:$0xff] %v843
          %852 = vst [vmem:[#allocation4 + $0xa8] sm:$0xff] %v844
          %s853 = sadd.s32 %s832, 32
          %s854 = sshra.s32 %s853, 4
          %s855 = sand.u32 %s853, 15
          %s856 = smul.addr %s854, 8
          %s857 = scalar_lea.vmem [#allocation2], %s856
          %v858 = vld [vmem:[%s857] sm:$0xff]
          %v859 = vld [vmem:[%s857 + $0x8] sm:$0xff]
          %v860 = vld [vmem:[%s857 + $0x10] sm:$0xff]
          %v861 = vld [vmem:[%s857 + $0x18] sm:$0xff]
          %v862 = vld [vmem:[%s857 + $0x20] sm:$0xff]
          %v863 = vld [vmem:[%s857 + $0x28] sm:$0xff]
          %v864 = vld [vmem:[%s857 + $0x30] sm:$0xff]
          %v865 = vld [vmem:[%s857 + $0x38] sm:$0xff]
          %866 = vst [vmem:[#allocation4 + $0x8] sm:$0xff] %v858
          %867 = vst [vmem:[#allocation4 + $0x20] sm:$0xff] %v859
          %868 = vst [vmem:[#allocation4 + $0x38] sm:$0xff] %v860
          %869 = vst [vmem:[#allocation4 + $0x50] sm:$0xff] %v861
          %870 = vst [vmem:[#allocation4 + $0x68] sm:$0xff] %v862
          %871 = vst [vmem:[#allocation4 + $0x80] sm:$0xff] %v863
          %872 = vst [vmem:[#allocation4 + $0x98] sm:$0xff] %v864
          %873 = vst [vmem:[#allocation4 + $0xb0] sm:$0xff] %v865
          %s874 = sadd.s32 %s832, 64
          %s875 = sshra.s32 %s874, 4
          %s876 = sand.u32 %s874, 15
          %s877 = smul.addr %s875, 8
          %s878 = scalar_lea.vmem [#allocation2], %s877
          %v879 = vld [vmem:[%s878] sm:$0xff]
          %v880 = vld [vmem:[%s878 + $0x8] sm:$0xff]
          %v881 = vld [vmem:[%s878 + $0x10] sm:$0xff]
          %v882 = vld [vmem:[%s878 + $0x18] sm:$0xff]
          %v883 = vld [vmem:[%s878 + $0x20] sm:$0xff]
          %v884 = vld [vmem:[%s878 + $0x28] sm:$0xff]
          %v885 = vld [vmem:[%s878 + $0x30] sm:$0xff]
          %v886 = vld [vmem:[%s878 + $0x38] sm:$0xff]
          %887 = vst [vmem:[#allocation4 + $0x10] sm:$0xff] %v879
          %888 = vst [vmem:[#allocation4 + $0x28] sm:$0xff] %v880
          %889 = vst [vmem:[#allocation4 + $0x40] sm:$0xff] %v881
          %890 = vst [vmem:[#allocation4 + $0x58] sm:$0xff] %v882
          %891 = vst [vmem:[#allocation4 + $0x70] sm:$0xff] %v883
          %892 = vst [vmem:[#allocation4 + $0x88] sm:$0xff] %v884
          %893 = vst [vmem:[#allocation4 + $0xa0] sm:$0xff] %v885
          %894 = vst [vmem:[#allocation4 + $0xb8] sm:$0xff] %v886
          %v895 = vld [vmem:[#allocation4] sm:$0xff]
          %v896 = vld [vmem:[#allocation4 + $0x8] sm:$0xff]
          %v897 = vld [vmem:[#allocation4 + $0x10] sm:$0xff]
          %v898 = vld [vmem:[#allocation4 + $0x18] sm:$0xff]
          %v899 = vld [vmem:[#allocation4 + $0x20] sm:$0xff]
          %v900 = vld [vmem:[#allocation4 + $0x28] sm:$0xff]
          %v901 = vld [vmem:[#allocation4 + $0x30] sm:$0xff]
          %v902 = vld [vmem:[#allocation4 + $0x38] sm:$0xff]
          %v903 = vld [vmem:[#allocation4 + $0x40] sm:$0xff]
          %v904 = vld [vmem:[#allocation4 + $0x48] sm:$0xff]
          %v905 = vld [vmem:[#allocation4 + $0x50] sm:$0xff]
          %v906 = vld [vmem:[#allocation4 + $0x58] sm:$0xff]
          %v907 = vld [vmem:[#allocation4 + $0x60] sm:$0xff]
          %v908 = vld [vmem:[#allocation4 + $0x68] sm:$0xff]
          %v909 = vld [vmem:[#allocation4 + $0x70] sm:$0xff]
          %v910 = vld [vmem:[#allocation4 + $0x78] sm:$0xff]
          %v911 = vld [vmem:[#allocation4 + $0x80] sm:$0xff]
          %v912 = vld [vmem:[#allocation4 + $0x88] sm:$0xff]
          %v913 = vld [vmem:[#allocation4 + $0x90] sm:$0xff]
          %v914 = vld [vmem:[#allocation4 + $0x98] sm:$0xff]
          %v915 = vld [vmem:[#allocation4 + $0xa0] sm:$0xff]
          %v916 = vld [vmem:[#allocation4 + $0xa8] sm:$0xff]
          %v917 = vld [vmem:[#allocation4 + $0xb0] sm:$0xff]
          %v918 = vld [vmem:[#allocation4 + $0xb8] sm:$0xff]
          %v919 = vld [vmem:[#allocation8] sm:$0xf]
          %v920 = vld [vmem:[#allocation8 + $0x4] sm:$0xf]
          %v921 = vld [vmem:[#allocation8 + $0x8] sm:$0xf]
          %v922 = vld [vmem:[#allocation8 + $0xc] sm:$0xf]
          %v923 = vld [vmem:[#allocation8 + $0x10] sm:$0xf]
          %v924 = vld [vmem:[#allocation8 + $0x14] sm:$0xf]
          %v925 = vld [vmem:[#allocation8 + $0x18] sm:$0xf]
          %v926 = vld [vmem:[#allocation8 + $0x1c] sm:$0xf]
          %v927 = vld [vmem:[#allocation8 + $0x20] sm:$0xf]
          %v928 = vld [vmem:[#allocation8 + $0x24] sm:$0xf]
          %v929 = vld [vmem:[#allocation8 + $0x28] sm:$0xf]
          %v930 = vld [vmem:[#allocation8 + $0x2c] sm:$0xf]
          %v931 = vld [vmem:[#allocation8 + $0x30] sm:$0xf]
          %v932 = vld [vmem:[#allocation8 + $0x34] sm:$0xf]
          %v933 = vld [vmem:[#allocation8 + $0x38] sm:$0xf]
          %v934 = vld [vmem:[#allocation8 + $0x3c] sm:$0xf]
          %v935 = vld [vmem:[#allocation8 + $0x40] sm:$0xf]
          %v936 = vld [vmem:[#allocation8 + $0x44] sm:$0xf]
          %v937 = vld [vmem:[#allocation8 + $0x48] sm:$0xf]
          %v938 = vld [vmem:[#allocation8 + $0x4c] sm:$0xf]
          %v939 = vld [vmem:[#allocation8 + $0x50] sm:$0xf]
          %v940 = vld [vmem:[#allocation8 + $0x54] sm:$0xf]
          %v941 = vld [vmem:[#allocation8 + $0x58] sm:$0xf]
          %v942 = vld [vmem:[#allocation8 + $0x5c] sm:$0xf]
          %v943 = vld [vmem:[#allocation8 + $0x60] sm:$0xf]
          %v944 = vld [vmem:[#allocation8 + $0x64] sm:$0xf]
          %v945 = vld [vmem:[#allocation8 + $0x68] sm:$0xf]
          %v946 = vld [vmem:[#allocation8 + $0x6c] sm:$0xf]
          %v947 = vld [vmem:[#allocation8 + $0x70] sm:$0xf]
          %v948 = vld [vmem:[#allocation8 + $0x74] sm:$0xf]
          %v949 = vld [vmem:[#allocation8 + $0x78] sm:$0xf]
          %v950 = vld [vmem:[#allocation8 + $0x7c] sm:$0xf]
          %v951 = vld [vmem:[#allocation8 + $0x80] sm:$0xf]
          %v952 = vld [vmem:[#allocation8 + $0x84] sm:$0xf]
          %v953 = vld [vmem:[#allocation8 + $0x88] sm:$0xf]
          %v954 = vld [vmem:[#allocation8 + $0x8c] sm:$0xf]
          %v955 = vld [vmem:[#allocation8 + $0x90] sm:$0xf]
          %v956 = vld [vmem:[#allocation8 + $0x94] sm:$0xf]
          %v957 = vld [vmem:[#allocation8 + $0x98] sm:$0xf]
          %v958 = vld [vmem:[#allocation8 + $0x9c] sm:$0xf]
          %v959 = vld [vmem:[#allocation8 + $0xa0] sm:$0xf]
          %v960 = vld [vmem:[#allocation8 + $0xa4] sm:$0xf]
          %v961 = vld [vmem:[#allocation8 + $0xa8] sm:$0xf]
          %v962 = vld [vmem:[#allocation8 + $0xac] sm:$0xf]
          %v963 = vld [vmem:[#allocation8 + $0xb0] sm:$0xf]
          %v964 = vld [vmem:[#allocation8 + $0xb4] sm:$0xf]
          %v965 = vld [vmem:[#allocation8 + $0xb8] sm:$0xf]
          %v966 = vld [vmem:[#allocation8 + $0xbc] sm:$0xf]
          %v1015 = vunpack.c.l.b16 %v919
          %v1016 = vunpack.c.l.b16 %v920
          %v1017 = vunpack.c.l.b16 %v921
          %v1018 = vunpack.c.l.b16 %v922
          %v1019 = vunpack.c.l.b16 %v923
          %v1020 = vunpack.c.l.b16 %v924
          %v1021 = vunpack.c.l.b16 %v925
          %v1022 = vunpack.c.l.b16 %v926
          %v1023 = vunpack.c.l.b16 %v927
          %v1024 = vunpack.c.l.b16 %v928
          %v1025 = vunpack.c.l.b16 %v929
          %v1026 = vunpack.c.l.b16 %v930
          %v1027 = vunpack.c.l.b16 %v931
          %v1028 = vunpack.c.l.b16 %v932
          %v1029 = vunpack.c.l.b16 %v933
          %v1030 = vunpack.c.l.b16 %v934
          %v1031 = vunpack.c.l.b16 %v935
          %v1032 = vunpack.c.l.b16 %v936
          %v1033 = vunpack.c.l.b16 %v937
          %v1034 = vunpack.c.l.b16 %v938
          %v1035 = vunpack.c.l.b16 %v939
          %v1036 = vunpack.c.l.b16 %v940
          %v1037 = vunpack.c.l.b16 %v941
          %v1038 = vunpack.c.l.b16 %v942
          %v1039 = vunpack.c.l.b16 %v943
          %v1040 = vunpack.c.l.b16 %v944
          %v1041 = vunpack.c.l.b16 %v945
          %v1042 = vunpack.c.l.b16 %v946
          %v1043 = vunpack.c.l.b16 %v947
          %v1044 = vunpack.c.l.b16 %v948
          %v1045 = vunpack.c.l.b16 %v949
          %v1046 = vunpack.c.l.b16 %v950
          %v1047 = vunpack.c.l.b16 %v951
          %v1048 = vunpack.c.l.b16 %v952
          %v1049 = vunpack.c.l.b16 %v953
          %v1050 = vunpack.c.l.b16 %v954
          %v1051 = vunpack.c.l.b16 %v955
          %v1052 = vunpack.c.l.b16 %v956
          %v1053 = vunpack.c.l.b16 %v957
          %v1054 = vunpack.c.l.b16 %v958
          %v1055 = vunpack.c.l.b16 %v959
          %v1056 = vunpack.c.l.b16 %v960
          %v1057 = vunpack.c.l.b16 %v961
          %v1058 = vunpack.c.l.b16 %v962
          %v1059 = vunpack.c.l.b16 %v963
          %v1060 = vunpack.c.l.b16 %v964
          %v1061 = vunpack.c.l.b16 %v965
          %v1062 = vunpack.c.l.b16 %v966
          %v1063 = vpack.c.b16 %v1016, %v1015
          %v1064 = vpack.c.b16 %v1018, %v1017
          %v1065 = vpack.c.b16 %v1020, %v1019
          %v1066 = vpack.c.b16 %v1022, %v1021
          %v1067 = vpack.c.b16 %v1024, %v1023
          %v1068 = vpack.c.b16 %v1026, %v1025
          %v1069 = vpack.c.b16 %v1028, %v1027
          %v1070 = vpack.c.b16 %v1030, %v1029
          %v1071 = vpack.c.b16 %v1032, %v1031
          %v1072 = vpack.c.b16 %v1034, %v1033
          %v1073 = vpack.c.b16 %v1036, %v1035
          %v1074 = vpack.c.b16 %v1038, %v1037
          %v1075 = vpack.c.b16 %v1040, %v1039
          %v1076 = vpack.c.b16 %v1042, %v1041
          %v1077 = vpack.c.b16 %v1044, %v1043
          %v1078 = vpack.c.b16 %v1046, %v1045
          %v1079 = vpack.c.b16 %v1048, %v1047
          %v1080 = vpack.c.b16 %v1050, %v1049
          %v1081 = vpack.c.b16 %v1052, %v1051
          %v1082 = vpack.c.b16 %v1054, %v1053
          %v1083 = vpack.c.b16 %v1056, %v1055
          %v1084 = vpack.c.b16 %v1058, %v1057
          %v1085 = vpack.c.b16 %v1060, %v1059
          %v1086 = vpack.c.b16 %v1062, %v1061
          %1111 = vmatprep.subr.bf16.mxu0 0
          %1112 = vmatpush1.bf16.msra.mxu0 %v1063
          %1113 = vmatprep.subr.bf16.mxu0 0
          %1114 = vmatpush1.bf16.msra.mxu0 %v1064
          %1115 = vmatprep.subr.bf16.mxu0 0
          %1116 = vmatpush1.bf16.msra.mxu0 %v1065
          %1117 = vmatprep.subr.bf16.mxu0 0
          %1118 = vmatpush1.bf16.msra.mxu0 %v1066
          %1119 = vmatprep.subr.bf16.mxu0 0
          %1120 = vmatpush1.bf16.msra.mxu0 %v1067
          %1121 = vmatprep.subr.bf16.mxu0 0
          %1122 = vmatpush1.bf16.msra.mxu0 %v1068
          %1123 = vmatprep.subr.bf16.mxu0 0
          %1124 = vmatpush1.bf16.msra.mxu0 %v1069
          %1125 = vmatprep.subr.bf16.mxu0 0
          %1126 = vmatpush1.bf16.msra.mxu0 %v1070
          %1127 = vmatprep.subr.bf16.mxu0 0
          %1128 = vmatpush1.bf16.msra.mxu0 %v1071
          %1129 = vmatprep.subr.bf16.mxu0 0
          %1130 = vmatpush1.bf16.msra.mxu0 %v1072
          %1131 = vmatprep.subr.bf16.mxu0 0
          %1132 = vmatpush1.bf16.msra.mxu0 %v1073
          %1133 = vmatprep.subr.bf16.mxu0 0
          %1134 = vmatpush1.bf16.msra.mxu0 %v1074
          %1135 = vmatprep.subr.bf16.mxu0 0
          %1136 = vmatpush1.bf16.msra.mxu0 %v1075
          %1137 = vmatprep.subr.bf16.mxu0 0
          %1138 = vmatpush1.bf16.msra.mxu0 %v1076
          %1139 = vmatprep.subr.bf16.mxu0 0
          %1140 = vmatpush1.bf16.msra.mxu0 %v1077
          %1141 = vmatprep.subr.bf16.mxu0 0
          %1142 = vmatpush1.bf16.msra.mxu0 %v1078
          %1143 = vmatprep.mubr.bf16.mxu0 %v896
          %1144 = vmatmul.mubr.bf16.gmra.mrb[0].mxu0 %v895
          %v1145 = vpop.f32.mrb[0].mxu0
          %v1146 = vadd.f32 0.0, %v1145
          %v1147 = vpop.f32.mrb[0].mxu0
          %v1148 = vpop.f32.mrb[0].mxu0
          %v1149 = vadd.f32 0.0, %v1148
          %v1150 = vpop.f32.mrb[0].mxu0
          %1151 = vmatprep.mubr.bf16.mxu0 %v899
          %1152 = vmatmul.mubr.bf16.gmra.mrb[0].mxu0 %v898
          %v1153 = vpop.f32.mrb[0].mxu0
          %v1154 = vadd.f32 0.0, %v1153
          %v1155 = vpop.f32.mrb[0].mxu0
          %v1156 = vpop.f32.mrb[0].mxu0
          %v1157 = vadd.f32 0.0, %v1156
          %v1158 = vpop.f32.mrb[0].mxu0
          %1159 = vmatprep.mubr.bf16.mxu0 %v902
          %1160 = vmatmul.mubr.bf16.gmra.mrb[0].mxu0 %v901
          %v1161 = vpop.f32.mrb[0].mxu0
          %v1162 = vadd.f32 0.0, %v1161
          %v1163 = vpop.f32.mrb[0].mxu0
          %v1164 = vpop.f32.mrb[0].mxu0
          %v1165 = vadd.f32 0.0, %v1164
          %v1166 = vpop.f32.mrb[0].mxu0
          %1167 = vmatprep.mubr.bf16.mxu0 %v905
          %1168 = vmatmul.mubr.bf16.gmra.mrb[0].mxu0 %v904
          %v1169 = vpop.f32.mrb[0].mxu0
          %v1170 = vadd.f32 0.0, %v1169
          %v1171 = vpop.f32.mrb[0].mxu0
          %v1172 = vpop.f32.mrb[0].mxu0
          %v1173 = vadd.f32 0.0, %v1172
          %v1174 = vpop.f32.mrb[0].mxu0
          %1175 = vmatprep.mubr.bf16.mxu0 %v908
          %1176 = vmatmul.mubr.bf16.gmra.mrb[0].mxu0 %v907
          %v1177 = vpop.f32.mrb[0].mxu0
          %v1178 = vadd.f32 0.0, %v1177
          %v1179 = vpop.f32.mrb[0].mxu0
          %v1180 = vpop.f32.mrb[0].mxu0
          %v1181 = vadd.f32 0.0, %v1180
          %v1182 = vpop.f32.mrb[0].mxu0
          %1183 = vmatprep.mubr.bf16.mxu0 %v911
          %1184 = vmatmul.mubr.bf16.gmra.mrb[0].mxu0 %v910
          %v1185 = vpop.f32.mrb[0].mxu0
          %v1186 = vadd.f32 0.0, %v1185
          %v1187 = vpop.f32.mrb[0].mxu0
          %v1188 = vpop.f32.mrb[0].mxu0
          %v1189 = vadd.f32 0.0, %v1188
          %v1190 = vpop.f32.mrb[0].mxu0
          %1191 = vmatprep.mubr.bf16.mxu0 %v914
          %1192 = vmatmul.mubr.bf16.gmra.mrb[0].mxu0 %v913
          %v1193 = vpop.f32.mrb[0].mxu0
          %v1194 = vadd.f32 0.0, %v1193
          %v1195 = vpop.f32.mrb[0].mxu0
          %v1196 = vpop.f32.mrb[0].mxu0
          %v1197 = vadd.f32 0.0, %v1196
          %v1198 = vpop.f32.mrb[0].mxu0
          %1199 = vmatprep.mubr.bf16.mxu0 %v917
          %1200 = vmatmul.mubr.bf16.gmra.mrb[0].mxu0 %v916
          %v1201 = vpop.f32.mrb[0].mxu0
          %v1202 = vadd.f32 0.0, %v1201
          %v1203 = vpop.f32.mrb[0].mxu0
          %v1204 = vpop.f32.mrb[0].mxu0
          %v1205 = vadd.f32 0.0, %v1204
          %v1206 = vpop.f32.mrb[0].mxu0
          %1207 = vdwg.mxu0
          %1208 = vmatprep.subr.bf16.mxu0 0
          %1209 = vmatpush1.bf16.msra.mxu0 %v1079
          %1210 = vmatprep.subr.bf16.mxu0 0
          %1211 = vmatpush1.bf16.msra.mxu0 %v1080
          %1212 = vmatprep.subr.bf16.mxu0 0
          %1213 = vmatpush1.bf16.msra.mxu0 %v1081
          %1214 = vmatprep.subr.bf16.mxu0 0
          %1215 = vmatpush1.bf16.msra.mxu0 %v1082
          %1216 = vmatprep.subr.bf16.mxu0 0
          %1217 = vmatpush1.bf16.msra.mxu0 %v1083
          %1218 = vmatprep.subr.bf16.mxu0 0
          %1219 = vmatpush1.bf16.msra.mxu0 %v1084
          %1220 = vmatprep.subr.bf16.mxu0 0
          %1221 = vmatpush1.bf16.msra.mxu0 %v1085
          %1222 = vmatprep.subr.bf16.mxu0 0
          %1223 = vmatpush1.bf16.msra.mxu0 %v1086
          %1224 = vmatprep.subr.bf16.mxu0 0
          %1225 = vmatpush1.bf16.msra.mxu0 0
          %1226 = vmatprep.subr.bf16.mxu0 0
          %1227 = vmatpush1.bf16.msra.mxu0 0
          %1228 = vmatprep.subr.bf16.mxu0 0
          %1229 = vmatpush1.bf16.msra.mxu0 0
          %1230 = vmatprep.subr.bf16.mxu0 0
          %1231 = vmatpush1.bf16.msra.mxu0 0
          %1232 = vmatprep.subr.bf16.mxu0 0
          %1233 = vmatpush1.bf16.msra.mxu0 0
          %1234 = vmatprep.subr.bf16.mxu0 0
          %1235 = vmatpush1.bf16.msra.mxu0 0
          %1236 = vmatprep.subr.bf16.mxu0 0
          %1237 = vmatpush1.bf16.msra.mxu0 0
          %1238 = vmatprep.subr.bf16.mxu0 0
          %1239 = vmatpush1.bf16.msra.mxu0 0
          %1240 = vmatprep.mubr.bf16.mxu0 0
          %1241 = vmatmul.mubr.bf16.gmra.mrb[0].mxu0 %v897
          %v1242 = vpop.f32.mrb[0].mxu0
          %v1243 = vadd.f32 %v1146, %v1242
          %v1244 = vpop.f32.mrb[0].mxu0
          %v1245 = vpop.f32.mrb[0].mxu0
          %v1246 = vadd.f32 %v1149, %v1245
          %v1247 = vpop.f32.mrb[0].mxu0
          %1248 = vmatprep.mubr.bf16.mxu0 0
          %1249 = vmatmul.mubr.bf16.gmra.mrb[0].mxu0 %v900
          %v1250 = vpop.f32.mrb[0].mxu0
          %v1251 = vadd.f32 %v1154, %v1250
          %v1252 = vpop.f32.mrb[0].mxu0
          %v1253 = vpop.f32.mrb[0].mxu0
          %v1254 = vadd.f32 %v1157, %v1253
          %v1255 = vpop.f32.mrb[0].mxu0
          %1256 = vmatprep.mubr.bf16.mxu0 0
          %1257 = vmatmul.mubr.bf16.gmra.mrb[0].mxu0 %v903
          %v1258 = vpop.f32.mrb[0].mxu0
          %v1259 = vadd.f32 %v1162, %v1258
          %v1260 = vpop.f32.mrb[0].mxu0
          %v1261 = vpop.f32.mrb[0].mxu0
          %v1262 = vadd.f32 %v1165, %v1261
          %v1263 = vpop.f32.mrb[0].mxu0
          %1264 = vmatprep.mubr.bf16.mxu0 0
          %1265 = vmatmul.mubr.bf16.gmra.mrb[0].mxu0 %v906
          %v1266 = vpop.f32.mrb[0].mxu0
          %v1267 = vadd.f32 %v1170, %v1266
          %v1268 = vpop.f32.mrb[0].mxu0
          %v1269 = vpop.f32.mrb[0].mxu0
          %v1270 = vadd.f32 %v1173, %v1269
          %v1271 = vpop.f32.mrb[0].mxu0
          %1272 = vmatprep.mubr.bf16.mxu0 0
          %1273 = vmatmul.mubr.bf16.gmra.mrb[0].mxu0 %v909
          %v1274 = vpop.f32.mrb[0].mxu0
          %v1275 = vadd.f32 %v1178, %v1274
          %v1276 = vpop.f32.mrb[0].mxu0
          %v1277 = vpop.f32.mrb[0].mxu0
          %v1278 = vadd.f32 %v1181, %v1277
          %v1279 = vpop.f32.mrb[0].mxu0
          %1280 = vmatprep.mubr.bf16.mxu0 0
          %1281 = vmatmul.mubr.bf16.gmra.mrb[0].mxu0 %v912
          %v1282 = vpop.f32.mrb[0].mxu0
          %v1283 = vadd.f32 %v1186, %v1282
          %v1284 = vpop.f32.mrb[0].mxu0
          %v1285 = vpop.f32.mrb[0].mxu0
          %v1286 = vadd.f32 %v1189, %v1285
          %v1287 = vpop.f32.mrb[0].mxu0
          %1288 = vmatprep.mubr.bf16.mxu0 0
          %1289 = vmatmul.mubr.bf16.gmra.mrb[0].mxu0 %v915
          %v1290 = vpop.f32.mrb[0].mxu0
          %v1291 = vadd.f32 %v1194, %v1290
          %v1292 = vpop.f32.mrb[0].mxu0
          %v1293 = vpop.f32.mrb[0].mxu0
          %v1294 = vadd.f32 %v1197, %v1293
          %v1295 = vpop.f32.mrb[0].mxu0
          %1296 = vmatprep.mubr.bf16.mxu0 0
          %1297 = vmatmul.mubr.bf16.gmra.mrb[0].mxu0 %v918
          %v1298 = vpop.f32.mrb[0].mxu0
          %v1299 = vadd.f32 %v1202, %v1298
          %v1300 = vpop.f32.mrb[0].mxu0
          %v1301 = vpop.f32.mrb[0].mxu0
          %v1302 = vadd.f32 %v1205, %v1301
          %v1303 = vpop.f32.mrb[0].mxu0
          %1304 = vdwg.mxu0
          %v1305 = vrot.slane %v1243, 7
          %v1306 = vrot.slane %v1246, 7
          %v1307 = vrot.slane %v1251, 7
          %v1308 = vrot.slane %v1254, 7
          %v1309 = vrot.slane %v1259, 7
          %v1310 = vrot.slane %v1262, 7
          %v1311 = vrot.slane %v1267, 7
          %v1312 = vrot.slane %v1270, 7
          %v1313 = vrot.slane %v1275, 7
          %v1314 = vrot.slane %v1278, 7
          %v1315 = vrot.slane %v1283, 7
          %v1316 = vrot.slane %v1286, 7
          %v1317 = vrot.slane %v1291, 7
          %v1318 = vrot.slane %v1294, 7
          %v1319 = vrot.slane %v1299, 7
          %v1320 = vrot.slane %v1302, 7
          %vm1321 = vcmp.lt.s32.totalorder %v274, 1
          %v1322 = vsel %vm1321, %v1319, %v1320
          %v1323 = vsel %vm1321, %v1318, %v1319
          %v1324 = vsel %vm1321, %v1317, %v1318
          %v1325 = vsel %vm1321, %v1316, %v1317
          %v1326 = vsel %vm1321, %v1315, %v1316
          %v1327 = vsel %vm1321, %v1314, %v1315
          %v1328 = vsel %vm1321, %v1313, %v1314
          %v1329 = vsel %vm1321, %v1312, %v1313
          %v1330 = vsel %vm1321, %v1311, %v1312
          %v1331 = vsel %vm1321, %v1310, %v1311
          %v1332 = vsel %vm1321, %v1309, %v1310
          %v1333 = vsel %vm1321, %v1308, %v1309
          %v1334 = vsel %vm1321, %v1307, %v1308
          %v1335 = vsel %vm1321, %v1306, %v1307
          %v1336 = vsel %vm1321, %v1305, %v1306
          %v1337 = vsel %vm1321, %v1320, %v1305
          %v1338 = vadd.f32 %v1337, 0.0
          %v1339 = vadd.f32 %v1336, 0.0
          %v1340 = vadd.f32 %v1335, 0.0
          %v1341 = vadd.f32 %v1334, 0.0
          %v1342 = vadd.f32 %v1333, 0.0
          %v1343 = vadd.f32 %v1332, 0.0
          %v1344 = vadd.f32 %v1331, 0.0
          %v1345 = vadd.f32 %v1330, 0.0
          %v1346 = vadd.f32 %v1329, 0.0
          %v1347 = vadd.f32 %v1328, 0.0
          %v1348 = vadd.f32 %v1327, 0.0
          %v1349 = vadd.f32 %v1326, 0.0
          %v1350 = vadd.f32 %v1325, 0.0
          %v1351 = vadd.f32 %v1324, 0.0
          %v1352 = vadd.f32 %v1323, 0.0
          %v1353 = vadd.f32 %v1322, 0.0
          %v1354 = vld [vmem:[#allocation8 + $0xc0] sm:$0xf]
          %v1355 = vld [vmem:[#allocation8 + $0xc4] sm:$0xf]
          %v1356 = vld [vmem:[#allocation8 + $0xc8] sm:$0xf]
          %v1357 = vld [vmem:[#allocation8 + $0xcc] sm:$0xf]
          %v1358 = vld [vmem:[#allocation8 + $0xd0] sm:$0xf]
          %v1359 = vld [vmem:[#allocation8 + $0xd4] sm:$0xf]
          %v1360 = vld [vmem:[#allocation8 + $0xd8] sm:$0xf]
          %v1361 = vld [vmem:[#allocation8 + $0xdc] sm:$0xf]
          %v1362 = vld [vmem:[#allocation8 + $0xe0] sm:$0xf]
          %v1363 = vld [vmem:[#allocation8 + $0xe4] sm:$0xf]
          %v1364 = vld [vmem:[#allocation8 + $0xe8] sm:$0xf]
          %v1365 = vld [vmem:[#allocation8 + $0xec] sm:$0xf]
          %v1366 = vld [vmem:[#allocation8 + $0xf0] sm:$0xf]
          %v1367 = vld [vmem:[#allocation8 + $0xf4] sm:$0xf]
          %v1368 = vld [vmem:[#allocation8 + $0xf8] sm:$0xf]
          %v1369 = vld [vmem:[#allocation8 + $0xfc] sm:$0xf]
          %v1370 = vld [vmem:[#allocation8 + $0x100] sm:$0xf]
          %v1371 = vld [vmem:[#allocation8 + $0x104] sm:$0xf]
          %v1372 = vld [vmem:[#allocation8 + $0x108] sm:$0xf]
          %v1373 = vld [vmem:[#allocation8 + $0x10c] sm:$0xf]
          %v1374 = vld [vmem:[#allocation8 + $0x110] sm:$0xf]
          %v1375 = vld [vmem:[#allocation8 + $0x114] sm:$0xf]
          %v1376 = vld [vmem:[#allocation8 + $0x118] sm:$0xf]
          %v1377 = vld [vmem:[#allocation8 + $0x11c] sm:$0xf]
          %v1378 = vld [vmem:[#allocation8 + $0x120] sm:$0xf]
          %v1379 = vld [vmem:[#allocation8 + $0x124] sm:$0xf]
          %v1380 = vld [vmem:[#allocation8 + $0x128] sm:$0xf]
          %v1381 = vld [vmem:[#allocation8 + $0x12c] sm:$0xf]
          %v1382 = vld [vmem:[#allocation8 + $0x130] sm:$0xf]
          %v1383 = vld [vmem:[#allocation8 + $0x134] sm:$0xf]
          %v1384 = vld [vmem:[#allocation8 + $0x138] sm:$0xf]
          %v1385 = vld [vmem:[#allocation8 + $0x13c] sm:$0xf]
          %v1386 = vld [vmem:[#allocation8 + $0x140] sm:$0xf]
          %v1387 = vld [vmem:[#allocation8 + $0x144] sm:$0xf]
          %v1388 = vld [vmem:[#allocation8 + $0x148] sm:$0xf]
          %v1389 = vld [vmem:[#allocation8 + $0x14c] sm:$0xf]
          %v1390 = vld [vmem:[#allocation8 + $0x150] sm:$0xf]
          %v1391 = vld [vmem:[#allocation8 + $0x154] sm:$0xf]
          %v1392 = vld [vmem:[#allocation8 + $0x158] sm:$0xf]
          %v1393 = vld [vmem:[#allocation8 + $0x15c] sm:$0xf]
          %v1394 = vld [vmem:[#allocation8 + $0x160] sm:$0xf]
          %v1395 = vld [vmem:[#allocation8 + $0x164] sm:$0xf]
          %v1396 = vld [vmem:[#allocation8 + $0x168] sm:$0xf]
          %v1397 = vld [vmem:[#allocation8 + $0x16c] sm:$0xf]
          %v1398 = vld [vmem:[#allocation8 + $0x170] sm:$0xf]
          %v1399 = vld [vmem:[#allocation8 + $0x174] sm:$0xf]
          %v1400 = vld [vmem:[#allocation8 + $0x178] sm:$0xf]
          %v1401 = vld [vmem:[#allocation8 + $0x17c] sm:$0xf]
          %v1450 = vunpack.c.l.b16 %v1354
          %v1451 = vunpack.c.l.b16 %v1355
          %v1452 = vunpack.c.l.b16 %v1356
          %v1453 = vunpack.c.l.b16 %v1357
          %v1454 = vunpack.c.l.b16 %v1358
          %v1455 = vunpack.c.l.b16 %v1359
          %v1456 = vunpack.c.l.b16 %v1360
          %v1457 = vunpack.c.l.b16 %v1361
          %v1458 = vunpack.c.l.b16 %v1362
          %v1459 = vunpack.c.l.b16 %v1363
          %v1460 = vunpack.c.l.b16 %v1364
          %v1461 = vunpack.c.l.b16 %v1365
          %v1462 = vunpack.c.l.b16 %v1366
          %v1463 = vunpack.c.l.b16 %v1367
          %v1464 = vunpack.c.l.b16 %v1368
          %v1465 = vunpack.c.l.b16 %v1369
          %v1466 = vunpack.c.l.b16 %v1370
          %v1467 = vunpack.c.l.b16 %v1371
          %v1468 = vunpack.c.l.b16 %v1372
          %v1469 = vunpack.c.l.b16 %v1373
          %v1470 = vunpack.c.l.b16 %v1374
          %v1471 = vunpack.c.l.b16 %v1375
          %v1472 = vunpack.c.l.b16 %v1376
          %v1473 = vunpack.c.l.b16 %v1377
          %v1474 = vunpack.c.l.b16 %v1378
          %v1475 = vunpack.c.l.b16 %v1379
          %v1476 = vunpack.c.l.b16 %v1380
          %v1477 = vunpack.c.l.b16 %v1381
          %v1478 = vunpack.c.l.b16 %v1382
          %v1479 = vunpack.c.l.b16 %v1383
          %v1480 = vunpack.c.l.b16 %v1384
          %v1481 = vunpack.c.l.b16 %v1385
          %v1482 = vunpack.c.l.b16 %v1386
          %v1483 = vunpack.c.l.b16 %v1387
          %v1484 = vunpack.c.l.b16 %v1388
          %v1485 = vunpack.c.l.b16 %v1389
          %v1486 = vunpack.c.l.b16 %v1390
          %v1487 = vunpack.c.l.b16 %v1391
          %v1488 = vunpack.c.l.b16 %v1392
          %v1489 = vunpack.c.l.b16 %v1393
          %v1490 = vunpack.c.l.b16 %v1394
          %v1491 = vunpack.c.l.b16 %v1395
          %v1492 = vunpack.c.l.b16 %v1396
          %v1493 = vunpack.c.l.b16 %v1397
          %v1494 = vunpack.c.l.b16 %v1398
          %v1495 = vunpack.c.l.b16 %v1399
          %v1496 = vunpack.c.l.b16 %v1400
          %v1497 = vunpack.c.l.b16 %v1401
          %v1498 = vpack.c.b16 %v1451, %v1450
          %v1499 = vpack.c.b16 %v1453, %v1452
          %v1500 = vpack.c.b16 %v1455, %v1454
          %v1501 = vpack.c.b16 %v1457, %v1456
          %v1502 = vpack.c.b16 %v1459, %v1458
          %v1503 = vpack.c.b16 %v1461, %v1460
          %v1504 = vpack.c.b16 %v1463, %v1462
          %v1505 = vpack.c.b16 %v1465, %v1464
          %v1506 = vpack.c.b16 %v1467, %v1466
          %v1507 = vpack.c.b16 %v1469, %v1468
          %v1508 = vpack.c.b16 %v1471, %v1470
          %v1509 = vpack.c.b16 %v1473, %v1472
          %v1510 = vpack.c.b16 %v1475, %v1474
          %v1511 = vpack.c.b16 %v1477, %v1476
          %v1512 = vpack.c.b16 %v1479, %v1478
          %v1513 = vpack.c.b16 %v1481, %v1480
          %v1514 = vpack.c.b16 %v1483, %v1482
          %v1515 = vpack.c.b16 %v1485, %v1484
          %v1516 = vpack.c.b16 %v1487, %v1486
          %v1517 = vpack.c.b16 %v1489, %v1488
          %v1518 = vpack.c.b16 %v1491, %v1490
          %v1519 = vpack.c.b16 %v1493, %v1492
          %v1520 = vpack.c.b16 %v1495, %v1494
          %v1521 = vpack.c.b16 %v1497, %v1496
          %1546 = vmatprep.subr.bf16.mxu0 0
          %1547 = vmatpush1.bf16.msra.mxu0 %v1498
          %1548 = vmatprep.subr.bf16.mxu0 0
          %1549 = vmatpush1.bf16.msra.mxu0 %v1499
          %1550 = vmatprep.subr.bf16.mxu0 0
          %1551 = vmatpush1.bf16.msra.mxu0 %v1500
          %1552 = vmatprep.subr.bf16.mxu0 0
          %1553 = vmatpush1.bf16.msra.mxu0 %v1501
          %1554 = vmatprep.subr.bf16.mxu0 0
          %1555 = vmatpush1.bf16.msra.mxu0 %v1502
          %1556 = vmatprep.subr.bf16.mxu0 0
          %1557 = vmatpush1.bf16.msra.mxu0 %v1503
          %1558 = vmatprep.subr.bf16.mxu0 0
          %1559 = vmatpush1.bf16.msra.mxu0 %v1504
          %1560 = vmatprep.subr.bf16.mxu0 0
          %1561 = vmatpush1.bf16.msra.mxu0 %v1505
          %1562 = vmatprep.subr.bf16.mxu0 0
          %1563 = vmatpush1.bf16.msra.mxu0 %v1506
          %1564 = vmatprep.subr.bf16.mxu0 0
          %1565 = vmatpush1.bf16.msra.mxu0 %v1507
          %1566 = vmatprep.subr.bf16.mxu0 0
          %1567 = vmatpush1.bf16.msra.mxu0 %v1508
          %1568 = vmatprep.subr.bf16.mxu0 0
          %1569 = vmatpush1.bf16.msra.mxu0 %v1509
          %1570 = vmatprep.subr.bf16.mxu0 0
          %1571 = vmatpush1.bf16.msra.mxu0 %v1510
          %1572 = vmatprep.subr.bf16.mxu0 0
          %1573 = vmatpush1.bf16.msra.mxu0 %v1511
          %1574 = vmatprep.subr.bf16.mxu0 0
          %1575 = vmatpush1.bf16.msra.mxu0 %v1512
          %1576 = vmatprep.subr.bf16.mxu0 0
          %1577 = vmatpush1.bf16.msra.mxu0 %v1513
          %1578 = vmatprep.mubr.bf16.mxu0 %v896
          %1579 = vmatmul.mubr.bf16.gmra.mrb[0].mxu0 %v895
          %v1580 = vpop.f32.mrb[0].mxu0
          %v1581 = vadd.f32 0.0, %v1580
          %v1582 = vpop.f32.mrb[0].mxu0
          %v1583 = vpop.f32.mrb[0].mxu0
          %v1584 = vadd.f32 0.0, %v1583
          %v1585 = vpop.f32.mrb[0].mxu0
          %1586 = vmatprep.mubr.bf16.mxu0 %v899
          %1587 = vmatmul.mubr.bf16.gmra.mrb[0].mxu0 %v898
          %v1588 = vpop.f32.mrb[0].mxu0
          %v1589 = vadd.f32 0.0, %v1588
          %v1590 = vpop.f32.mrb[0].mxu0
          %v1591 = vpop.f32.mrb[0].mxu0
          %v1592 = vadd.f32 0.0, %v1591
          %v1593 = vpop.f32.mrb[0].mxu0
          %1594 = vmatprep.mubr.bf16.mxu0 %v902
          %1595 = vmatmul.mubr.bf16.gmra.mrb[0].mxu0 %v901
          %v1596 = vpop.f32.mrb[0].mxu0
          %v1597 = vadd.f32 0.0, %v1596
          %v1598 = vpop.f32.mrb[0].mxu0
          %v1599 = vpop.f32.mrb[0].mxu0
          %v1600 = vadd.f32 0.0, %v1599
          %v1601 = vpop.f32.mrb[0].mxu0
          %1602 = vmatprep.mubr.bf16.mxu0 %v905
          %1603 = vmatmul.mubr.bf16.gmra.mrb[0].mxu0 %v904
          %v1604 = vpop.f32.mrb[0].mxu0
          %v1605 = vadd.f32 0.0, %v1604
          %v1606 = vpop.f32.mrb[0].mxu0
          %v1607 = vpop.f32.mrb[0].mxu0
          %v1608 = vadd.f32 0.0, %v1607
          %v1609 = vpop.f32.mrb[0].mxu0
          %1610 = vmatprep.mubr.bf16.mxu0 %v908
          %1611 = vmatmul.mubr.bf16.gmra.mrb[0].mxu0 %v907
          %v1612 = vpop.f32.mrb[0].mxu0
          %v1613 = vadd.f32 0.0, %v1612
          %v1614 = vpop.f32.mrb[0].mxu0
          %v1615 = vpop.f32.mrb[0].mxu0
          %v1616 = vadd.f32 0.0, %v1615
          %v1617 = vpop.f32.mrb[0].mxu0
          %1618 = vmatprep.mubr.bf16.mxu0 %v911
          %1619 = vmatmul.mubr.bf16.gmra.mrb[0].mxu0 %v910
          %v1620 = vpop.f32.mrb[0].mxu0
          %v1621 = vadd.f32 0.0, %v1620
          %v1622 = vpop.f32.mrb[0].mxu0
          %v1623 = vpop.f32.mrb[0].mxu0
          %v1624 = vadd.f32 0.0, %v1623
          %v1625 = vpop.f32.mrb[0].mxu0
          %1626 = vmatprep.mubr.bf16.mxu0 %v914
          %1627 = vmatmul.mubr.bf16.gmra.mrb[0].mxu0 %v913
          %v1628 = vpop.f32.mrb[0].mxu0
          %v1629 = vadd.f32 0.0, %v1628
          %v1630 = vpop.f32.mrb[0].mxu0
          %v1631 = vpop.f32.mrb[0].mxu0
          %v1632 = vadd.f32 0.0, %v1631
          %v1633 = vpop.f32.mrb[0].mxu0
          %1634 = vmatprep.mubr.bf16.mxu0 %v917
          %1635 = vmatmul.mubr.bf16.gmra.mrb[0].mxu0 %v916
          %v1636 = vpop.f32.mrb[0].mxu0
          %v1637 = vadd.f32 0.0, %v1636
          %v1638 = vpop.f32.mrb[0].mxu0
          %v1639 = vpop.f32.mrb[0].mxu0
          %v1640 = vadd.f32 0.0, %v1639
          %v1641 = vpop.f32.mrb[0].mxu0
          %1642 = vdwg.mxu0
          %1643 = vmatprep.subr.bf16.mxu0 0
          %1644 = vmatpush1.bf16.msra.mxu0 %v1514
          %1645 = vmatprep.subr.bf16.mxu0 0
          %1646 = vmatpush1.bf16.msra.mxu0 %v1515
          %1647 = vmatprep.subr.bf16.mxu0 0
          %1648 = vmatpush1.bf16.msra.mxu0 %v1516
          %1649 = vmatprep.subr.bf16.mxu0 0
          %1650 = vmatpush1.bf16.msra.mxu0 %v1517
          %1651 = vmatprep.subr.bf16.mxu0 0
          %1652 = vmatpush1.bf16.msra.mxu0 %v1518
          %1653 = vmatprep.subr.bf16.mxu0 0
          %1654 = vmatpush1.bf16.msra.mxu0 %v1519
          %1655 = vmatprep.subr.bf16.mxu0 0
          %1656 = vmatpush1.bf16.msra.mxu0 %v1520
          %1657 = vmatprep.subr.bf16.mxu0 0
          %1658 = vmatpush1.bf16.msra.mxu0 %v1521
          %1659 = vmatprep.subr.bf16.mxu0 0
          %1660 = vmatpush1.bf16.msra.mxu0 0
          %1661 = vmatprep.subr.bf16.mxu0 0
          %1662 = vmatpush1.bf16.msra.mxu0 0
          %1663 = vmatprep.subr.bf16.mxu0 0
          %1664 = vmatpush1.bf16.msra.mxu0 0
          %1665 = vmatprep.subr.bf16.mxu0 0
          %1666 = vmatpush1.bf16.msra.mxu0 0
          %1667 = vmatprep.subr.bf16.mxu0 0
          %1668 = vmatpush1.bf16.msra.mxu0 0
          %1669 = vmatprep.subr.bf16.mxu0 0
          %1670 = vmatpush1.bf16.msra.mxu0 0
          %1671 = vmatprep.subr.bf16.mxu0 0
          %1672 = vmatpush1.bf16.msra.mxu0 0
          %1673 = vmatprep.subr.bf16.mxu0 0
          %1674 = vmatpush1.bf16.msra.mxu0 0
          %1675 = vmatprep.mubr.bf16.mxu0 0
          %1676 = vmatmul.mubr.bf16.gmra.mrb[0].mxu0 %v897
          %v1677 = vpop.f32.mrb[0].mxu0
          %v1678 = vadd.f32 %v1581, %v1677
          %v1679 = vpop.f32.mrb[0].mxu0
          %v1680 = vpop.f32.mrb[0].mxu0
          %v1681 = vadd.f32 %v1584, %v1680
          %v1682 = vpop.f32.mrb[0].mxu0
          %1683 = vmatprep.mubr.bf16.mxu0 0
          %1684 = vmatmul.mubr.bf16.gmra.mrb[0].mxu0 %v900
          %v1685 = vpop.f32.mrb[0].mxu0
          %v1686 = vadd.f32 %v1589, %v1685
          %v1687 = vpop.f32.mrb[0].mxu0
          %v1688 = vpop.f32.mrb[0].mxu0
          %v1689 = vadd.f32 %v1592, %v1688
          %v1690 = vpop.f32.mrb[0].mxu0
          %1691 = vmatprep.mubr.bf16.mxu0 0
          %1692 = vmatmul.mubr.bf16.gmra.mrb[0].mxu0 %v903
          %v1693 = vpop.f32.mrb[0].mxu0
          %v1694 = vadd.f32 %v1597, %v1693
          %v1695 = vpop.f32.mrb[0].mxu0
          %v1696 = vpop.f32.mrb[0].mxu0
          %v1697 = vadd.f32 %v1600, %v1696
          %v1698 = vpop.f32.mrb[0].mxu0
          %1699 = vmatprep.mubr.bf16.mxu0 0
          %1700 = vmatmul.mubr.bf16.gmra.mrb[0].mxu0 %v906
          %v1701 = vpop.f32.mrb[0].mxu0
          %v1702 = vadd.f32 %v1605, %v1701
          %v1703 = vpop.f32.mrb[0].mxu0
          %v1704 = vpop.f32.mrb[0].mxu0
          %v1705 = vadd.f32 %v1608, %v1704
          %v1706 = vpop.f32.mrb[0].mxu0
          %1707 = vmatprep.mubr.bf16.mxu0 0
          %1708 = vmatmul.mubr.bf16.gmra.mrb[0].mxu0 %v909
          %v1709 = vpop.f32.mrb[0].mxu0
          %v1710 = vadd.f32 %v1613, %v1709
          %v1711 = vpop.f32.mrb[0].mxu0
          %v1712 = vpop.f32.mrb[0].mxu0
          %v1713 = vadd.f32 %v1616, %v1712
          %v1714 = vpop.f32.mrb[0].mxu0
          %1715 = vmatprep.mubr.bf16.mxu0 0
          %1716 = vmatmul.mubr.bf16.gmra.mrb[0].mxu0 %v912
          %v1717 = vpop.f32.mrb[0].mxu0
          %v1718 = vadd.f32 %v1621, %v1717
          %v1719 = vpop.f32.mrb[0].mxu0
          %v1720 = vpop.f32.mrb[0].mxu0
          %v1721 = vadd.f32 %v1624, %v1720
          %v1722 = vpop.f32.mrb[0].mxu0
          %1723 = vmatprep.mubr.bf16.mxu0 0
          %1724 = vmatmul.mubr.bf16.gmra.mrb[0].mxu0 %v915
          %v1725 = vpop.f32.mrb[0].mxu0
          %v1726 = vadd.f32 %v1629, %v1725
          %v1727 = vpop.f32.mrb[0].mxu0
          %v1728 = vpop.f32.mrb[0].mxu0
          %v1729 = vadd.f32 %v1632, %v1728
          %v1730 = vpop.f32.mrb[0].mxu0
          %1731 = vmatprep.mubr.bf16.mxu0 0
          %1732 = vmatmul.mubr.bf16.gmra.mrb[0].mxu0 %v918
          %v1733 = vpop.f32.mrb[0].mxu0
          %v1734 = vadd.f32 %v1637, %v1733
          %v1735 = vpop.f32.mrb[0].mxu0
          %v1736 = vpop.f32.mrb[0].mxu0
          %v1737 = vadd.f32 %v1640, %v1736
          %v1738 = vpop.f32.mrb[0].mxu0
          %1739 = vdwg.mxu0
          %v1740 = vadd.f32 %v1338, %v1678
          %v1741 = vadd.f32 %v1339, %v1681
          %v1742 = vadd.f32 %v1340, %v1686
          %v1743 = vadd.f32 %v1341, %v1689
          %v1744 = vadd.f32 %v1342, %v1694
          %v1745 = vadd.f32 %v1343, %v1697
          %v1746 = vadd.f32 %v1344, %v1702
          %v1747 = vadd.f32 %v1345, %v1705
          %v1748 = vadd.f32 %v1346, %v1710
          %v1749 = vadd.f32 %v1347, %v1713
          %v1750 = vadd.f32 %v1348, %v1718
          %v1751 = vadd.f32 %v1349, %v1721
          %v1752 = vadd.f32 %v1350, %v1726
          %v1753 = vadd.f32 %v1351, %v1729
          %v1754 = vadd.f32 %v1352, %v1734
          %v1755 = vadd.f32 %v1353, %v1737
          %v1756 = vld [vmem:[#allocation8 + $0x180] sm:$0xf]
          %v1757 = vld [vmem:[#allocation8 + $0x184] sm:$0xf]
          %v1758 = vld [vmem:[#allocation8 + $0x188] sm:$0xf]
          %v1759 = vld [vmem:[#allocation8 + $0x18c] sm:$0xf]
          %v1760 = vld [vmem:[#allocation8 + $0x190] sm:$0xf]
          %v1761 = vld [vmem:[#allocation8 + $0x194] sm:$0xf]
          %v1762 = vld [vmem:[#allocation8 + $0x198] sm:$0xf]
          %v1763 = vld [vmem:[#allocation8 + $0x19c] sm:$0xf]
          %v1764 = vld [vmem:[#allocation8 + $0x1a0] sm:$0xf]
          %v1765 = vld [vmem:[#allocation8 + $0x1a4] sm:$0xf]
          %v1766 = vld [vmem:[#allocation8 + $0x1a8] sm:$0xf]
          %v1767 = vld [vmem:[#allocation8 + $0x1ac] sm:$0xf]
          %v1768 = vld [vmem:[#allocation8 + $0x1b0] sm:$0xf]
          %v1769 = vld [vmem:[#allocation8 + $0x1b4] sm:$0xf]
          %v1770 = vld [vmem:[#allocation8 + $0x1b8] sm:$0xf]
          %v1771 = vld [vmem:[#allocation8 + $0x1bc] sm:$0xf]
          %v1772 = vld [vmem:[#allocation8 + $0x1c0] sm:$0xf]
          %v1773 = vld [vmem:[#allocation8 + $0x1c4] sm:$0xf]
          %v1774 = vld [vmem:[#allocation8 + $0x1c8] sm:$0xf]
          %v1775 = vld [vmem:[#allocation8 + $0x1cc] sm:$0xf]
          %v1776 = vld [vmem:[#allocation8 + $0x1d0] sm:$0xf]
          %v1777 = vld [vmem:[#allocation8 + $0x1d4] sm:$0xf]
          %v1778 = vld [vmem:[#allocation8 + $0x1d8] sm:$0xf]
          %v1779 = vld [vmem:[#allocation8 + $0x1dc] sm:$0xf]
          %v1780 = vld [vmem:[#allocation8 + $0x1e0] sm:$0xf]
          %v1781 = vld [vmem:[#allocation8 + $0x1e4] sm:$0xf]
          %v1782 = vld [vmem:[#allocation8 + $0x1e8] sm:$0xf]
          %v1783 = vld [vmem:[#allocation8 + $0x1ec] sm:$0xf]
          %v1784 = vld [vmem:[#allocation8 + $0x1f0] sm:$0xf]
          %v1785 = vld [vmem:[#allocation8 + $0x1f4] sm:$0xf]
          %v1786 = vld [vmem:[#allocation8 + $0x1f8] sm:$0xf]
          %v1787 = vld [vmem:[#allocation8 + $0x1fc] sm:$0xf]
          %v1788 = vld [vmem:[#allocation8 + $0x200] sm:$0xf]
          %v1789 = vld [vmem:[#allocation8 + $0x204] sm:$0xf]
          %v1790 = vld [vmem:[#allocation8 + $0x208] sm:$0xf]
          %v1791 = vld [vmem:[#allocation8 + $0x20c] sm:$0xf]
          %v1792 = vld [vmem:[#allocation8 + $0x210] sm:$0xf]
          %v1793 = vld [vmem:[#allocation8 + $0x214] sm:$0xf]
          %v1794 = vld [vmem:[#allocation8 + $0x218] sm:$0xf]
          %v1795 = vld [vmem:[#allocation8 + $0x21c] sm:$0xf]
          %v1796 = vld [vmem:[#allocation8 + $0x220] sm:$0xf]
          %v1797 = vld [vmem:[#allocation8 + $0x224] sm:$0xf]
          %v1798 = vld [vmem:[#allocation8 + $0x228] sm:$0xf]
          %v1799 = vld [vmem:[#allocation8 + $0x22c] sm:$0xf]
          %v1800 = vld [vmem:[#allocation8 + $0x230] sm:$0xf]
          %v1801 = vld [vmem:[#allocation8 + $0x234] sm:$0xf]
          %v1802 = vld [vmem:[#allocation8 + $0x238] sm:$0xf]
          %v1803 = vld [vmem:[#allocation8 + $0x23c] sm:$0xf]
          %v1852 = vunpack.c.l.b16 %v1756
          %v1853 = vunpack.c.l.b16 %v1757
          %v1854 = vunpack.c.l.b16 %v1758
          %v1855 = vunpack.c.l.b16 %v1759
          %v1856 = vunpack.c.l.b16 %v1760
          %v1857 = vunpack.c.l.b16 %v1761
          %v1858 = vunpack.c.l.b16 %v1762
          %v1859 = vunpack.c.l.b16 %v1763
          %v1860 = vunpack.c.l.b16 %v1764
          %v1861 = vunpack.c.l.b16 %v1765
          %v1862 = vunpack.c.l.b16 %v1766
          %v1863 = vunpack.c.l.b16 %v1767
          %v1864 = vunpack.c.l.b16 %v1768
          %v1865 = vunpack.c.l.b16 %v1769
          %v1866 = vunpack.c.l.b16 %v1770
          %v1867 = vunpack.c.l.b16 %v1771
          %v1868 = vunpack.c.l.b16 %v1772
          %v1869 = vunpack.c.l.b16 %v1773
          %v1870 = vunpack.c.l.b16 %v1774
          %v1871 = vunpack.c.l.b16 %v1775
          %v1872 = vunpack.c.l.b16 %v1776
          %v1873 = vunpack.c.l.b16 %v1777
          %v1874 = vunpack.c.l.b16 %v1778
          %v1875 = vunpack.c.l.b16 %v1779
          %v1876 = vunpack.c.l.b16 %v1780
          %v1877 = vunpack.c.l.b16 %v1781
          %v1878 = vunpack.c.l.b16 %v1782
          %v1879 = vunpack.c.l.b16 %v1783
          %v1880 = vunpack.c.l.b16 %v1784
          %v1881 = vunpack.c.l.b16 %v1785
          %v1882 = vunpack.c.l.b16 %v1786
          %v1883 = vunpack.c.l.b16 %v1787
          %v1884 = vunpack.c.l.b16 %v1788
          %v1885 = vunpack.c.l.b16 %v1789
          %v1886 = vunpack.c.l.b16 %v1790
          %v1887 = vunpack.c.l.b16 %v1791
          %v1888 = vunpack.c.l.b16 %v1792
          %v1889 = vunpack.c.l.b16 %v1793
          %v1890 = vunpack.c.l.b16 %v1794
          %v1891 = vunpack.c.l.b16 %v1795
          %v1892 = vunpack.c.l.b16 %v1796
          %v1893 = vunpack.c.l.b16 %v1797
          %v1894 = vunpack.c.l.b16 %v1798
          %v1895 = vunpack.c.l.b16 %v1799
          %v1896 = vunpack.c.l.b16 %v1800
          %v1897 = vunpack.c.l.b16 %v1801
          %v1898 = vunpack.c.l.b16 %v1802
          %v1899 = vunpack.c.l.b16 %v1803
          %v1900 = vpack.c.b16 %v1853, %v1852
          %v1901 = vpack.c.b16 %v1855, %v1854
          %v1902 = vpack.c.b16 %v1857, %v1856
          %v1903 = vpack.c.b16 %v1859, %v1858
          %v1904 = vpack.c.b16 %v1861, %v1860
          %v1905 = vpack.c.b16 %v1863, %v1862
          %v1906 = vpack.c.b16 %v1865, %v1864
          %v1907 = vpack.c.b16 %v1867, %v1866
          %v1908 = vpack.c.b16 %v1869, %v1868
          %v1909 = vpack.c.b16 %v1871, %v1870
          %v1910 = vpack.c.b16 %v1873, %v1872
          %v1911 = vpack.c.b16 %v1875, %v1874
          %v1912 = vpack.c.b16 %v1877, %v1876
          %v1913 = vpack.c.b16 %v1879, %v1878
          %v1914 = vpack.c.b16 %v1881, %v1880
          %v1915 = vpack.c.b16 %v1883, %v1882
          %v1916 = vpack.c.b16 %v1885, %v1884
          %v1917 = vpack.c.b16 %v1887, %v1886
          %v1918 = vpack.c.b16 %v1889, %v1888
          %v1919 = vpack.c.b16 %v1891, %v1890
          %v1920 = vpack.c.b16 %v1893, %v1892
          %v1921 = vpack.c.b16 %v1895, %v1894
          %v1922 = vpack.c.b16 %v1897, %v1896
          %v1923 = vpack.c.b16 %v1899, %v1898
          %1948 = vmatprep.subr.bf16.mxu0 0
          %1949 = vmatpush1.bf16.msra.mxu0 %v1900
          %1950 = vmatprep.subr.bf16.mxu0 0
          %1951 = vmatpush1.bf16.msra.mxu0 %v1901
          %1952 = vmatprep.subr.bf16.mxu0 0
          %1953 = vmatpush1.bf16.msra.mxu0 %v1902
          %1954 = vmatprep.subr.bf16.mxu0 0
          %1955 = vmatpush1.bf16.msra.mxu0 %v1903
          %1956 = vmatprep.subr.bf16.mxu0 0
          %1957 = vmatpush1.bf16.msra.mxu0 %v1904
          %1958 = vmatprep.subr.bf16.mxu0 0
          %1959 = vmatpush1.bf16.msra.mxu0 %v1905
          %1960 = vmatprep.subr.bf16.mxu0 0
          %1961 = vmatpush1.bf16.msra.mxu0 %v1906
          %1962 = vmatprep.subr.bf16.mxu0 0
          %1963 = vmatpush1.bf16.msra.mxu0 %v1907
          %1964 = vmatprep.subr.bf16.mxu0 0
          %1965 = vmatpush1.bf16.msra.mxu0 %v1908
          %1966 = vmatprep.subr.bf16.mxu0 0
          %1967 = vmatpush1.bf16.msra.mxu0 %v1909
          %1968 = vmatprep.subr.bf16.mxu0 0
          %1969 = vmatpush1.bf16.msra.mxu0 %v1910
          %1970 = vmatprep.subr.bf16.mxu0 0
          %1971 = vmatpush1.bf16.msra.mxu0 %v1911
          %1972 = vmatprep.subr.bf16.mxu0 0
          %1973 = vmatpush1.bf16.msra.mxu0 %v1912
          %1974 = vmatprep.subr.bf16.mxu0 0
          %1975 = vmatpush1.bf16.msra.mxu0 %v1913
          %1976 = vmatprep.subr.bf16.mxu0 0
          %1977 = vmatpush1.bf16.msra.mxu0 %v1914
          %1978 = vmatprep.subr.bf16.mxu0 0
          %1979 = vmatpush1.bf16.msra.mxu0 %v1915
          %1980 = vmatprep.mubr.bf16.mxu0 %v896
          %1981 = vmatmul.mubr.bf16.gmra.mrb[0].mxu0 %v895
          %v1982 = vpop.f32.mrb[0].mxu0
          %v1983 = vadd.f32 0.0, %v1982
          %v1984 = vpop.f32.mrb[0].mxu0
          %v1985 = vpop.f32.mrb[0].mxu0
          %v1986 = vadd.f32 0.0, %v1985
          %v1987 = vpop.f32.mrb[0].mxu0
          %1988 = vmatprep.mubr.bf16.mxu0 %v899
          %1989 = vmatmul.mubr.bf16.gmra.mrb[0].mxu0 %v898
          %v1990 = vpop.f32.mrb[0].mxu0
          %v1991 = vadd.f32 0.0, %v1990
          %v1992 = vpop.f32.mrb[0].mxu0
          %v1993 = vpop.f32.mrb[0].mxu0
          %v1994 = vadd.f32 0.0, %v1993
          %v1995 = vpop.f32.mrb[0].mxu0
          %1996 = vmatprep.mubr.bf16.mxu0 %v902
          %1997 = vmatmul.mubr.bf16.gmra.mrb[0].mxu0 %v901
          %v1998 = vpop.f32.mrb[0].mxu0
          %v1999 = vadd.f32 0.0, %v1998
          %v2000 = vpop.f32.mrb[0].mxu0
          %v2001 = vpop.f32.mrb[0].mxu0
          %v2002 = vadd.f32 0.0, %v2001
          %v2003 = vpop.f32.mrb[0].mxu0
          %2004 = vmatprep.mubr.bf16.mxu0 %v905
          %2005 = vmatmul.mubr.bf16.gmra.mrb[0].mxu0 %v904
          %v2006 = vpop.f32.mrb[0].mxu0
          %v2007 = vadd.f32 0.0, %v2006
          %v2008 = vpop.f32.mrb[0].mxu0
          %v2009 = vpop.f32.mrb[0].mxu0
          %v2010 = vadd.f32 0.0, %v2009
          %v2011 = vpop.f32.mrb[0].mxu0
          %2012 = vmatprep.mubr.bf16.mxu0 %v908
          %2013 = vmatmul.mubr.bf16.gmra.mrb[0].mxu0 %v907
          %v2014 = vpop.f32.mrb[0].mxu0
          %v2015 = vadd.f32 0.0, %v2014
          %v2016 = vpop.f32.mrb[0].mxu0
          %v2017 = vpop.f32.mrb[0].mxu0
          %v2018 = vadd.f32 0.0, %v2017
          %v2019 = vpop.f32.mrb[0].mxu0
          %2020 = vmatprep.mubr.bf16.mxu0 %v911
          %2021 = vmatmul.mubr.bf16.gmra.mrb[0].mxu0 %v910
          %v2022 = vpop.f32.mrb[0].mxu0
          %v2023 = vadd.f32 0.0, %v2022
          %v2024 = vpop.f32.mrb[0].mxu0
          %v2025 = vpop.f32.mrb[0].mxu0
          %v2026 = vadd.f32 0.0, %v2025
          %v2027 = vpop.f32.mrb[0].mxu0
          %2028 = vmatprep.mubr.bf16.mxu0 %v914
          %2029 = vmatmul.mubr.bf16.gmra.mrb[0].mxu0 %v913
          %v2030 = vpop.f32.mrb[0].mxu0
          %v2031 = vadd.f32 0.0, %v2030
          %v2032 = vpop.f32.mrb[0].mxu0
          %v2033 = vpop.f32.mrb[0].mxu0
          %v2034 = vadd.f32 0.0, %v2033
          %v2035 = vpop.f32.mrb[0].mxu0
          %2036 = vmatprep.mubr.bf16.mxu0 %v917
          %2037 = vmatmul.mubr.bf16.gmra.mrb[0].mxu0 %v916
          %v2038 = vpop.f32.mrb[0].mxu0
          %v2039 = vadd.f32 0.0, %v2038
          %v2040 = vpop.f32.mrb[0].mxu0
          %v2041 = vpop.f32.mrb[0].mxu0
          %v2042 = vadd.f32 0.0, %v2041
          %v2043 = vpop.f32.mrb[0].mxu0
          %2044 = vdwg.mxu0
          %2045 = vmatprep.subr.bf16.mxu0 0
          %2046 = vmatpush1.bf16.msra.mxu0 %v1916
          %2047 = vmatprep.subr.bf16.mxu0 0
          %2048 = vmatpush1.bf16.msra.mxu0 %v1917
          %2049 = vmatprep.subr.bf16.mxu0 0
          %2050 = vmatpush1.bf16.msra.mxu0 %v1918
          %2051 = vmatprep.subr.bf16.mxu0 0
          %2052 = vmatpush1.bf16.msra.mxu0 %v1919
          %2053 = vmatprep.subr.bf16.mxu0 0
          %2054 = vmatpush1.bf16.msra.mxu0 %v1920
          %2055 = vmatprep.subr.bf16.mxu0 0
          %2056 = vmatpush1.bf16.msra.mxu0 %v1921
          %2057 = vmatprep.subr.bf16.mxu0 0
          %2058 = vmatpush1.bf16.msra.mxu0 %v1922
          %2059 = vmatprep.subr.bf16.mxu0 0
          %2060 = vmatpush1.bf16.msra.mxu0 %v1923
          %2061 = vmatprep.subr.bf16.mxu0 0
          %2062 = vmatpush1.bf16.msra.mxu0 0
          %2063 = vmatprep.subr.bf16.mxu0 0
          %2064 = vmatpush1.bf16.msra.mxu0 0
          %2065 = vmatprep.subr.bf16.mxu0 0
          %2066 = vmatpush1.bf16.msra.mxu0 0
          %2067 = vmatprep.subr.bf16.mxu0 0
          %2068 = vmatpush1.bf16.msra.mxu0 0
          %2069 = vmatprep.subr.bf16.mxu0 0
          %2070 = vmatpush1.bf16.msra.mxu0 0
          %2071 = vmatprep.subr.bf16.mxu0 0
          %2072 = vmatpush1.bf16.msra.mxu0 0
          %2073 = vmatprep.subr.bf16.mxu0 0
          %2074 = vmatpush1.bf16.msra.mxu0 0
          %2075 = vmatprep.subr.bf16.mxu0 0
          %2076 = vmatpush1.bf16.msra.mxu0 0
          %2077 = vmatprep.mubr.bf16.mxu0 0
          %2078 = vmatmul.mubr.bf16.gmra.mrb[0].mxu0 %v897
          %v2079 = vpop.f32.mrb[0].mxu0
          %v2080 = vadd.f32 %v1983, %v2079
          %v2081 = vpop.f32.mrb[0].mxu0
          %v2082 = vpop.f32.mrb[0].mxu0
          %v2083 = vadd.f32 %v1986, %v2082
          %v2084 = vpop.f32.mrb[0].mxu0
          %2085 = vmatprep.mubr.bf16.mxu0 0
          %2086 = vmatmul.mubr.bf16.gmra.mrb[0].mxu0 %v900
          %v2087 = vpop.f32.mrb[0].mxu0
          %v2088 = vadd.f32 %v1991, %v2087
          %v2089 = vpop.f32.mrb[0].mxu0
          %v2090 = vpop.f32.mrb[0].mxu0
          %v2091 = vadd.f32 %v1994, %v2090
          %v2092 = vpop.f32.mrb[0].mxu0
          %2093 = vmatprep.mubr.bf16.mxu0 0
          %2094 = vmatmul.mubr.bf16.gmra.mrb[0].mxu0 %v903
          %v2095 = vpop.f32.mrb[0].mxu0
          %v2096 = vadd.f32 %v1999, %v2095
          %v2097 = vpop.f32.mrb[0].mxu0
          %v2098 = vpop.f32.mrb[0].mxu0
          %v2099 = vadd.f32 %v2002, %v2098
          %v2100 = vpop.f32.mrb[0].mxu0
          %2101 = vmatprep.mubr.bf16.mxu0 0
          %2102 = vmatmul.mubr.bf16.gmra.mrb[0].mxu0 %v906
          %v2103 = vpop.f32.mrb[0].mxu0
          %v2104 = vadd.f32 %v2007, %v2103
          %v2105 = vpop.f32.mrb[0].mxu0
          %v2106 = vpop.f32.mrb[0].mxu0
          %v2107 = vadd.f32 %v2010, %v2106
          %v2108 = vpop.f32.mrb[0].mxu0
          %2109 = vmatprep.mubr.bf16.mxu0 0
          %2110 = vmatmul.mubr.bf16.gmra.mrb[0].mxu0 %v909
          %v2111 = vpop.f32.mrb[0].mxu0
          %v2112 = vadd.f32 %v2015, %v2111
          %v2113 = vpop.f32.mrb[0].mxu0
          %v2114 = vpop.f32.mrb[0].mxu0
          %v2115 = vadd.f32 %v2018, %v2114
          %v2116 = vpop.f32.mrb[0].mxu0
          %2117 = vmatprep.mubr.bf16.mxu0 0
          %2118 = vmatmul.mubr.bf16.gmra.mrb[0].mxu0 %v912
          %v2119 = vpop.f32.mrb[0].mxu0
          %v2120 = vadd.f32 %v2023, %v2119
          %v2121 = vpop.f32.mrb[0].mxu0
          %v2122 = vpop.f32.mrb[0].mxu0
          %v2123 = vadd.f32 %v2026, %v2122
          %v2124 = vpop.f32.mrb[0].mxu0
          %2125 = vmatprep.mubr.bf16.mxu0 0
          %2126 = vmatmul.mubr.bf16.gmra.mrb[0].mxu0 %v915
          %v2127 = vpop.f32.mrb[0].mxu0
          %v2128 = vadd.f32 %v2031, %v2127
          %v2129 = vpop.f32.mrb[0].mxu0
          %v2130 = vpop.f32.mrb[0].mxu0
          %v2131 = vadd.f32 %v2034, %v2130
          %v2132 = vpop.f32.mrb[0].mxu0
          %2133 = vmatprep.mubr.bf16.mxu0 0
          %2134 = vmatmul.mubr.bf16.gmra.mrb[0].mxu0 %v918
          %v2135 = vpop.f32.mrb[0].mxu0
          %v2136 = vadd.f32 %v2039, %v2135
          %v2137 = vpop.f32.mrb[0].mxu0
          %v2138 = vpop.f32.mrb[0].mxu0
          %v2139 = vadd.f32 %v2042, %v2138
          %v2140 = vpop.f32.mrb[0].mxu0
          %2141 = vdwg.mxu0
          %v2142 = vrot.slane %v2080, 1
          %v2143 = vrot.slane %v2083, 1
          %v2144 = vrot.slane %v2088, 1
          %v2145 = vrot.slane %v2091, 1
          %v2146 = vrot.slane %v2096, 1
          %v2147 = vrot.slane %v2099, 1
          %v2148 = vrot.slane %v2104, 1
          %v2149 = vrot.slane %v2107, 1
          %v2150 = vrot.slane %v2112, 1
          %v2151 = vrot.slane %v2115, 1
          %v2152 = vrot.slane %v2120, 1
          %v2153 = vrot.slane %v2123, 1
          %v2154 = vrot.slane %v2128, 1
          %v2155 = vrot.slane %v2131, 1
          %v2156 = vrot.slane %v2136, 1
          %v2157 = vrot.slane %v2139, 1
          %vm2158 = vcmp.lt.s32.totalorder %v274, 7
          %v2159 = vsel %vm2158, %v2156, %v2157
          %v2160 = vsel %vm2158, %v2155, %v2156
          %v2161 = vsel %vm2158, %v2154, %v2155
          %v2162 = vsel %vm2158, %v2153, %v2154
          %v2163 = vsel %vm2158, %v2152, %v2153
          %v2164 = vsel %vm2158, %v2151, %v2152
          %v2165 = vsel %vm2158, %v2150, %v2151
          %v2166 = vsel %vm2158, %v2149, %v2150
          %v2167 = vsel %vm2158, %v2148, %v2149
          %v2168 = vsel %vm2158, %v2147, %v2148
          %v2169 = vsel %vm2158, %v2146, %v2147
          %v2170 = vsel %vm2158, %v2145, %v2146
          %v2171 = vsel %vm2158, %v2144, %v2145
          %v2172 = vsel %vm2158, %v2143, %v2144
          %v2173 = vsel %vm2158, %v2142, %v2143
          %v2174 = vsel %vm2158, %v2157, %v2142
          %v2175 = vadd.f32 %v1740, %v2173
          %v2176 = vadd.f32 %v1741, %v2172
          %v2177 = vadd.f32 %v1742, %v2171
          %v2178 = vadd.f32 %v1743, %v2170
          %v2179 = vadd.f32 %v1744, %v2169
          %v2180 = vadd.f32 %v1745, %v2168
          %v2181 = vadd.f32 %v1746, %v2167
          %v2182 = vadd.f32 %v1747, %v2166
          %v2183 = vadd.f32 %v1748, %v2165
          %v2184 = vadd.f32 %v1749, %v2164
          %v2185 = vadd.f32 %v1750, %v2163
          %v2186 = vadd.f32 %v1751, %v2162
          %v2187 = vadd.f32 %v1752, %v2161
          %v2188 = vadd.f32 %v1753, %v2160
          %v2189 = vadd.f32 %v1754, %v2159
          %v2190 = vadd.f32 %v1755, %v2174
          %v2191 = vld [vmem:[%s2] sm:$0x1]
          %v2193 = vlaneseq
          %v2194 = vshrl.u32 %v2193, 7
          %v2195 = vsub.s32 0, %v2194
          %v2196 = vrot.slane %v2191, %v2195
          %v2198 = vadd.f32 %v2175, %v2196
          %v2199 = vadd.f32 %v2176, %v2196
          %v2200 = vadd.f32 %v2177, %v2196
          %v2201 = vadd.f32 %v2178, %v2196
          %v2202 = vadd.f32 %v2179, %v2196
          %v2203 = vadd.f32 %v2180, %v2196
          %v2204 = vadd.f32 %v2181, %v2196
          %v2205 = vadd.f32 %v2182, %v2196
          %v2206 = vadd.f32 %v2183, %v2196
          %v2207 = vadd.f32 %v2184, %v2196
          %v2208 = vadd.f32 %v2185, %v2196
          %v2209 = vadd.f32 %v2186, %v2196
          %v2210 = vadd.f32 %v2187, %v2196
          %v2211 = vadd.f32 %v2188, %v2196
          %v2212 = vadd.f32 %v2189, %v2196
          %v2213 = vadd.f32 %v2190, %v2196
          %v2214 = vmax.f32 %v2198, 0.0
          %v2215 = vmax.f32 %v2199, 0.0
          %v2216 = vmax.f32 %v2200, 0.0
          %v2217 = vmax.f32 %v2201, 0.0
          %v2218 = vmax.f32 %v2202, 0.0
          %v2219 = vmax.f32 %v2203, 0.0
          %v2220 = vmax.f32 %v2204, 0.0
          %v2221 = vmax.f32 %v2205, 0.0
          %v2222 = vmax.f32 %v2206, 0.0
          %v2223 = vmax.f32 %v2207, 0.0
          %v2224 = vmax.f32 %v2208, 0.0
          %v2225 = vmax.f32 %v2209, 0.0
          %v2226 = vmax.f32 %v2210, 0.0
          %v2227 = vmax.f32 %v2211, 0.0
          %v2228 = vmax.f32 %v2212, 0.0
          %v2229 = vmax.f32 %v2213, 0.0
          %v2230 = vsel %vm514, 1, 0
          %v2231 = vsel %vm515, 1, 0
          %v2232 = vsel %vm516, 1, 0
          %v2233 = vsel %vm517, 1, 0
          %v2234 = vsel %vm518, 1, 0
          %v2235 = vsel %vm519, 1, 0
          %v2236 = vsel %vm520, 1, 0
          %v2237 = vsel %vm521, 1, 0
          %v2238 = vsel %vm522, 1, 0
          %v2239 = vsel %vm523, 1, 0
          %v2240 = vsel %vm524, 1, 0
          %v2241 = vsel %vm525, 1, 0
          %v2242 = vsel %vm526, 1, 0
          %v2243 = vsel %vm527, 1, 0
          %v2244 = vsel %vm528, 1, 0
          %v2245 = vsel %vm529, 1, 0
          %vm2246 = vcmp.eq.s32.totalorder %v2230, 1
          %vm2247 = vcmp.eq.s32.totalorder %v2231, 1
          %vm2248 = vcmp.eq.s32.totalorder %v2232, 1
          %vm2249 = vcmp.eq.s32.totalorder %v2233, 1
          %vm2250 = vcmp.eq.s32.totalorder %v2234, 1
          %vm2251 = vcmp.eq.s32.totalorder %v2235, 1
          %vm2252 = vcmp.eq.s32.totalorder %v2236, 1
          %vm2253 = vcmp.eq.s32.totalorder %v2237, 1
          %vm2254 = vcmp.eq.s32.totalorder %v2238, 1
          %vm2255 = vcmp.eq.s32.totalorder %v2239, 1
          %vm2256 = vcmp.eq.s32.totalorder %v2240, 1
          %vm2257 = vcmp.eq.s32.totalorder %v2241, 1
          %vm2258 = vcmp.eq.s32.totalorder %v2242, 1
          %vm2259 = vcmp.eq.s32.totalorder %v2243, 1
          %vm2260 = vcmp.eq.s32.totalorder %v2244, 1
          %vm2261 = vcmp.eq.s32.totalorder %v2245, 1
          %v2262 = vsel %vm2246, %v2214, 0.0
          %v2263 = vsel %vm2247, %v2215, 0.0
          %v2264 = vsel %vm2248, %v2216, 0.0
          %v2265 = vsel %vm2249, %v2217, 0.0
          %v2266 = vsel %vm2250, %v2218, 0.0
          %v2267 = vsel %vm2251, %v2219, 0.0
          %v2268 = vsel %vm2252, %v2220, 0.0
          %v2269 = vsel %vm2253, %v2221, 0.0
          %v2270 = vsel %vm2254, %v2222, 0.0
          %v2271 = vsel %vm2255, %v2223, 0.0
          %v2272 = vsel %vm2256, %v2224, 0.0
          %v2273 = vsel %vm2257, %v2225, 0.0
          %v2274 = vsel %vm2258, %v2226, 0.0
          %v2275 = vsel %vm2259, %v2227, 0.0
          %v2276 = vsel %vm2260, %v2228, 0.0
          %v2277 = vsel %vm2261, %v2229, 0.0
          %v2278 = vpack.c.bf16 %v2263, %v2262
          %v2279 = vpack.c.bf16 %v2265, %v2264
          %v2280 = vpack.c.bf16 %v2267, %v2266
          %v2281 = vpack.c.bf16 %v2269, %v2268
          %v2282 = vpack.c.bf16 %v2271, %v2270
          %v2283 = vpack.c.bf16 %v2273, %v2272
          %v2284 = vpack.c.bf16 %v2275, %v2274
          %v2285 = vpack.c.bf16 %v2277, %v2276
          %s2286 = smul.addr %s854, 8
          %s2287 = scalar_lea.vmem [#allocation3], %s2286
          %2288 = vst [vmem:[%s2287] sm:$0xff] %v2278
          %2289 = vst [vmem:[%s2287 + $0x8] sm:$0xff] %v2279
          %2290 = vst [vmem:[%s2287 + $0x10] sm:$0xff] %v2280
          %2291 = vst [vmem:[%s2287 + $0x18] sm:$0xff] %v2281
          %2292 = vst [vmem:[%s2287 + $0x20] sm:$0xff] %v2282
          %2293 = vst [vmem:[%s2287 + $0x28] sm:$0xff] %v2283
          %2294 = vst [vmem:[%s2287 + $0x30] sm:$0xff] %v2284
          %2295 = vst [vmem:[%s2287 + $0x38] sm:$0xff] %v2285
        $region57: #{tpu_custom_call.1} parent=39 // loop_footer
          %s831 = sadd.s32 1, %s827
        $region58: #{tpu_custom_call.1} parent=39 // loop_footer_branch
          %826 = sbr.rel target = $region54
        $region59: #{tpu_custom_call.1} parent=39 // loop_exit
          _
        loop: start=0, step=1, limit=4
        $region60: #{tpu_custom_call.1} parent=39 // loop_pre_header
          _
        $region61: #{tpu_custom_call.1} parent=39 // loop_header
          %s2297 = sphi 0, %s2301
          %p2298 = scmp.ge.s32.totalorder %s2297, 4
        $region62: #{tpu_custom_call.1} parent=39 // loop_header_branch
          %2300 = sbr.rel (%p2298) target = $region66
        $region63: #{tpu_custom_call.1} parent=39 // loop_body
          %s2302 = smul.u32 %s2297, 128
          %s2303 = sshra.s32 %s2302, 4
          %s2304 = sand.u32 %s2302, 15
          %s2305 = smul.addr %s2303, 8
          %s2306 = scalar_lea.vmem [#allocation3], %s2305
          %v2307 = vld [vmem:[%s2306] sm:$0xff]
          %v2308 = vld [vmem:[%s2306 + $0x8] sm:$0xff]
          %v2309 = vld [vmem:[%s2306 + $0x10] sm:$0xff]
          %v2310 = vld [vmem:[%s2306 + $0x18] sm:$0xff]
          %v2311 = vld [vmem:[%s2306 + $0x20] sm:$0xff]
          %v2312 = vld [vmem:[%s2306 + $0x28] sm:$0xff]
          %v2313 = vld [vmem:[%s2306 + $0x30] sm:$0xff]
          %v2314 = vld [vmem:[%s2306 + $0x38] sm:$0xff]
          %2315 = vst [vmem:[#allocation4] sm:$0xff] %v2307
          %2316 = vst [vmem:[#allocation4 + $0x18] sm:$0xff] %v2308
          %2317 = vst [vmem:[#allocation4 + $0x30] sm:$0xff] %v2309
          %2318 = vst [vmem:[#allocation4 + $0x48] sm:$0xff] %v2310
          %2319 = vst [vmem:[#allocation4 + $0x60] sm:$0xff] %v2311
          %2320 = vst [vmem:[#allocation4 + $0x78] sm:$0xff] %v2312
          %2321 = vst [vmem:[#allocation4 + $0x90] sm:$0xff] %v2313
          %2322 = vst [vmem:[#allocation4 + $0xa8] sm:$0xff] %v2314
          %s2323 = sadd.s32 %s2302, 32
          %s2324 = sshra.s32 %s2323, 4
          %s2325 = sand.u32 %s2323, 15
          %s2326 = smul.addr %s2324, 8
          %s2327 = scalar_lea.vmem [#allocation3], %s2326
          %v2328 = vld [vmem:[%s2327] sm:$0xff]
          %v2329 = vld [vmem:[%s2327 + $0x8] sm:$0xff]
          %v2330 = vld [vmem:[%s2327 + $0x10] sm:$0xff]
          %v2331 = vld [vmem:[%s2327 + $0x18] sm:$0xff]
          %v2332 = vld [vmem:[%s2327 + $0x20] sm:$0xff]
          %v2333 = vld [vmem:[%s2327 + $0x28] sm:$0xff]
          %v2334 = vld [vmem:[%s2327 + $0x30] sm:$0xff]
          %v2335 = vld [vmem:[%s2327 + $0x38] sm:$0xff]
          %2336 = vst [vmem:[#allocation4 + $0x8] sm:$0xff] %v2328
          %2337 = vst [vmem:[#allocation4 + $0x20] sm:$0xff] %v2329
          %2338 = vst [vmem:[#allocation4 + $0x38] sm:$0xff] %v2330
          %2339 = vst [vmem:[#allocation4 + $0x50] sm:$0xff] %v2331
          %2340 = vst [vmem:[#allocation4 + $0x68] sm:$0xff] %v2332
          %2341 = vst [vmem:[#allocation4 + $0x80] sm:$0xff] %v2333
          %2342 = vst [vmem:[#allocation4 + $0x98] sm:$0xff] %v2334
          %2343 = vst [vmem:[#allocation4 + $0xb0] sm:$0xff] %v2335
          %s2344 = sadd.s32 %s2302, 64
          %s2345 = sshra.s32 %s2344, 4
          %s2346 = sand.u32 %s2344, 15
          %s2347 = smul.addr %s2345, 8
          %s2348 = scalar_lea.vmem [#allocation3], %s2347
          %v2349 = vld [vmem:[%s2348] sm:$0xff]
          %v2350 = vld [vmem:[%s2348 + $0x8] sm:$0xff]
          %v2351 = vld [vmem:[%s2348 + $0x10] sm:$0xff]
          %v2352 = vld [vmem:[%s2348 + $0x18] sm:$0xff]
          %v2353 = vld [vmem:[%s2348 + $0x20] sm:$0xff]
          %v2354 = vld [vmem:[%s2348 + $0x28] sm:$0xff]
          %v2355 = vld [vmem:[%s2348 + $0x30] sm:$0xff]
          %v2356 = vld [vmem:[%s2348 + $0x38] sm:$0xff]
          %2357 = vst [vmem:[#allocation4 + $0x10] sm:$0xff] %v2349
          %2358 = vst [vmem:[#allocation4 + $0x28] sm:$0xff] %v2350
          %2359 = vst [vmem:[#allocation4 + $0x40] sm:$0xff] %v2351
          %2360 = vst [vmem:[#allocation4 + $0x58] sm:$0xff] %v2352
          %2361 = vst [vmem:[#allocation4 + $0x70] sm:$0xff] %v2353
          %2362 = vst [vmem:[#allocation4 + $0x88] sm:$0xff] %v2354
          %2363 = vst [vmem:[#allocation4 + $0xa0] sm:$0xff] %v2355
          %2364 = vst [vmem:[#allocation4 + $0xb8] sm:$0xff] %v2356
          %v2365 = vld [vmem:[#allocation4] sm:$0xff]
          %v2366 = vld [vmem:[#allocation4 + $0x8] sm:$0xff]
          %v2367 = vld [vmem:[#allocation4 + $0x10] sm:$0xff]
          %v2368 = vld [vmem:[#allocation4 + $0x18] sm:$0xff]
          %v2369 = vld [vmem:[#allocation4 + $0x20] sm:$0xff]
          %v2370 = vld [vmem:[#allocation4 + $0x28] sm:$0xff]
          %v2371 = vld [vmem:[#allocation4 + $0x30] sm:$0xff]
          %v2372 = vld [vmem:[#allocation4 + $0x38] sm:$0xff]
          %v2373 = vld [vmem:[#allocation4 + $0x40] sm:$0xff]
          %v2374 = vld [vmem:[#allocation4 + $0x48] sm:$0xff]
          %v2375 = vld [vmem:[#allocation4 + $0x50] sm:$0xff]
          %v2376 = vld [vmem:[#allocation4 + $0x58] sm:$0xff]
          %v2377 = vld [vmem:[#allocation4 + $0x60] sm:$0xff]
          %v2378 = vld [vmem:[#allocation4 + $0x68] sm:$0xff]
          %v2379 = vld [vmem:[#allocation4 + $0x70] sm:$0xff]
          %v2380 = vld [vmem:[#allocation4 + $0x78] sm:$0xff]
          %v2381 = vld [vmem:[#allocation4 + $0x80] sm:$0xff]
          %v2382 = vld [vmem:[#allocation4 + $0x88] sm:$0xff]
          %v2383 = vld [vmem:[#allocation4 + $0x90] sm:$0xff]
          %v2384 = vld [vmem:[#allocation4 + $0x98] sm:$0xff]
          %v2385 = vld [vmem:[#allocation4 + $0xa0] sm:$0xff]
          %v2386 = vld [vmem:[#allocation4 + $0xa8] sm:$0xff]
          %v2387 = vld [vmem:[#allocation4 + $0xb0] sm:$0xff]
          %v2388 = vld [vmem:[#allocation4 + $0xb8] sm:$0xff]
          %v2389 = vld [vmem:[#allocation10] sm:$0xf]
          %v2390 = vld [vmem:[#allocation10 + $0x4] sm:$0xf]
          %v2391 = vld [vmem:[#allocation10 + $0x8] sm:$0xf]
          %v2392 = vld [vmem:[#allocation10 + $0xc] sm:$0xf]
          %v2393 = vld [vmem:[#allocation10 + $0x10] sm:$0xf]
          %v2394 = vld [vmem:[#allocation10 + $0x14] sm:$0xf]
          %v2395 = vld [vmem:[#allocation10 + $0x18] sm:$0xf]
          %v2396 = vld [vmem:[#allocation10 + $0x1c] sm:$0xf]
          %v2397 = vld [vmem:[#allocation10 + $0x20] sm:$0xf]
          %v2398 = vld [vmem:[#allocation10 + $0x24] sm:$0xf]
          %v2399 = vld [vmem:[#allocation10 + $0x28] sm:$0xf]
          %v2400 = vld [vmem:[#allocation10 + $0x2c] sm:$0xf]
          %v2401 = vld [vmem:[#allocation10 + $0x30] sm:$0xf]
          %v2402 = vld [vmem:[#allocation10 + $0x34] sm:$0xf]
          %v2403 = vld [vmem:[#allocation10 + $0x38] sm:$0xf]
          %v2404 = vld [vmem:[#allocation10 + $0x3c] sm:$0xf]
          %v2405 = vld [vmem:[#allocation10 + $0x40] sm:$0xf]
          %v2406 = vld [vmem:[#allocation10 + $0x44] sm:$0xf]
          %v2407 = vld [vmem:[#allocation10 + $0x48] sm:$0xf]
          %v2408 = vld [vmem:[#allocation10 + $0x4c] sm:$0xf]
          %v2409 = vld [vmem:[#allocation10 + $0x50] sm:$0xf]
          %v2410 = vld [vmem:[#allocation10 + $0x54] sm:$0xf]
          %v2411 = vld [vmem:[#allocation10 + $0x58] sm:$0xf]
          %v2412 = vld [vmem:[#allocation10 + $0x5c] sm:$0xf]
          %v2413 = vld [vmem:[#allocation10 + $0x60] sm:$0xf]
          %v2414 = vld [vmem:[#allocation10 + $0x64] sm:$0xf]
          %v2415 = vld [vmem:[#allocation10 + $0x68] sm:$0xf]
          %v2416 = vld [vmem:[#allocation10 + $0x6c] sm:$0xf]
          %v2417 = vld [vmem:[#allocation10 + $0x70] sm:$0xf]
          %v2418 = vld [vmem:[#allocation10 + $0x74] sm:$0xf]
          %v2419 = vld [vmem:[#allocation10 + $0x78] sm:$0xf]
          %v2420 = vld [vmem:[#allocation10 + $0x7c] sm:$0xf]
          %v2421 = vld [vmem:[#allocation10 + $0x80] sm:$0xf]
          %v2422 = vld [vmem:[#allocation10 + $0x84] sm:$0xf]
          %v2423 = vld [vmem:[#allocation10 + $0x88] sm:$0xf]
          %v2424 = vld [vmem:[#allocation10 + $0x8c] sm:$0xf]
          %v2425 = vld [vmem:[#allocation10 + $0x90] sm:$0xf]
          %v2426 = vld [vmem:[#allocation10 + $0x94] sm:$0xf]
          %v2427 = vld [vmem:[#allocation10 + $0x98] sm:$0xf]
          %v2428 = vld [vmem:[#allocation10 + $0x9c] sm:$0xf]
          %v2429 = vld [vmem:[#allocation10 + $0xa0] sm:$0xf]
          %v2430 = vld [vmem:[#allocation10 + $0xa4] sm:$0xf]
          %v2431 = vld [vmem:[#allocation10 + $0xa8] sm:$0xf]
          %v2432 = vld [vmem:[#allocation10 + $0xac] sm:$0xf]
          %v2433 = vld [vmem:[#allocation10 + $0xb0] sm:$0xf]
          %v2434 = vld [vmem:[#allocation10 + $0xb4] sm:$0xf]
          %v2435 = vld [vmem:[#allocation10 + $0xb8] sm:$0xf]
          %v2436 = vld [vmem:[#allocation10 + $0xbc] sm:$0xf]
          %v2485 = vunpack.c.l.b16 %v2389
          %v2486 = vunpack.c.l.b16 %v2390
          %v2487 = vunpack.c.l.b16 %v2391
          %v2488 = vunpack.c.l.b16 %v2392
          %v2489 = vunpack.c.l.b16 %v2393
          %v2490 = vunpack.c.l.b16 %v2394
          %v2491 = vunpack.c.l.b16 %v2395
          %v2492 = vunpack.c.l.b16 %v2396
          %v2493 = vunpack.c.l.b16 %v2397
          %v2494 = vunpack.c.l.b16 %v2398
          %v2495 = vunpack.c.l.b16 %v2399
          %v2496 = vunpack.c.l.b16 %v2400
          %v2497 = vunpack.c.l.b16 %v2401
          %v2498 = vunpack.c.l.b16 %v2402
          %v2499 = vunpack.c.l.b16 %v2403
          %v2500 = vunpack.c.l.b16 %v2404
          %v2501 = vunpack.c.l.b16 %v2405
          %v2502 = vunpack.c.l.b16 %v2406
          %v2503 = vunpack.c.l.b16 %v2407
          %v2504 = vunpack.c.l.b16 %v2408
          %v2505 = vunpack.c.l.b16 %v2409
          %v2506 = vunpack.c.l.b16 %v2410
          %v2507 = vunpack.c.l.b16 %v2411
          %v2508 = vunpack.c.l.b16 %v2412
          %v2509 = vunpack.c.l.b16 %v2413
          %v2510 = vunpack.c.l.b16 %v2414
          %v2511 = vunpack.c.l.b16 %v2415
          %v2512 = vunpack.c.l.b16 %v2416
          %v2513 = vunpack.c.l.b16 %v2417
          %v2514 = vunpack.c.l.b16 %v2418
          %v2515 = vunpack.c.l.b16 %v2419
          %v2516 = vunpack.c.l.b16 %v2420
          %v2517 = vunpack.c.l.b16 %v2421
          %v2518 = vunpack.c.l.b16 %v2422
          %v2519 = vunpack.c.l.b16 %v2423
          %v2520 = vunpack.c.l.b16 %v2424
          %v2521 = vunpack.c.l.b16 %v2425
          %v2522 = vunpack.c.l.b16 %v2426
          %v2523 = vunpack.c.l.b16 %v2427
          %v2524 = vunpack.c.l.b16 %v2428
          %v2525 = vunpack.c.l.b16 %v2429
          %v2526 = vunpack.c.l.b16 %v2430
          %v2527 = vunpack.c.l.b16 %v2431
          %v2528 = vunpack.c.l.b16 %v2432
          %v2529 = vunpack.c.l.b16 %v2433
          %v2530 = vunpack.c.l.b16 %v2434
          %v2531 = vunpack.c.l.b16 %v2435
          %v2532 = vunpack.c.l.b16 %v2436
          %v2533 = vpack.c.b16 %v2486, %v2485
          %v2534 = vpack.c.b16 %v2488, %v2487
          %v2535 = vpack.c.b16 %v2490, %v2489
          %v2536 = vpack.c.b16 %v2492, %v2491
          %v2537 = vpack.c.b16 %v2494, %v2493
          %v2538 = vpack.c.b16 %v2496, %v2495
          %v2539 = vpack.c.b16 %v2498, %v2497
          %v2540 = vpack.c.b16 %v2500, %v2499
          %v2541 = vpack.c.b16 %v2502, %v2501
          %v2542 = vpack.c.b16 %v2504, %v2503
          %v2543 = vpack.c.b16 %v2506, %v2505
          %v2544 = vpack.c.b16 %v2508, %v2507
          %v2545 = vpack.c.b16 %v2510, %v2509
          %v2546 = vpack.c.b16 %v2512, %v2511
          %v2547 = vpack.c.b16 %v2514, %v2513
          %v2548 = vpack.c.b16 %v2516, %v2515
          %v2549 = vpack.c.b16 %v2518, %v2517
          %v2550 = vpack.c.b16 %v2520, %v2519
          %v2551 = vpack.c.b16 %v2522, %v2521
          %v2552 = vpack.c.b16 %v2524, %v2523
          %v2553 = vpack.c.b16 %v2526, %v2525
          %v2554 = vpack.c.b16 %v2528, %v2527
          %v2555 = vpack.c.b16 %v2530, %v2529
          %v2556 = vpack.c.b16 %v2532, %v2531
          %2581 = vmatprep.subr.bf16.mxu0 0
          %2582 = vmatpush1.bf16.msra.mxu0 %v2533
          %2583 = vmatprep.subr.bf16.mxu0 0
          %2584 = vmatpush1.bf16.msra.mxu0 %v2534
          %2585 = vmatprep.subr.bf16.mxu0 0
          %2586 = vmatpush1.bf16.msra.mxu0 %v2535
          %2587 = vmatprep.subr.bf16.mxu0 0
          %2588 = vmatpush1.bf16.msra.mxu0 %v2536
          %2589 = vmatprep.subr.bf16.mxu0 0
          %2590 = vmatpush1.bf16.msra.mxu0 %v2537
          %2591 = vmatprep.subr.bf16.mxu0 0
          %2592 = vmatpush1.bf16.msra.mxu0 %v2538
          %2593 = vmatprep.subr.bf16.mxu0 0
          %2594 = vmatpush1.bf16.msra.mxu0 %v2539
          %2595 = vmatprep.subr.bf16.mxu0 0
          %2596 = vmatpush1.bf16.msra.mxu0 %v2540
          %2597 = vmatprep.subr.bf16.mxu0 0
          %2598 = vmatpush1.bf16.msra.mxu0 %v2541
          %2599 = vmatprep.subr.bf16.mxu0 0
          %2600 = vmatpush1.bf16.msra.mxu0 %v2542
          %2601 = vmatprep.subr.bf16.mxu0 0
          %2602 = vmatpush1.bf16.msra.mxu0 %v2543
          %2603 = vmatprep.subr.bf16.mxu0 0
          %2604 = vmatpush1.bf16.msra.mxu0 %v2544
          %2605 = vmatprep.subr.bf16.mxu0 0
          %2606 = vmatpush1.bf16.msra.mxu0 %v2545
          %2607 = vmatprep.subr.bf16.mxu0 0
          %2608 = vmatpush1.bf16.msra.mxu0 %v2546
          %2609 = vmatprep.subr.bf16.mxu0 0
          %2610 = vmatpush1.bf16.msra.mxu0 %v2547
          %2611 = vmatprep.subr.bf16.mxu0 0
          %2612 = vmatpush1.bf16.msra.mxu0 %v2548
          %2613 = vmatprep.mubr.bf16.mxu0 %v2366
          %2614 = vmatmul.mubr.bf16.gmra.mrb[0].mxu0 %v2365
          %v2615 = vpop.f32.mrb[0].mxu0
          %v2616 = vadd.f32 0.0, %v2615
          %v2617 = vpop.f32.mrb[0].mxu0
          %v2618 = vpop.f32.mrb[0].mxu0
          %v2619 = vadd.f32 0.0, %v2618
          %v2620 = vpop.f32.mrb[0].mxu0
          %2621 = vmatprep.mubr.bf16.mxu0 %v2369
          %2622 = vmatmul.mubr.bf16.gmra.mrb[0].mxu0 %v2368
          %v2623 = vpop.f32.mrb[0].mxu0
          %v2624 = vadd.f32 0.0, %v2623
          %v2625 = vpop.f32.mrb[0].mxu0
          %v2626 = vpop.f32.mrb[0].mxu0
          %v2627 = vadd.f32 0.0, %v2626
          %v2628 = vpop.f32.mrb[0].mxu0
          %2629 = vmatprep.mubr.bf16.mxu0 %v2372
          %2630 = vmatmul.mubr.bf16.gmra.mrb[0].mxu0 %v2371
          %v2631 = vpop.f32.mrb[0].mxu0
          %v2632 = vadd.f32 0.0, %v2631
          %v2633 = vpop.f32.mrb[0].mxu0
          %v2634 = vpop.f32.mrb[0].mxu0
          %v2635 = vadd.f32 0.0, %v2634
          %v2636 = vpop.f32.mrb[0].mxu0
          %2637 = vmatprep.mubr.bf16.mxu0 %v2375
          %2638 = vmatmul.mubr.bf16.gmra.mrb[0].mxu0 %v2374
          %v2639 = vpop.f32.mrb[0].mxu0
          %v2640 = vadd.f32 0.0, %v2639
          %v2641 = vpop.f32.mrb[0].mxu0
          %v2642 = vpop.f32.mrb[0].mxu0
          %v2643 = vadd.f32 0.0, %v2642
          %v2644 = vpop.f32.mrb[0].mxu0
          %2645 = vmatprep.mubr.bf16.mxu0 %v2378
          %2646 = vmatmul.mubr.bf16.gmra.mrb[0].mxu0 %v2377
          %v2647 = vpop.f32.mrb[0].mxu0
          %v2648 = vadd.f32 0.0, %v2647
          %v2649 = vpop.f32.mrb[0].mxu0
          %v2650 = vpop.f32.mrb[0].mxu0
          %v2651 = vadd.f32 0.0, %v2650
          %v2652 = vpop.f32.mrb[0].mxu0
          %2653 = vmatprep.mubr.bf16.mxu0 %v2381
          %2654 = vmatmul.mubr.bf16.gmra.mrb[0].mxu0 %v2380
          %v2655 = vpop.f32.mrb[0].mxu0
          %v2656 = vadd.f32 0.0, %v2655
          %v2657 = vpop.f32.mrb[0].mxu0
          %v2658 = vpop.f32.mrb[0].mxu0
          %v2659 = vadd.f32 0.0, %v2658
          %v2660 = vpop.f32.mrb[0].mxu0
          %2661 = vmatprep.mubr.bf16.mxu0 %v2384
          %2662 = vmatmul.mubr.bf16.gmra.mrb[0].mxu0 %v2383
          %v2663 = vpop.f32.mrb[0].mxu0
          %v2664 = vadd.f32 0.0, %v2663
          %v2665 = vpop.f32.mrb[0].mxu0
          %v2666 = vpop.f32.mrb[0].mxu0
          %v2667 = vadd.f32 0.0, %v2666
          %v2668 = vpop.f32.mrb[0].mxu0
          %2669 = vmatprep.mubr.bf16.mxu0 %v2387
          %2670 = vmatmul.mubr.bf16.gmra.mrb[0].mxu0 %v2386
          %v2671 = vpop.f32.mrb[0].mxu0
          %v2672 = vadd.f32 0.0, %v2671
          %v2673 = vpop.f32.mrb[0].mxu0
          %v2674 = vpop.f32.mrb[0].mxu0
          %v2675 = vadd.f32 0.0, %v2674
          %v2676 = vpop.f32.mrb[0].mxu0
          %2677 = vdwg.mxu0
          %2678 = vmatprep.subr.bf16.mxu0 0
          %2679 = vmatpush1.bf16.msra.mxu0 %v2549
          %2680 = vmatprep.subr.bf16.mxu0 0
          %2681 = vmatpush1.bf16.msra.mxu0 %v2550
          %2682 = vmatprep.subr.bf16.mxu0 0
          %2683 = vmatpush1.bf16.msra.mxu0 %v2551
          %2684 = vmatprep.subr.bf16.mxu0 0
          %2685 = vmatpush1.bf16.msra.mxu0 %v2552
          %2686 = vmatprep.subr.bf16.mxu0 0
          %2687 = vmatpush1.bf16.msra.mxu0 %v2553
          %2688 = vmatprep.subr.bf16.mxu0 0
          %2689 = vmatpush1.bf16.msra.mxu0 %v2554
          %2690 = vmatprep.subr.bf16.mxu0 0
          %2691 = vmatpush1.bf16.msra.mxu0 %v2555
          %2692 = vmatprep.subr.bf16.mxu0 0
          %2693 = vmatpush1.bf16.msra.mxu0 %v2556
          %2694 = vmatprep.subr.bf16.mxu0 0
          %2695 = vmatpush1.bf16.msra.mxu0 0
          %2696 = vmatprep.subr.bf16.mxu0 0
          %2697 = vmatpush1.bf16.msra.mxu0 0
          %2698 = vmatprep.subr.bf16.mxu0 0
          %2699 = vmatpush1.bf16.msra.mxu0 0
          %2700 = vmatprep.subr.bf16.mxu0 0
          %2701 = vmatpush1.bf16.msra.mxu0 0
          %2702 = vmatprep.subr.bf16.mxu0 0
          %2703 = vmatpush1.bf16.msra.mxu0 0
          %2704 = vmatprep.subr.bf16.mxu0 0
          %2705 = vmatpush1.bf16.msra.mxu0 0
          %2706 = vmatprep.subr.bf16.mxu0 0
          %2707 = vmatpush1.bf16.msra.mxu0 0
          %2708 = vmatprep.subr.bf16.mxu0 0
          %2709 = vmatpush1.bf16.msra.mxu0 0
          %2710 = vmatprep.mubr.bf16.mxu0 0
          %2711 = vmatmul.mubr.bf16.gmra.mrb[0].mxu0 %v2367
          %v2712 = vpop.f32.mrb[0].mxu0
          %v2713 = vadd.f32 %v2616, %v2712
          %v2714 = vpop.f32.mrb[0].mxu0
          %v2715 = vpop.f32.mrb[0].mxu0
          %v2716 = vadd.f32 %v2619, %v2715
          %v2717 = vpop.f32.mrb[0].mxu0
          %2718 = vmatprep.mubr.bf16.mxu0 0
          %2719 = vmatmul.mubr.bf16.gmra.mrb[0].mxu0 %v2370
          %v2720 = vpop.f32.mrb[0].mxu0
          %v2721 = vadd.f32 %v2624, %v2720
          %v2722 = vpop.f32.mrb[0].mxu0
          %v2723 = vpop.f32.mrb[0].mxu0
          %v2724 = vadd.f32 %v2627, %v2723
          %v2725 = vpop.f32.mrb[0].mxu0
          %2726 = vmatprep.mubr.bf16.mxu0 0
          %2727 = vmatmul.mubr.bf16.gmra.mrb[0].mxu0 %v2373
          %v2728 = vpop.f32.mrb[0].mxu0
          %v2729 = vadd.f32 %v2632, %v2728
          %v2730 = vpop.f32.mrb[0].mxu0
          %v2731 = vpop.f32.mrb[0].mxu0
          %v2732 = vadd.f32 %v2635, %v2731
          %v2733 = vpop.f32.mrb[0].mxu0
          %2734 = vmatprep.mubr.bf16.mxu0 0
          %2735 = vmatmul.mubr.bf16.gmra.mrb[0].mxu0 %v2376
          %v2736 = vpop.f32.mrb[0].mxu0
          %v2737 = vadd.f32 %v2640, %v2736
          %v2738 = vpop.f32.mrb[0].mxu0
          %v2739 = vpop.f32.mrb[0].mxu0
          %v2740 = vadd.f32 %v2643, %v2739
          %v2741 = vpop.f32.mrb[0].mxu0
          %2742 = vmatprep.mubr.bf16.mxu0 0
          %2743 = vmatmul.mubr.bf16.gmra.mrb[0].mxu0 %v2379
          %v2744 = vpop.f32.mrb[0].mxu0
          %v2745 = vadd.f32 %v2648, %v2744
          %v2746 = vpop.f32.mrb[0].mxu0
          %v2747 = vpop.f32.mrb[0].mxu0
          %v2748 = vadd.f32 %v2651, %v2747
          %v2749 = vpop.f32.mrb[0].mxu0
          %2750 = vmatprep.mubr.bf16.mxu0 0
          %2751 = vmatmul.mubr.bf16.gmra.mrb[0].mxu0 %v2382
          %v2752 = vpop.f32.mrb[0].mxu0
          %v2753 = vadd.f32 %v2656, %v2752
          %v2754 = vpop.f32.mrb[0].mxu0
          %v2755 = vpop.f32.mrb[0].mxu0
          %v2756 = vadd.f32 %v2659, %v2755
          %v2757 = vpop.f32.mrb[0].mxu0
          %2758 = vmatprep.mubr.bf16.mxu0 0
          %2759 = vmatmul.mubr.bf16.gmra.mrb[0].mxu0 %v2385
          %v2760 = vpop.f32.mrb[0].mxu0
          %v2761 = vadd.f32 %v2664, %v2760
          %v2762 = vpop.f32.mrb[0].mxu0
          %v2763 = vpop.f32.mrb[0].mxu0
          %v2764 = vadd.f32 %v2667, %v2763
          %v2765 = vpop.f32.mrb[0].mxu0
          %2766 = vmatprep.mubr.bf16.mxu0 0
          %2767 = vmatmul.mubr.bf16.gmra.mrb[0].mxu0 %v2388
          %v2768 = vpop.f32.mrb[0].mxu0
          %v2769 = vadd.f32 %v2672, %v2768
          %v2770 = vpop.f32.mrb[0].mxu0
          %v2771 = vpop.f32.mrb[0].mxu0
          %v2772 = vadd.f32 %v2675, %v2771
          %v2773 = vpop.f32.mrb[0].mxu0
          %2774 = vdwg.mxu0
          %v2775 = vrot.slane %v2713, 7
          %v2776 = vrot.slane %v2716, 7
          %v2777 = vrot.slane %v2721, 7
          %v2778 = vrot.slane %v2724, 7
          %v2779 = vrot.slane %v2729, 7
          %v2780 = vrot.slane %v2732, 7
          %v2781 = vrot.slane %v2737, 7
          %v2782 = vrot.slane %v2740, 7
          %v2783 = vrot.slane %v2745, 7
          %v2784 = vrot.slane %v2748, 7
          %v2785 = vrot.slane %v2753, 7
          %v2786 = vrot.slane %v2756, 7
          %v2787 = vrot.slane %v2761, 7
          %v2788 = vrot.slane %v2764, 7
          %v2789 = vrot.slane %v2769, 7
          %v2790 = vrot.slane %v2772, 7
          %vm2791 = vcmp.lt.s32.totalorder %v274, 1
          %v2792 = vsel %vm2791, %v2788, %v2789
          %v2793 = vsel %vm2791, %v2787, %v2788
          %v2794 = vsel %vm2791, %v2786, %v2787
          %v2795 = vsel %vm2791, %v2784, %v2785
          %v2796 = vsel %vm2791, %v2783, %v2784
          %v2797 = vsel %vm2791, %v2782, %v2783
          %v2798 = vsel %vm2791, %v2780, %v2781
          %v2799 = vsel %vm2791, %v2779, %v2780
          %v2800 = vsel %vm2791, %v2778, %v2779
          %v2801 = vsel %vm2791, %v2776, %v2777
          %v2802 = vsel %vm2791, %v2775, %v2776
          %v2803 = vsel %vm2791, %v2790, %v2775
          %v2804 = vadd.f32 %v2803, 0.0
          %v2805 = vadd.f32 %v2802, 0.0
          %v2806 = vadd.f32 %v2801, 0.0
          %v2807 = vadd.f32 %v2800, 0.0
          %v2808 = vadd.f32 %v2799, 0.0
          %v2809 = vadd.f32 %v2798, 0.0
          %v2810 = vadd.f32 %v2797, 0.0
          %v2811 = vadd.f32 %v2796, 0.0
          %v2812 = vadd.f32 %v2795, 0.0
          %v2813 = vadd.f32 %v2794, 0.0
          %v2814 = vadd.f32 %v2793, 0.0
          %v2815 = vadd.f32 %v2792, 0.0
          %v2816 = vld [vmem:[#allocation10 + $0xc0] sm:$0xf]
          %v2817 = vld [vmem:[#allocation10 + $0xc4] sm:$0xf]
          %v2818 = vld [vmem:[#allocation10 + $0xc8] sm:$0xf]
          %v2819 = vld [vmem:[#allocation10 + $0xcc] sm:$0xf]
          %v2820 = vld [vmem:[#allocation10 + $0xd0] sm:$0xf]
          %v2821 = vld [vmem:[#allocation10 + $0xd4] sm:$0xf]
          %v2822 = vld [vmem:[#allocation10 + $0xd8] sm:$0xf]
          %v2823 = vld [vmem:[#allocation10 + $0xdc] sm:$0xf]
          %v2824 = vld [vmem:[#allocation10 + $0xe0] sm:$0xf]
          %v2825 = vld [vmem:[#allocation10 + $0xe4] sm:$0xf]
          %v2826 = vld [vmem:[#allocation10 + $0xe8] sm:$0xf]
          %v2827 = vld [vmem:[#allocation10 + $0xec] sm:$0xf]
          %v2828 = vld [vmem:[#allocation10 + $0xf0] sm:$0xf]
          %v2829 = vld [vmem:[#allocation10 + $0xf4] sm:$0xf]
          %v2830 = vld [vmem:[#allocation10 + $0xf8] sm:$0xf]
          %v2831 = vld [vmem:[#allocation10 + $0xfc] sm:$0xf]
          %v2832 = vld [vmem:[#allocation10 + $0x100] sm:$0xf]
          %v2833 = vld [vmem:[#allocation10 + $0x104] sm:$0xf]
          %v2834 = vld [vmem:[#allocation10 + $0x108] sm:$0xf]
          %v2835 = vld [vmem:[#allocation10 + $0x10c] sm:$0xf]
          %v2836 = vld [vmem:[#allocation10 + $0x110] sm:$0xf]
          %v2837 = vld [vmem:[#allocation10 + $0x114] sm:$0xf]
          %v2838 = vld [vmem:[#allocation10 + $0x118] sm:$0xf]
          %v2839 = vld [vmem:[#allocation10 + $0x11c] sm:$0xf]
          %v2840 = vld [vmem:[#allocation10 + $0x120] sm:$0xf]
          %v2841 = vld [vmem:[#allocation10 + $0x124] sm:$0xf]
          %v2842 = vld [vmem:[#allocation10 + $0x128] sm:$0xf]
          %v2843 = vld [vmem:[#allocation10 + $0x12c] sm:$0xf]
          %v2844 = vld [vmem:[#allocation10 + $0x130] sm:$0xf]
          %v2845 = vld [vmem:[#allocation10 + $0x134] sm:$0xf]
          %v2846 = vld [vmem:[#allocation10 + $0x138] sm:$0xf]
          %v2847 = vld [vmem:[#allocation10 + $0x13c] sm:$0xf]
          %v2848 = vld [vmem:[#allocation10 + $0x140] sm:$0xf]
          %v2849 = vld [vmem:[#allocation10 + $0x144] sm:$0xf]
          %v2850 = vld [vmem:[#allocation10 + $0x148] sm:$0xf]
          %v2851 = vld [vmem:[#allocation10 + $0x14c] sm:$0xf]
          %v2852 = vld [vmem:[#allocation10 + $0x150] sm:$0xf]
          %v2853 = vld [vmem:[#allocation10 + $0x154] sm:$0xf]
          %v2854 = vld [vmem:[#allocation10 + $0x158] sm:$0xf]
          %v2855 = vld [vmem:[#allocation10 + $0x15c] sm:$0xf]
          %v2856 = vld [vmem:[#allocation10 + $0x160] sm:$0xf]
          %v2857 = vld [vmem:[#allocation10 + $0x164] sm:$0xf]
          %v2858 = vld [vmem:[#allocation10 + $0x168] sm:$0xf]
          %v2859 = vld [vmem:[#allocation10 + $0x16c] sm:$0xf]
          %v2860 = vld [vmem:[#allocation10 + $0x170] sm:$0xf]
          %v2861 = vld [vmem:[#allocation10 + $0x174] sm:$0xf]
          %v2862 = vld [vmem:[#allocation10 + $0x178] sm:$0xf]
          %v2863 = vld [vmem:[#allocation10 + $0x17c] sm:$0xf]
          %v2912 = vunpack.c.l.b16 %v2816
          %v2913 = vunpack.c.l.b16 %v2817
          %v2914 = vunpack.c.l.b16 %v2818
          %v2915 = vunpack.c.l.b16 %v2819
          %v2916 = vunpack.c.l.b16 %v2820
          %v2917 = vunpack.c.l.b16 %v2821
          %v2918 = vunpack.c.l.b16 %v2822
          %v2919 = vunpack.c.l.b16 %v2823
          %v2920 = vunpack.c.l.b16 %v2824
          %v2921 = vunpack.c.l.b16 %v2825
          %v2922 = vunpack.c.l.b16 %v2826
          %v2923 = vunpack.c.l.b16 %v2827
          %v2924 = vunpack.c.l.b16 %v2828
          %v2925 = vunpack.c.l.b16 %v2829
          %v2926 = vunpack.c.l.b16 %v2830
          %v2927 = vunpack.c.l.b16 %v2831
          %v2928 = vunpack.c.l.b16 %v2832
          %v2929 = vunpack.c.l.b16 %v2833
          %v2930 = vunpack.c.l.b16 %v2834
          %v2931 = vunpack.c.l.b16 %v2835
          %v2932 = vunpack.c.l.b16 %v2836
          %v2933 = vunpack.c.l.b16 %v2837
          %v2934 = vunpack.c.l.b16 %v2838
          %v2935 = vunpack.c.l.b16 %v2839
          %v2936 = vunpack.c.l.b16 %v2840
          %v2937 = vunpack.c.l.b16 %v2841
          %v2938 = vunpack.c.l.b16 %v2842
          %v2939 = vunpack.c.l.b16 %v2843
          %v2940 = vunpack.c.l.b16 %v2844
          %v2941 = vunpack.c.l.b16 %v2845
          %v2942 = vunpack.c.l.b16 %v2846
          %v2943 = vunpack.c.l.b16 %v2847
          %v2944 = vunpack.c.l.b16 %v2848
          %v2945 = vunpack.c.l.b16 %v2849
          %v2946 = vunpack.c.l.b16 %v2850
          %v2947 = vunpack.c.l.b16 %v2851
          %v2948 = vunpack.c.l.b16 %v2852
          %v2949 = vunpack.c.l.b16 %v2853
          %v2950 = vunpack.c.l.b16 %v2854
          %v2951 = vunpack.c.l.b16 %v2855
          %v2952 = vunpack.c.l.b16 %v2856
          %v2953 = vunpack.c.l.b16 %v2857
          %v2954 = vunpack.c.l.b16 %v2858
          %v2955 = vunpack.c.l.b16 %v2859
          %v2956 = vunpack.c.l.b16 %v2860
          %v2957 = vunpack.c.l.b16 %v2861
          %v2958 = vunpack.c.l.b16 %v2862
          %v2959 = vunpack.c.l.b16 %v2863
          %v2960 = vpack.c.b16 %v2913, %v2912
          %v2961 = vpack.c.b16 %v2915, %v2914
          %v2962 = vpack.c.b16 %v2917, %v2916
          %v2963 = vpack.c.b16 %v2919, %v2918
          %v2964 = vpack.c.b16 %v2921, %v2920
          %v2965 = vpack.c.b16 %v2923, %v2922
          %v2966 = vpack.c.b16 %v2925, %v2924
          %v2967 = vpack.c.b16 %v2927, %v2926
          %v2968 = vpack.c.b16 %v2929, %v2928
          %v2969 = vpack.c.b16 %v2931, %v2930
          %v2970 = vpack.c.b16 %v2933, %v2932
          %v2971 = vpack.c.b16 %v2935, %v2934
          %v2972 = vpack.c.b16 %v2937, %v2936
          %v2973 = vpack.c.b16 %v2939, %v2938
          %v2974 = vpack.c.b16 %v2941, %v2940
          %v2975 = vpack.c.b16 %v2943, %v2942
          %v2976 = vpack.c.b16 %v2945, %v2944
          %v2977 = vpack.c.b16 %v2947, %v2946
          %v2978 = vpack.c.b16 %v2949, %v2948
          %v2979 = vpack.c.b16 %v2951, %v2950
          %v2980 = vpack.c.b16 %v2953, %v2952
          %v2981 = vpack.c.b16 %v2955, %v2954
          %v2982 = vpack.c.b16 %v2957, %v2956
          %v2983 = vpack.c.b16 %v2959, %v2958
          %3008 = vmatprep.subr.bf16.mxu0 0
          %3009 = vmatpush1.bf16.msra.mxu0 %v2960
          %3010 = vmatprep.subr.bf16.mxu0 0
          %3011 = vmatpush1.bf16.msra.mxu0 %v2961
          %3012 = vmatprep.subr.bf16.mxu0 0
          %3013 = vmatpush1.bf16.msra.mxu0 %v2962
          %3014 = vmatprep.subr.bf16.mxu0 0
          %3015 = vmatpush1.bf16.msra.mxu0 %v2963
          %3016 = vmatprep.subr.bf16.mxu0 0
          %3017 = vmatpush1.bf16.msra.mxu0 %v2964
          %3018 = vmatprep.subr.bf16.mxu0 0
          %3019 = vmatpush1.bf16.msra.mxu0 %v2965
          %3020 = vmatprep.subr.bf16.mxu0 0
          %3021 = vmatpush1.bf16.msra.mxu0 %v2966
          %3022 = vmatprep.subr.bf16.mxu0 0
          %3023 = vmatpush1.bf16.msra.mxu0 %v2967
          %3024 = vmatprep.subr.bf16.mxu0 0
          %3025 = vmatpush1.bf16.msra.mxu0 %v2968
          %3026 = vmatprep.subr.bf16.mxu0 0
          %3027 = vmatpush1.bf16.msra.mxu0 %v2969
          %3028 = vmatprep.subr.bf16.mxu0 0
          %3029 = vmatpush1.bf16.msra.mxu0 %v2970
          %3030 = vmatprep.subr.bf16.mxu0 0
          %3031 = vmatpush1.bf16.msra.mxu0 %v2971
          %3032 = vmatprep.subr.bf16.mxu0 0
          %3033 = vmatpush1.bf16.msra.mxu0 %v2972
          %3034 = vmatprep.subr.bf16.mxu0 0
          %3035 = vmatpush1.bf16.msra.mxu0 %v2973
          %3036 = vmatprep.subr.bf16.mxu0 0
          %3037 = vmatpush1.bf16.msra.mxu0 %v2974
          %3038 = vmatprep.subr.bf16.mxu0 0
          %3039 = vmatpush1.bf16.msra.mxu0 %v2975
          %3040 = vmatprep.mubr.bf16.mxu0 %v2366
          %3041 = vmatmul.mubr.bf16.gmra.mrb[0].mxu0 %v2365
          %v3042 = vpop.f32.mrb[0].mxu0
          %v3043 = vadd.f32 0.0, %v3042
          %v3044 = vpop.f32.mrb[0].mxu0
          %v3045 = vpop.f32.mrb[0].mxu0
          %v3046 = vadd.f32 0.0, %v3045
          %v3047 = vpop.f32.mrb[0].mxu0
          %3048 = vmatprep.mubr.bf16.mxu0 %v2369
          %3049 = vmatmul.mubr.bf16.gmra.mrb[0].mxu0 %v2368
          %v3050 = vpop.f32.mrb[0].mxu0
          %v3051 = vadd.f32 0.0, %v3050
          %v3052 = vpop.f32.mrb[0].mxu0
          %v3053 = vpop.f32.mrb[0].mxu0
          %v3054 = vpop.f32.mrb[0].mxu0
          %3055 = vmatprep.mubr.bf16.mxu0 %v2372
          %3056 = vmatmul.mubr.bf16.gmra.mrb[0].mxu0 %v2371
          %v3057 = vpop.f32.mrb[0].mxu0
          %v3058 = vadd.f32 0.0, %v3057
          %v3059 = vpop.f32.mrb[0].mxu0
          %v3060 = vpop.f32.mrb[0].mxu0
          %v3061 = vadd.f32 0.0, %v3060
          %v3062 = vpop.f32.mrb[0].mxu0
          %3063 = vmatprep.mubr.bf16.mxu0 %v2375
          %3064 = vmatmul.mubr.bf16.gmra.mrb[0].mxu0 %v2374
          %v3065 = vpop.f32.mrb[0].mxu0
          %v3066 = vadd.f32 0.0, %v3065
          %v3067 = vpop.f32.mrb[0].mxu0
          %v3068 = vpop.f32.mrb[0].mxu0
          %v3069 = vpop.f32.mrb[0].mxu0
          %3070 = vmatprep.mubr.bf16.mxu0 %v2378
          %3071 = vmatmul.mubr.bf16.gmra.mrb[0].mxu0 %v2377
          %v3072 = vpop.f32.mrb[0].mxu0
          %v3073 = vadd.f32 0.0, %v3072
          %v3074 = vpop.f32.mrb[0].mxu0
          %v3075 = vpop.f32.mrb[0].mxu0
          %v3076 = vadd.f32 0.0, %v3075
          %v3077 = vpop.f32.mrb[0].mxu0
          %3078 = vmatprep.mubr.bf16.mxu0 %v2381
          %3079 = vmatmul.mubr.bf16.gmra.mrb[0].mxu0 %v2380
          %v3080 = vpop.f32.mrb[0].mxu0
          %v3081 = vadd.f32 0.0, %v3080
          %v3082 = vpop.f32.mrb[0].mxu0
          %v3083 = vpop.f32.mrb[0].mxu0
          %v3084 = vpop.f32.mrb[0].mxu0
          %3085 = vmatprep.mubr.bf16.mxu0 %v2384
          %3086 = vmatmul.mubr.bf16.gmra.mrb[0].mxu0 %v2383
          %v3087 = vpop.f32.mrb[0].mxu0
          %v3088 = vadd.f32 0.0, %v3087
          %v3089 = vpop.f32.mrb[0].mxu0
          %v3090 = vpop.f32.mrb[0].mxu0
          %v3091 = vadd.f32 0.0, %v3090
          %v3092 = vpop.f32.mrb[0].mxu0
          %3093 = vmatprep.mubr.bf16.mxu0 %v2387
          %3094 = vmatmul.mubr.bf16.gmra.mrb[0].mxu0 %v2386
          %v3095 = vpop.f32.mrb[0].mxu0
          %v3096 = vadd.f32 0.0, %v3095
          %v3097 = vpop.f32.mrb[0].mxu0
          %v3098 = vpop.f32.mrb[0].mxu0
          %v3099 = vpop.f32.mrb[0].mxu0
          %3100 = vdwg.mxu0
          %3101 = vmatprep.subr.bf16.mxu0 0
          %3102 = vmatpush1.bf16.msra.mxu0 %v2976
          %3103 = vmatprep.subr.bf16.mxu0 0
          %3104 = vmatpush1.bf16.msra.mxu0 %v2977
          %3105 = vmatprep.subr.bf16.mxu0 0
          %3106 = vmatpush1.bf16.msra.mxu0 %v2978
          %3107 = vmatprep.subr.bf16.mxu0 0
          %3108 = vmatpush1.bf16.msra.mxu0 %v2979
          %3109 = vmatprep.subr.bf16.mxu0 0
          %3110 = vmatpush1.bf16.msra.mxu0 %v2980
          %3111 = vmatprep.subr.bf16.mxu0 0
          %3112 = vmatpush1.bf16.msra.mxu0 %v2981
          %3113 = vmatprep.subr.bf16.mxu0 0
          %3114 = vmatpush1.bf16.msra.mxu0 %v2982
          %3115 = vmatprep.subr.bf16.mxu0 0
          %3116 = vmatpush1.bf16.msra.mxu0 %v2983
          %3117 = vmatprep.subr.bf16.mxu0 0
          %3118 = vmatpush1.bf16.msra.mxu0 0
          %3119 = vmatprep.subr.bf16.mxu0 0
          %3120 = vmatpush1.bf16.msra.mxu0 0
          %3121 = vmatprep.subr.bf16.mxu0 0
          %3122 = vmatpush1.bf16.msra.mxu0 0
          %3123 = vmatprep.subr.bf16.mxu0 0
          %3124 = vmatpush1.bf16.msra.mxu0 0
          %3125 = vmatprep.subr.bf16.mxu0 0
          %3126 = vmatpush1.bf16.msra.mxu0 0
          %3127 = vmatprep.subr.bf16.mxu0 0
          %3128 = vmatpush1.bf16.msra.mxu0 0
          %3129 = vmatprep.subr.bf16.mxu0 0
          %3130 = vmatpush1.bf16.msra.mxu0 0
          %3131 = vmatprep.subr.bf16.mxu0 0
          %3132 = vmatpush1.bf16.msra.mxu0 0
          %3133 = vmatprep.mubr.bf16.mxu0 0
          %3134 = vmatmul.mubr.bf16.gmra.mrb[0].mxu0 %v2367
          %v3135 = vpop.f32.mrb[0].mxu0
          %v3136 = vadd.f32 %v3043, %v3135
          %v3137 = vpop.f32.mrb[0].mxu0
          %v3138 = vpop.f32.mrb[0].mxu0
          %v3139 = vadd.f32 %v3046, %v3138
          %v3140 = vpop.f32.mrb[0].mxu0
          %3141 = vmatprep.mubr.bf16.mxu0 0
          %3142 = vmatmul.mubr.bf16.gmra.mrb[0].mxu0 %v2370
          %v3143 = vpop.f32.mrb[0].mxu0
          %v3144 = vadd.f32 %v3051, %v3143
          %v3145 = vpop.f32.mrb[0].mxu0
          %v3146 = vpop.f32.mrb[0].mxu0
          %v3147 = vpop.f32.mrb[0].mxu0
          %3148 = vmatprep.mubr.bf16.mxu0 0
          %3149 = vmatmul.mubr.bf16.gmra.mrb[0].mxu0 %v2373
          %v3150 = vpop.f32.mrb[0].mxu0
          %v3151 = vadd.f32 %v3058, %v3150
          %v3152 = vpop.f32.mrb[0].mxu0
          %v3153 = vpop.f32.mrb[0].mxu0
          %v3154 = vadd.f32 %v3061, %v3153
          %v3155 = vpop.f32.mrb[0].mxu0
          %3156 = vmatprep.mubr.bf16.mxu0 0
          %3157 = vmatmul.mubr.bf16.gmra.mrb[0].mxu0 %v2376
          %v3158 = vpop.f32.mrb[0].mxu0
          %v3159 = vadd.f32 %v3066, %v3158
          %v3160 = vpop.f32.mrb[0].mxu0
          %v3161 = vpop.f32.mrb[0].mxu0
          %v3162 = vpop.f32.mrb[0].mxu0
          %3163 = vmatprep.mubr.bf16.mxu0 0
          %3164 = vmatmul.mubr.bf16.gmra.mrb[0].mxu0 %v2379
          %v3165 = vpop.f32.mrb[0].mxu0
          %v3166 = vadd.f32 %v3073, %v3165
          %v3167 = vpop.f32.mrb[0].mxu0
          %v3168 = vpop.f32.mrb[0].mxu0
          %v3169 = vadd.f32 %v3076, %v3168
          %v3170 = vpop.f32.mrb[0].mxu0
          %3171 = vmatprep.mubr.bf16.mxu0 0
          %3172 = vmatmul.mubr.bf16.gmra.mrb[0].mxu0 %v2382
          %v3173 = vpop.f32.mrb[0].mxu0
          %v3174 = vadd.f32 %v3081, %v3173
          %v3175 = vpop.f32.mrb[0].mxu0
          %v3176 = vpop.f32.mrb[0].mxu0
          %v3177 = vpop.f32.mrb[0].mxu0
          %3178 = vmatprep.mubr.bf16.mxu0 0
          %3179 = vmatmul.mubr.bf16.gmra.mrb[0].mxu0 %v2385
          %v3180 = vpop.f32.mrb[0].mxu0
          %v3181 = vadd.f32 %v3088, %v3180
          %v3182 = vpop.f32.mrb[0].mxu0
          %v3183 = vpop.f32.mrb[0].mxu0
          %v3184 = vadd.f32 %v3091, %v3183
          %v3185 = vpop.f32.mrb[0].mxu0
          %3186 = vmatprep.mubr.bf16.mxu0 0
          %3187 = vmatmul.mubr.bf16.gmra.mrb[0].mxu0 %v2388
          %v3188 = vpop.f32.mrb[0].mxu0
          %v3189 = vadd.f32 %v3096, %v3188
          %v3190 = vpop.f32.mrb[0].mxu0
          %v3191 = vpop.f32.mrb[0].mxu0
          %v3192 = vpop.f32.mrb[0].mxu0
          %3193 = vdwg.mxu0
          %v3194 = vadd.f32 %v2804, %v3136
          %v3195 = vadd.f32 %v2805, %v3139
          %v3196 = vadd.f32 %v2806, %v3144
          %v3197 = vadd.f32 %v2807, %v3151
          %v3198 = vadd.f32 %v2808, %v3154
          %v3199 = vadd.f32 %v2809, %v3159
          %v3200 = vadd.f32 %v2810, %v3166
          %v3201 = vadd.f32 %v2811, %v3169
          %v3202 = vadd.f32 %v2812, %v3174
          %v3203 = vadd.f32 %v2813, %v3181
          %v3204 = vadd.f32 %v2814, %v3184
          %v3205 = vadd.f32 %v2815, %v3189
          %v3206 = vld [vmem:[#allocation10 + $0x180] sm:$0xf]
          %v3207 = vld [vmem:[#allocation10 + $0x184] sm:$0xf]
          %v3208 = vld [vmem:[#allocation10 + $0x188] sm:$0xf]
          %v3209 = vld [vmem:[#allocation10 + $0x18c] sm:$0xf]
          %v3210 = vld [vmem:[#allocation10 + $0x190] sm:$0xf]
          %v3211 = vld [vmem:[#allocation10 + $0x194] sm:$0xf]
          %v3212 = vld [vmem:[#allocation10 + $0x198] sm:$0xf]
          %v3213 = vld [vmem:[#allocation10 + $0x19c] sm:$0xf]
          %v3214 = vld [vmem:[#allocation10 + $0x1a0] sm:$0xf]
          %v3215 = vld [vmem:[#allocation10 + $0x1a4] sm:$0xf]
          %v3216 = vld [vmem:[#allocation10 + $0x1a8] sm:$0xf]
          %v3217 = vld [vmem:[#allocation10 + $0x1ac] sm:$0xf]
          %v3218 = vld [vmem:[#allocation10 + $0x1b0] sm:$0xf]
          %v3219 = vld [vmem:[#allocation10 + $0x1b4] sm:$0xf]
          %v3220 = vld [vmem:[#allocation10 + $0x1b8] sm:$0xf]
          %v3221 = vld [vmem:[#allocation10 + $0x1bc] sm:$0xf]
          %v3222 = vld [vmem:[#allocation10 + $0x1c0] sm:$0xf]
          %v3223 = vld [vmem:[#allocation10 + $0x1c4] sm:$0xf]
          %v3224 = vld [vmem:[#allocation10 + $0x1c8] sm:$0xf]
          %v3225 = vld [vmem:[#allocation10 + $0x1cc] sm:$0xf]
          %v3226 = vld [vmem:[#allocation10 + $0x1d0] sm:$0xf]
          %v3227 = vld [vmem:[#allocation10 + $0x1d4] sm:$0xf]
          %v3228 = vld [vmem:[#allocation10 + $0x1d8] sm:$0xf]
          %v3229 = vld [vmem:[#allocation10 + $0x1dc] sm:$0xf]
          %v3230 = vld [vmem:[#allocation10 + $0x1e0] sm:$0xf]
          %v3231 = vld [vmem:[#allocation10 + $0x1e4] sm:$0xf]
          %v3232 = vld [vmem:[#allocation10 + $0x1e8] sm:$0xf]
          %v3233 = vld [vmem:[#allocation10 + $0x1ec] sm:$0xf]
          %v3234 = vld [vmem:[#allocation10 + $0x1f0] sm:$0xf]
          %v3235 = vld [vmem:[#allocation10 + $0x1f4] sm:$0xf]
          %v3236 = vld [vmem:[#allocation10 + $0x1f8] sm:$0xf]
          %v3237 = vld [vmem:[#allocation10 + $0x1fc] sm:$0xf]
          %v3238 = vld [vmem:[#allocation10 + $0x200] sm:$0xf]
          %v3239 = vld [vmem:[#allocation10 + $0x204] sm:$0xf]
          %v3240 = vld [vmem:[#allocation10 + $0x208] sm:$0xf]
          %v3241 = vld [vmem:[#allocation10 + $0x20c] sm:$0xf]
          %v3242 = vld [vmem:[#allocation10 + $0x210] sm:$0xf]
          %v3243 = vld [vmem:[#allocation10 + $0x214] sm:$0xf]
          %v3244 = vld [vmem:[#allocation10 + $0x218] sm:$0xf]
          %v3245 = vld [vmem:[#allocation10 + $0x21c] sm:$0xf]
          %v3246 = vld [vmem:[#allocation10 + $0x220] sm:$0xf]
          %v3247 = vld [vmem:[#allocation10 + $0x224] sm:$0xf]
          %v3248 = vld [vmem:[#allocation10 + $0x228] sm:$0xf]
          %v3249 = vld [vmem:[#allocation10 + $0x22c] sm:$0xf]
          %v3250 = vld [vmem:[#allocation10 + $0x230] sm:$0xf]
          %v3251 = vld [vmem:[#allocation10 + $0x234] sm:$0xf]
          %v3252 = vld [vmem:[#allocation10 + $0x238] sm:$0xf]
          %v3253 = vld [vmem:[#allocation10 + $0x23c] sm:$0xf]
          %v3302 = vunpack.c.l.b16 %v3206
          %v3303 = vunpack.c.l.b16 %v3207
          %v3304 = vunpack.c.l.b16 %v3208
          %v3305 = vunpack.c.l.b16 %v3209
          %v3306 = vunpack.c.l.b16 %v3210
          %v3307 = vunpack.c.l.b16 %v3211
          %v3308 = vunpack.c.l.b16 %v3212
          %v3309 = vunpack.c.l.b16 %v3213
          %v3310 = vunpack.c.l.b16 %v3214
          %v3311 = vunpack.c.l.b16 %v3215
          %v3312 = vunpack.c.l.b16 %v3216
          %v3313 = vunpack.c.l.b16 %v3217
          %v3314 = vunpack.c.l.b16 %v3218
          %v3315 = vunpack.c.l.b16 %v3219
          %v3316 = vunpack.c.l.b16 %v3220
          %v3317 = vunpack.c.l.b16 %v3221
          %v3318 = vunpack.c.l.b16 %v3222
          %v3319 = vunpack.c.l.b16 %v3223
          %v3320 = vunpack.c.l.b16 %v3224
          %v3321 = vunpack.c.l.b16 %v3225
          %v3322 = vunpack.c.l.b16 %v3226
          %v3323 = vunpack.c.l.b16 %v3227
          %v3324 = vunpack.c.l.b16 %v3228
          %v3325 = vunpack.c.l.b16 %v3229
          %v3326 = vunpack.c.l.b16 %v3230
          %v3327 = vunpack.c.l.b16 %v3231
          %v3328 = vunpack.c.l.b16 %v3232
          %v3329 = vunpack.c.l.b16 %v3233
          %v3330 = vunpack.c.l.b16 %v3234
          %v3331 = vunpack.c.l.b16 %v3235
          %v3332 = vunpack.c.l.b16 %v3236
          %v3333 = vunpack.c.l.b16 %v3237
          %v3334 = vunpack.c.l.b16 %v3238
          %v3335 = vunpack.c.l.b16 %v3239
          %v3336 = vunpack.c.l.b16 %v3240
          %v3337 = vunpack.c.l.b16 %v3241
          %v3338 = vunpack.c.l.b16 %v3242
          %v3339 = vunpack.c.l.b16 %v3243
          %v3340 = vunpack.c.l.b16 %v3244
          %v3341 = vunpack.c.l.b16 %v3245
          %v3342 = vunpack.c.l.b16 %v3246
          %v3343 = vunpack.c.l.b16 %v3247
          %v3344 = vunpack.c.l.b16 %v3248
          %v3345 = vunpack.c.l.b16 %v3249
          %v3346 = vunpack.c.l.b16 %v3250
          %v3347 = vunpack.c.l.b16 %v3251
          %v3348 = vunpack.c.l.b16 %v3252
          %v3349 = vunpack.c.l.b16 %v3253
          %v3350 = vpack.c.b16 %v3303, %v3302
          %v3351 = vpack.c.b16 %v3305, %v3304
          %v3352 = vpack.c.b16 %v3307, %v3306
          %v3353 = vpack.c.b16 %v3309, %v3308
          %v3354 = vpack.c.b16 %v3311, %v3310
          %v3355 = vpack.c.b16 %v3313, %v3312
          %v3356 = vpack.c.b16 %v3315, %v3314
          %v3357 = vpack.c.b16 %v3317, %v3316
          %v3358 = vpack.c.b16 %v3319, %v3318
          %v3359 = vpack.c.b16 %v3321, %v3320
          %v3360 = vpack.c.b16 %v3323, %v3322
          %v3361 = vpack.c.b16 %v3325, %v3324
          %v3362 = vpack.c.b16 %v3327, %v3326
          %v3363 = vpack.c.b16 %v3329, %v3328
          %v3364 = vpack.c.b16 %v3331, %v3330
          %v3365 = vpack.c.b16 %v3333, %v3332
          %v3366 = vpack.c.b16 %v3335, %v3334
          %v3367 = vpack.c.b16 %v3337, %v3336
          %v3368 = vpack.c.b16 %v3339, %v3338
          %v3369 = vpack.c.b16 %v3341, %v3340
          %v3370 = vpack.c.b16 %v3343, %v3342
          %v3371 = vpack.c.b16 %v3345, %v3344
          %v3372 = vpack.c.b16 %v3347, %v3346
          %v3373 = vpack.c.b16 %v3349, %v3348
          %3398 = vmatprep.subr.bf16.mxu0 0
          %3399 = vmatpush1.bf16.msra.mxu0 %v3350
          %3400 = vmatprep.subr.bf16.mxu0 0
          %3401 = vmatpush1.bf16.msra.mxu0 %v3351
          %3402 = vmatprep.subr.bf16.mxu0 0
          %3403 = vmatpush1.bf16.msra.mxu0 %v3352
          %3404 = vmatprep.subr.bf16.mxu0 0
          %3405 = vmatpush1.bf16.msra.mxu0 %v3353
          %3406 = vmatprep.subr.bf16.mxu0 0
          %3407 = vmatpush1.bf16.msra.mxu0 %v3354
          %3408 = vmatprep.subr.bf16.mxu0 0
          %3409 = vmatpush1.bf16.msra.mxu0 %v3355
          %3410 = vmatprep.subr.bf16.mxu0 0
          %3411 = vmatpush1.bf16.msra.mxu0 %v3356
          %3412 = vmatprep.subr.bf16.mxu0 0
          %3413 = vmatpush1.bf16.msra.mxu0 %v3357
          %3414 = vmatprep.subr.bf16.mxu0 0
          %3415 = vmatpush1.bf16.msra.mxu0 %v3358
          %3416 = vmatprep.subr.bf16.mxu0 0
          %3417 = vmatpush1.bf16.msra.mxu0 %v3359
          %3418 = vmatprep.subr.bf16.mxu0 0
          %3419 = vmatpush1.bf16.msra.mxu0 %v3360
          %3420 = vmatprep.subr.bf16.mxu0 0
          %3421 = vmatpush1.bf16.msra.mxu0 %v3361
          %3422 = vmatprep.subr.bf16.mxu0 0
          %3423 = vmatpush1.bf16.msra.mxu0 %v3362
          %3424 = vmatprep.subr.bf16.mxu0 0
          %3425 = vmatpush1.bf16.msra.mxu0 %v3363
          %3426 = vmatprep.subr.bf16.mxu0 0
          %3427 = vmatpush1.bf16.msra.mxu0 %v3364
          %3428 = vmatprep.subr.bf16.mxu0 0
          %3429 = vmatpush1.bf16.msra.mxu0 %v3365
          %3430 = vmatprep.mubr.bf16.mxu0 %v2366
          %3431 = vmatmul.mubr.bf16.gmra.mrb[0].mxu0 %v2365
          %v3432 = vpop.f32.mrb[0].mxu0
          %v3433 = vadd.f32 0.0, %v3432
          %v3434 = vpop.f32.mrb[0].mxu0
          %v3435 = vpop.f32.mrb[0].mxu0
          %v3436 = vadd.f32 0.0, %v3435
          %v3437 = vpop.f32.mrb[0].mxu0
          %3438 = vmatprep.mubr.bf16.mxu0 %v2369
          %3439 = vmatmul.mubr.bf16.gmra.mrb[0].mxu0 %v2368
          %v3440 = vpop.f32.mrb[0].mxu0
          %v3441 = vadd.f32 0.0, %v3440
          %v3442 = vpop.f32.mrb[0].mxu0
          %v3443 = vpop.f32.mrb[0].mxu0
          %v3444 = vadd.f32 0.0, %v3443
          %v3445 = vpop.f32.mrb[0].mxu0
          %3446 = vmatprep.mubr.bf16.mxu0 %v2372
          %3447 = vmatmul.mubr.bf16.gmra.mrb[0].mxu0 %v2371
          %v3448 = vpop.f32.mrb[0].mxu0
          %v3449 = vadd.f32 0.0, %v3448
          %v3450 = vpop.f32.mrb[0].mxu0
          %v3451 = vpop.f32.mrb[0].mxu0
          %v3452 = vadd.f32 0.0, %v3451
          %v3453 = vpop.f32.mrb[0].mxu0
          %3454 = vmatprep.mubr.bf16.mxu0 %v2375
          %3455 = vmatmul.mubr.bf16.gmra.mrb[0].mxu0 %v2374
          %v3456 = vpop.f32.mrb[0].mxu0
          %v3457 = vadd.f32 0.0, %v3456
          %v3458 = vpop.f32.mrb[0].mxu0
          %v3459 = vpop.f32.mrb[0].mxu0
          %v3460 = vadd.f32 0.0, %v3459
          %v3461 = vpop.f32.mrb[0].mxu0
          %3462 = vmatprep.mubr.bf16.mxu0 %v2378
          %3463 = vmatmul.mubr.bf16.gmra.mrb[0].mxu0 %v2377
          %v3464 = vpop.f32.mrb[0].mxu0
          %v3465 = vadd.f32 0.0, %v3464
          %v3466 = vpop.f32.mrb[0].mxu0
          %v3467 = vpop.f32.mrb[0].mxu0
          %v3468 = vadd.f32 0.0, %v3467
          %v3469 = vpop.f32.mrb[0].mxu0
          %3470 = vmatprep.mubr.bf16.mxu0 %v2381
          %3471 = vmatmul.mubr.bf16.gmra.mrb[0].mxu0 %v2380
          %v3472 = vpop.f32.mrb[0].mxu0
          %v3473 = vadd.f32 0.0, %v3472
          %v3474 = vpop.f32.mrb[0].mxu0
          %v3475 = vpop.f32.mrb[0].mxu0
          %v3476 = vadd.f32 0.0, %v3475
          %v3477 = vpop.f32.mrb[0].mxu0
          %3478 = vmatprep.mubr.bf16.mxu0 %v2384
          %3479 = vmatmul.mubr.bf16.gmra.mrb[0].mxu0 %v2383
          %v3480 = vpop.f32.mrb[0].mxu0
          %v3481 = vadd.f32 0.0, %v3480
          %v3482 = vpop.f32.mrb[0].mxu0
          %v3483 = vpop.f32.mrb[0].mxu0
          %v3484 = vadd.f32 0.0, %v3483
          %v3485 = vpop.f32.mrb[0].mxu0
          %3486 = vmatprep.mubr.bf16.mxu0 %v2387
          %3487 = vmatmul.mubr.bf16.gmra.mrb[0].mxu0 %v2386
          %v3488 = vpop.f32.mrb[0].mxu0
          %v3489 = vadd.f32 0.0, %v3488
          %v3490 = vpop.f32.mrb[0].mxu0
          %v3491 = vpop.f32.mrb[0].mxu0
          %v3492 = vadd.f32 0.0, %v3491
          %v3493 = vpop.f32.mrb[0].mxu0
          %3494 = vdwg.mxu0
          %3495 = vmatprep.subr.bf16.mxu0 0
          %3496 = vmatpush1.bf16.msra.mxu0 %v3366
          %3497 = vmatprep.subr.bf16.mxu0 0
          %3498 = vmatpush1.bf16.msra.mxu0 %v3367
          %3499 = vmatprep.subr.bf16.mxu0 0
          %3500 = vmatpush1.bf16.msra.mxu0 %v3368
          %3501 = vmatprep.subr.bf16.mxu0 0
          %3502 = vmatpush1.bf16.msra.mxu0 %v3369
          %3503 = vmatprep.subr.bf16.mxu0 0
          %3504 = vmatpush1.bf16.msra.mxu0 %v3370
          %3505 = vmatprep.subr.bf16.mxu0 0
          %3506 = vmatpush1.bf16.msra.mxu0 %v3371
          %3507 = vmatprep.subr.bf16.mxu0 0
          %3508 = vmatpush1.bf16.msra.mxu0 %v3372
          %3509 = vmatprep.subr.bf16.mxu0 0
          %3510 = vmatpush1.bf16.msra.mxu0 %v3373
          %3511 = vmatprep.subr.bf16.mxu0 0
          %3512 = vmatpush1.bf16.msra.mxu0 0
          %3513 = vmatprep.subr.bf16.mxu0 0
          %3514 = vmatpush1.bf16.msra.mxu0 0
          %3515 = vmatprep.subr.bf16.mxu0 0
          %3516 = vmatpush1.bf16.msra.mxu0 0
          %3517 = vmatprep.subr.bf16.mxu0 0
          %3518 = vmatpush1.bf16.msra.mxu0 0
          %3519 = vmatprep.subr.bf16.mxu0 0
          %3520 = vmatpush1.bf16.msra.mxu0 0
          %3521 = vmatprep.subr.bf16.mxu0 0
          %3522 = vmatpush1.bf16.msra.mxu0 0
          %3523 = vmatprep.subr.bf16.mxu0 0
          %3524 = vmatpush1.bf16.msra.mxu0 0
          %3525 = vmatprep.subr.bf16.mxu0 0
          %3526 = vmatpush1.bf16.msra.mxu0 0
          %3527 = vmatprep.mubr.bf16.mxu0 0
          %3528 = vmatmul.mubr.bf16.gmra.mrb[0].mxu0 %v2367
          %v3529 = vpop.f32.mrb[0].mxu0
          %v3530 = vadd.f32 %v3433, %v3529
          %v3531 = vpop.f32.mrb[0].mxu0
          %v3532 = vpop.f32.mrb[0].mxu0
          %v3533 = vadd.f32 %v3436, %v3532
          %v3534 = vpop.f32.mrb[0].mxu0
          %3535 = vmatprep.mubr.bf16.mxu0 0
          %3536 = vmatmul.mubr.bf16.gmra.mrb[0].mxu0 %v2370
          %v3537 = vpop.f32.mrb[0].mxu0
          %v3538 = vadd.f32 %v3441, %v3537
          %v3539 = vpop.f32.mrb[0].mxu0
          %v3540 = vpop.f32.mrb[0].mxu0
          %v3541 = vadd.f32 %v3444, %v3540
          %v3542 = vpop.f32.mrb[0].mxu0
          %3543 = vmatprep.mubr.bf16.mxu0 0
          %3544 = vmatmul.mubr.bf16.gmra.mrb[0].mxu0 %v2373
          %v3545 = vpop.f32.mrb[0].mxu0
          %v3546 = vadd.f32 %v3449, %v3545
          %v3547 = vpop.f32.mrb[0].mxu0
          %v3548 = vpop.f32.mrb[0].mxu0
          %v3549 = vadd.f32 %v3452, %v3548
          %v3550 = vpop.f32.mrb[0].mxu0
          %3551 = vmatprep.mubr.bf16.mxu0 0
          %3552 = vmatmul.mubr.bf16.gmra.mrb[0].mxu0 %v2376
          %v3553 = vpop.f32.mrb[0].mxu0
          %v3554 = vadd.f32 %v3457, %v3553
          %v3555 = vpop.f32.mrb[0].mxu0
          %v3556 = vpop.f32.mrb[0].mxu0
          %v3557 = vadd.f32 %v3460, %v3556
          %v3558 = vpop.f32.mrb[0].mxu0
          %3559 = vmatprep.mubr.bf16.mxu0 0
          %3560 = vmatmul.mubr.bf16.gmra.mrb[0].mxu0 %v2379
          %v3561 = vpop.f32.mrb[0].mxu0
          %v3562 = vadd.f32 %v3465, %v3561
          %v3563 = vpop.f32.mrb[0].mxu0
          %v3564 = vpop.f32.mrb[0].mxu0
          %v3565 = vadd.f32 %v3468, %v3564
          %v3566 = vpop.f32.mrb[0].mxu0
          %3567 = vmatprep.mubr.bf16.mxu0 0
          %3568 = vmatmul.mubr.bf16.gmra.mrb[0].mxu0 %v2382
          %v3569 = vpop.f32.mrb[0].mxu0
          %v3570 = vadd.f32 %v3473, %v3569
          %v3571 = vpop.f32.mrb[0].mxu0
          %v3572 = vpop.f32.mrb[0].mxu0
          %v3573 = vadd.f32 %v3476, %v3572
          %v3574 = vpop.f32.mrb[0].mxu0
          %3575 = vmatprep.mubr.bf16.mxu0 0
          %3576 = vmatmul.mubr.bf16.gmra.mrb[0].mxu0 %v2385
          %v3577 = vpop.f32.mrb[0].mxu0
          %v3578 = vadd.f32 %v3481, %v3577
          %v3579 = vpop.f32.mrb[0].mxu0
          %v3580 = vpop.f32.mrb[0].mxu0
          %v3581 = vadd.f32 %v3484, %v3580
          %v3582 = vpop.f32.mrb[0].mxu0
          %3583 = vmatprep.mubr.bf16.mxu0 0
          %3584 = vmatmul.mubr.bf16.gmra.mrb[0].mxu0 %v2388
          %v3585 = vpop.f32.mrb[0].mxu0
          %v3586 = vadd.f32 %v3489, %v3585
          %v3587 = vpop.f32.mrb[0].mxu0
          %v3588 = vpop.f32.mrb[0].mxu0
          %v3589 = vadd.f32 %v3492, %v3588
          %v3590 = vpop.f32.mrb[0].mxu0
          %3591 = vdwg.mxu0
          %v3592 = vrot.slane %v3530, 1
          %v3593 = vrot.slane %v3533, 1
          %v3594 = vrot.slane %v3538, 1
          %v3595 = vrot.slane %v3541, 1
          %v3596 = vrot.slane %v3546, 1
          %v3597 = vrot.slane %v3549, 1
          %v3598 = vrot.slane %v3554, 1
          %v3599 = vrot.slane %v3557, 1
          %v3600 = vrot.slane %v3562, 1
          %v3601 = vrot.slane %v3565, 1
          %v3602 = vrot.slane %v3570, 1
          %v3603 = vrot.slane %v3573, 1
          %v3604 = vrot.slane %v3578, 1
          %v3605 = vrot.slane %v3581, 1
          %v3606 = vrot.slane %v3586, 1
          %v3607 = vrot.slane %v3589, 1
          %vm3608 = vcmp.lt.s32.totalorder %v274, 7
          %v3609 = vsel %vm3608, %v3606, %v3607
          %v3610 = vsel %vm3608, %v3605, %v3606
          %v3611 = vsel %vm3608, %v3604, %v3605
          %v3612 = vsel %vm3608, %v3602, %v3603
          %v3613 = vsel %vm3608, %v3601, %v3602
          %v3614 = vsel %vm3608, %v3600, %v3601
          %v3615 = vsel %vm3608, %v3598, %v3599
          %v3616 = vsel %vm3608, %v3597, %v3598
          %v3617 = vsel %vm3608, %v3596, %v3597
          %v3618 = vsel %vm3608, %v3594, %v3595
          %v3619 = vsel %vm3608, %v3593, %v3594
          %v3620 = vsel %vm3608, %v3592, %v3593
          %v3621 = vadd.f32 %v3194, %v3620
          %v3622 = vadd.f32 %v3195, %v3619
          %v3623 = vadd.f32 %v3196, %v3618
          %v3624 = vadd.f32 %v3197, %v3617
          %v3625 = vadd.f32 %v3198, %v3616
          %v3626 = vadd.f32 %v3199, %v3615
          %v3627 = vadd.f32 %v3200, %v3614
          %v3628 = vadd.f32 %v3201, %v3613
          %v3629 = vadd.f32 %v3202, %v3612
          %v3630 = vadd.f32 %v3203, %v3611
          %v3631 = vadd.f32 %v3204, %v3610
          %v3632 = vadd.f32 %v3205, %v3609
          %v3633 = vld [vmem:[%s4] sm:$0x1]
          %v3635 = vlaneseq
          %v3636 = vshrl.u32 %v3635, 7
          %v3637 = vsub.s32 0, %v3636
          %v3638 = vrot.slane %v3633, %v3637
          %v3640 = vadd.f32 %v3621, %v3638
          %v3641 = vadd.f32 %v3622, %v3638
          %v3642 = vadd.f32 %v3623, %v3638
          %v3643 = vadd.f32 %v3624, %v3638
          %v3644 = vadd.f32 %v3625, %v3638
          %v3645 = vadd.f32 %v3626, %v3638
          %v3646 = vadd.f32 %v3627, %v3638
          %v3647 = vadd.f32 %v3628, %v3638
          %v3648 = vadd.f32 %v3629, %v3638
          %v3649 = vadd.f32 %v3630, %v3638
          %v3650 = vadd.f32 %v3631, %v3638
          %v3651 = vadd.f32 %v3632, %v3638
          %s3652 = smul.addr %s2324, 8
          %s3653 = scalar_lea.vmem [#allocation2], %s3652
          %v3654 = vld [vmem:[%s3653] sm:$0xff]
          %v3655 = vld [vmem:[%s3653 + $0x8] sm:$0xff]
          %v3656 = vld [vmem:[%s3653 + $0x10] sm:$0xff]
          %v3657 = vld [vmem:[%s3653 + $0x18] sm:$0xff]
          %v3658 = vld [vmem:[%s3653 + $0x20] sm:$0xff]
          %v3659 = vld [vmem:[%s3653 + $0x28] sm:$0xff]
          %v3660 = vld [vmem:[%s3653 + $0x30] sm:$0xff]
          %v3661 = vld [vmem:[%s3653 + $0x38] sm:$0xff]
          %v3662 = vunpack.c.l.bf16 %v3654
          %v3663 = vunpack.c.h.bf16 %v3654
          %v3664 = vunpack.c.l.bf16 %v3655
          %v3665 = vunpack.c.l.bf16 %v3656
          %v3666 = vunpack.c.h.bf16 %v3656
          %v3667 = vunpack.c.l.bf16 %v3657
          %v3668 = vunpack.c.l.bf16 %v3658
          %v3669 = vunpack.c.h.bf16 %v3658
          %v3670 = vunpack.c.l.bf16 %v3659
          %v3671 = vunpack.c.l.bf16 %v3660
          %v3672 = vunpack.c.h.bf16 %v3660
          %v3673 = vunpack.c.l.bf16 %v3661
          %v3674 = vadd.f32 %v3640, %v3662
          %v3675 = vadd.f32 %v3641, %v3663
          %v3676 = vadd.f32 %v3642, %v3664
          %v3677 = vadd.f32 %v3643, %v3665
          %v3678 = vadd.f32 %v3644, %v3666
          %v3679 = vadd.f32 %v3645, %v3667
          %v3680 = vadd.f32 %v3646, %v3668
          %v3681 = vadd.f32 %v3647, %v3669
          %v3682 = vadd.f32 %v3648, %v3670
          %v3683 = vadd.f32 %v3649, %v3671
          %v3684 = vadd.f32 %v3650, %v3672
          %v3685 = vadd.f32 %v3651, %v3673
          %v3686 = vmax.f32 %v3674, 0.0
          %v3687 = vmax.f32 %v3675, 0.0
          %v3688 = vmax.f32 %v3676, 0.0
          %v3689 = vmax.f32 %v3677, 0.0
          %v3690 = vmax.f32 %v3678, 0.0
          %v3691 = vmax.f32 %v3679, 0.0
          %v3692 = vmax.f32 %v3680, 0.0
          %v3693 = vmax.f32 %v3681, 0.0
          %v3694 = vmax.f32 %v3682, 0.0
          %v3695 = vmax.f32 %v3683, 0.0
          %v3696 = vmax.f32 %v3684, 0.0
          %v3697 = vmax.f32 %v3685, 0.0
          %v3698 = vpack.c.bf16 %v3687, %v3686
          %v3699 = vpack.c.bf16 %v3688, %v3688
          %v3700 = vpack.c.bf16 %v3690, %v3689
          %v3701 = vpack.c.bf16 %v3691, %v3691
          %v3702 = vpack.c.bf16 %v3693, %v3692
          %v3703 = vpack.c.bf16 %v3694, %v3694
          %v3704 = vpack.c.bf16 %v3696, %v3695
          %v3705 = vpack.c.bf16 %v3697, %v3697
          %s3706 = smul.u32 %s2297, 4
          %v3715 = vunpack.c.l.b16 %v3698
          %v3716 = vunpack.c.h.b16 %v3698
          %v3717 = vunpack.c.l.b16 %v3699
          %v3718 = vunpack.c.l.b16 %v3700
          %v3719 = vunpack.c.h.b16 %v3700
          %v3720 = vunpack.c.l.b16 %v3701
          %v3721 = vunpack.c.l.b16 %v3702
          %v3722 = vunpack.c.h.b16 %v3702
          %v3723 = vunpack.c.l.b16 %v3703
          %v3724 = vunpack.c.l.b16 %v3704
          %v3725 = vunpack.c.h.b16 %v3704
          %v3726 = vunpack.c.l.b16 %v3705
          %v3727 = vpack.c.b16 %v3715, %v3715
          %v3728 = vpack.c.b16 %v3716, %v3716
          %v3729 = vpack.c.b16 %v3717, %v3717
          %v3730 = vpack.c.b16 %v3718, %v3718
          %v3731 = vpack.c.b16 %v3719, %v3719
          %v3732 = vpack.c.b16 %v3720, %v3720
          %v3733 = vpack.c.b16 %v3721, %v3721
          %v3734 = vpack.c.b16 %v3722, %v3722
          %v3735 = vpack.c.b16 %v3723, %v3723
          %v3736 = vpack.c.b16 %v3724, %v3724
          %v3737 = vpack.c.b16 %v3725, %v3725
          %v3738 = vpack.c.b16 %v3726, %v3726
          %vm3739 = vsmask.f32 3328
          %vm3740 = vsmask.f32 7440
          %vm3741 = vmor %vm3739, %vm3740
          %v3743 = vshrl.u32 %v3727, 16
          %v3745 = vrot.slane %v3743, 4
          %v3746 = vshll.u32 %v3727, 16
          %v3748 = vrot.slane %v3746, 5
          %v3749 = vor.u32 %v3745, %v3748
          %v3750 = vrot.slane %v3749, 4
          %v3752 = vshll.u32 %v3728, 16
          %v3754 = vrot.slane %v3752, 5
          %v3755 = vsel %vm3741, %v3750, %v3754
          %v3756 = vshrl.u32 %v3728, 16
          %v3758 = vrot.slane %v3756, 4
          %v3759 = vor.u32 %v3758, %v3754
          %v3760 = vrot.slane %v3759, 4
          %v3762 = vshll.u32 %v3729, 16
          %v3764 = vrot.slane %v3762, 5
          %v3765 = vsel %vm3741, %v3760, %v3764
          %v3767 = vshrl.u32 %v3730, 16
          %v3769 = vrot.slane %v3767, 4
          %v3770 = vshll.u32 %v3730, 16
          %v3772 = vrot.slane %v3770, 5
          %v3773 = vor.u32 %v3769, %v3772
          %v3774 = vrot.slane %v3773, 4
          %v3776 = vshll.u32 %v3731, 16
          %v3778 = vrot.slane %v3776, 5
          %v3779 = vsel %vm3741, %v3774, %v3778
          %v3780 = vshrl.u32 %v3731, 16
          %v3782 = vrot.slane %v3780, 4
          %v3783 = vor.u32 %v3782, %v3778
          %v3784 = vrot.slane %v3783, 4
          %v3786 = vshll.u32 %v3732, 16
          %v3788 = vrot.slane %v3786, 5
          %v3789 = vsel %vm3741, %v3784, %v3788
          %v3791 = vshrl.u32 %v3733, 16
          %v3793 = vrot.slane %v3791, 4
          %v3794 = vshll.u32 %v3733, 16
          %v3796 = vrot.slane %v3794, 5
          %v3797 = vor.u32 %v3793, %v3796
          %v3798 = vrot.slane %v3797, 4
          %v3800 = vshll.u32 %v3734, 16
          %v3802 = vrot.slane %v3800, 5
          %v3803 = vsel %vm3741, %v3798, %v3802
          %v3804 = vshrl.u32 %v3734, 16
          %v3806 = vrot.slane %v3804, 4
          %v3807 = vor.u32 %v3806, %v3802
          %v3808 = vrot.slane %v3807, 4
          %v3810 = vshll.u32 %v3735, 16
          %v3812 = vrot.slane %v3810, 5
          %v3813 = vsel %vm3741, %v3808, %v3812
          %v3815 = vshrl.u32 %v3736, 16
          %v3817 = vrot.slane %v3815, 4
          %v3818 = vshll.u32 %v3736, 16
          %v3820 = vrot.slane %v3818, 5
          %v3821 = vor.u32 %v3817, %v3820
          %v3822 = vrot.slane %v3821, 4
          %v3824 = vshll.u32 %v3737, 16
          %v3826 = vrot.slane %v3824, 5
          %v3827 = vsel %vm3741, %v3822, %v3826
          %v3828 = vshrl.u32 %v3737, 16
          %v3830 = vrot.slane %v3828, 4
          %v3831 = vor.u32 %v3830, %v3826
          %v3832 = vrot.slane %v3831, 4
          %v3834 = vshll.u32 %v3738, 16
          %v3836 = vrot.slane %v3834, 5
          %v3837 = vsel %vm3741, %v3832, %v3836
          %s3846 = smul.u32 %s3706, 2
          %s3847 = smul.addr %s3846, 4
          %s3848 = scalar_lea.vmem %s271, %s3847 [#allocation11]
          %3849 = vst [vmem:[%s3848] sm:$0xf] %v3755
          %3850 = vst [vmem:[%s3848 + $0x4] sm:$0xf] %v3765
          %3851 = vst [vmem:[%s3848 + $0x8] sm:$0xf] %v3779
          %3852 = vst [vmem:[%s3848 + $0xc] sm:$0xf] %v3789
          %3853 = vst [vmem:[%s3848 + $0x10] sm:$0xf] %v3803
          %3854 = vst [vmem:[%s3848 + $0x14] sm:$0xf] %v3813
          %3855 = vst [vmem:[%s3848 + $0x18] sm:$0xf] %v3827
          %3856 = vst [vmem:[%s3848 + $0x1c] sm:$0xf] %v3837
        $region64: #{tpu_custom_call.1} parent=39 // loop_footer
          %s2301 = sadd.s32 1, %s2297
        $region65: #{tpu_custom_call.1} parent=39 // loop_footer_branch
          %2296 = sbr.rel target = $region61
        $region66: #{tpu_custom_call.1} parent=39 // loop_exit
          _
        %s3857 = sand.u32 %s141, 1
        %s3858 = scalar_lea.sflag [#allocation7], %s3857
        %s3859 = sand.u32 %s141, 1
        %s3860 = smul.addr %s3859, 128
        %s3861 = scalar_lea.vmem [#allocation11], %s3860
        // Predicated region
        $region67: #{tpu_custom_call.1} parent=39 // pred_check
          %p3862 = pneg %p151
        $region68: #{tpu_custom_call.1} parent=39 // pred_check_branch
          %3864 = sbr.rel (%p3862) target = $region70
        $region69: #{tpu_custom_call.1} parent=39 // pred_region
          %s3866 = ssub.s32 2048, 2048
          %3867 = vsyncadd %s3858, %s3866
          %s3868 = smul.addr %s23, 32
          %s3869 = smul.addr %s3868, 64
          %s3870 = scalar_lea.hbm %s5, %s3869
          %s3871 = sshll.u32 %s3861, 4
          %s3872 = int_to_ptr.vmem [resolvable:$true] %s3871
          %3877 = dma.vmem_to_hbm [thread:$0]  %s3872, 2048, %s3870, %s3858, 64, 64, 4
        $region70: #{tpu_custom_call.1} parent=39 // pred_fallthru
          _
      $region40: #{tpu_custom_call.1} parent=5 // pred_fallthru
        _
      %p3878 = scmp.le.s32.totalorder 2, %s18
      // Predicated region
      $region71: #{tpu_custom_call.1} parent=5 // pred_check
        %p3879 = pneg %p3878
      $region72: #{tpu_custom_call.1} parent=5 // pred_check_branch
        %3881 = sbr.rel (%p3879) target = $region74
      $region73: #{tpu_custom_call.1} parent=5 // pred_region
        %s3882 = ssub.s32 %s18, 2
        // Predicated region
        $region75: #{tpu_custom_call.1} parent=73 // pred_check
          %p3883 = pneg %p157
        $region76: #{tpu_custom_call.1} parent=73 // pred_check_branch
          %3885 = sbr.rel (%p3883) target = $region78
        $region77: #{tpu_custom_call.1} parent=73 // pred_region
          %s3886 = sand.u32 %s142, 1
          %s3887 = scalar_lea.sflag [#allocation7], %s3886
          %s3888 = sand.u32 %s142, 1
          %s3889 = smul.addr %s3888, 128
          %s3890 = scalar_lea.vmem [#allocation11], %s3889
          %3891 = dma.done %s3887, 2048
        $region78: #{tpu_custom_call.1} parent=73 // pred_fallthru
          _
      $region74: #{tpu_custom_call.1} parent=5 // pred_fallthru
        _
    $region6: #{tpu_custom_call.1} parent=1 // loop_footer
      %s22 = sadd.s32 1, %s18
    $region7: #{tpu_custom_call.1} parent=1 // loop_footer_branch
      %17 = sbr.rel target = $region3
    $region8: #{tpu_custom_call.1} parent=1 // loop_exit
      _
    %3892 = vsyncpa [#allocation6], 1
    %s3893 = scalar_lea.sflag [#allocation6], 1
    %3894 = vsyncpa %s3893, 1
    %3895 = vsyncpa [#allocation9], 1
    %3896 = vsyncpa [#allocation7], 1
    %s3897 = scalar_lea.sflag [#allocation7], 1
    %3898 = vsyncpa %s3897, 1

</llo_original>
